<compile_context>
chip_gen: v6e
topology: v6e:2x2x1
jax: 0.10.0
libtpu: 0.0.40
codegen_flags: <defaults>
</compile_context>

<pallas_src>
import functools

import jax
import jax.numpy as jnp
from jax.experimental import pallas as pl
from jax.experimental.pallas import tpu as pltpu

# Layer widths of the classifier MLP (input H is prepended at build time).
_LAYER_DIMS = [1024, 1024, 512, 256, 128, 64]
_OUT_DIM = _LAYER_DIMS[-1]      # 64 logical outputs
_OUT_PAD = 128                  # lane-dense padded output width


def _round_up(n, m):
    return ((n + m - 1) // m) * m


def _mlps_kernel(x_ref, *refs):
    """Fused 6-layer MLP: out = relu(...relu(relu(x@W1+b1)@W2+b2)...).

    refs layout: (w1, ..., w6, bias_slab, o_ref)
      x_ref:     (tm, H)        bf16 input tile
      wK:        (inK, outK)    bf16 weight matrix, resident in VMEM
      bias_slab: (1, sum_outK)  f32 packed bias rows (last layer padded to 128)
      o_ref:     (tm, 128)      bf16 output tile (lane-dense store)
    """
    o_ref = refs[-1]
    bias_ref = refs[-2]
    w_refs = refs[:-2]
    n_layers = len(w_refs)

    h = x_ref[...]                                    # bf16 operand into the MXU
    off = 0
    for l in range(n_layers):
        w = w_refs[l][...]                            # bf16 (in, out)
        n_out = w.shape[1]
        b = bias_ref[:, off:off + n_out]              # f32 (1, out), static slice
        off += n_out
        acc = jnp.dot(h, w, preferred_element_type=jnp.float32)   # f32 accumulate
        a = jnp.maximum(acc + b, 0.0)                 # bias + ReLU in f32
        if l + 1 < n_layers:
            h = a.astype(jnp.bfloat16)                # bf16 intermediate (half the spill)
        else:
            o_ref[...] = a.astype(o_ref.dtype)        # lane-dense (tm, 128) bf16 store


@functools.partial(jax.jit, static_argnames=("tm",))
def _mlps_impl(x, kws, bias_slab, *, tm):
    """x: (M, H) bf16; kws: tuple of bf16 (in, out) weights (last padded to 128
    outputs); bias_slab: (1, sum_out) f32.  Returns (M, 128) bf16."""
    M, H = x.shape
    grid_m = pl.cdiv(M, tm)   # ragged last block handled by Pallas; rows >= M
                              # are garbage and discarded by the wrapper slice.

    in_specs = [pl.BlockSpec((tm, H), lambda i: (i, 0))]
    for w in kws:
        # Grid-invariant: constant index_map -> DMA'd once, stays resident.
        in_specs.append(pl.BlockSpec(w.shape, lambda i: (0, 0)))
    in_specs.append(pl.BlockSpec(bias_slab.shape, lambda i: (0, 0)))

    # VMEM budget from actual operand sizes (params may be double-buffered by
    # the default pipeliner even though they are only fetched once).
    param_bytes = sum(int(p.size) * p.dtype.itemsize for p in kws)
    param_bytes += int(bias_slab.size) * bias_slab.dtype.itemsize
    vmem_limit = int(
        2 * param_bytes                       # invariant operands (x2 buffers)
        + 2 * tm * H * 2                      # bf16 input tile, double-buffered
        + 2 * tm * _OUT_PAD * 2               # bf16 output tile, double-buffered
        + 4 * tm * max(_LAYER_DIMS) * 4       # f32 acc / bf16 activation working set
        + (6 << 20))                          # compiler scratch slack
    vmem_limit = max(vmem_limit, 16 << 20)
    vmem_limit = min(vmem_limit, 56 << 20)    # stay inside v7x's 64 MiB physical

    out = pl.pallas_call(
        _mlps_kernel,
        out_shape=jax.ShapeDtypeStruct((M, _OUT_PAD), jnp.bfloat16),
        grid_spec=pltpu.PrefetchScalarGridSpec(
            num_scalar_prefetch=0,
            grid=(grid_m,),
            in_specs=in_specs,
            out_specs=pl.BlockSpec((tm, _OUT_PAD), lambda i: (i, 0)),
        ),
        compiler_params=pltpu.CompilerParams(
            # Independent M tiles: on v7x the grid shards across both TCs.
            dimension_semantics=("parallel",),
            vmem_limit_bytes=vmem_limit,
        ),
    )(x, *kws, bias_slab)
    return out


def _prepare_params(params):
    """Cast weights to bf16, zero-pad last layer 64 -> 128 outputs, and pack
    all biases into a single (1, sum_out) f32 slab."""
    ws = [jnp.asarray(w) for w in params[0::2]]
    bs = [jnp.asarray(b).reshape(1, -1) for b in params[1::2]]
    pad = _OUT_PAD - ws[-1].shape[1]
    if pad > 0:
        ws[-1] = jnp.pad(ws[-1], ((0, 0), (0, pad)))
        bs[-1] = jnp.pad(bs[-1], ((0, 0), (0, pad)))
    kws = tuple(w.astype(jnp.bfloat16) for w in ws)
    bias_slab = jnp.concatenate([b.astype(jnp.float32) for b in bs], axis=1)
    return kws, bias_slab


def mlps_forward(bert_tensor, params, *, tm=512, out_dtype=jnp.float32):
    """Run the MLPS classifier.

    bert_tensor: (..., H) float32 or bfloat16
    params: flat tuple (w1, b1, ..., w6, b6) with wK: (inK, outK), bK: (1, outK)
    returns: (..., 64) in `out_dtype` (default float32, matching the module)

    tm: row-tile size.  512 default (v6e/v7x sweet spot); use 256-384 on v5e.
    For small M the tile is automatically clamped to round_up(M, 16).
    Note: for repeated inference calls, pre-convert params once (the bf16 cast
    / bias packing here is re-traced per call otherwise).
    """
    H = bert_tensor.shape[-1]
    lead_shape = bert_tensor.shape[:-1]
    x = bert_tensor.reshape(-1, H)
    if x.dtype != jnp.bfloat16:
        x = x.astype(jnp.bfloat16)       # bf16 input: half the DMA, same kernel math
    M = x.shape[0]

    # Clamp the tile for small batches (multiple of 16 = bf16 sublane packing).
    tm_eff = max(16, min(tm, _round_up(M, 16)))

    kws, bias_slab = _prepare_params(params)
    out = _mlps_impl(x, kws, bias_slab, tm=tm_eff)

    # Rows >= M (ragged last block) and lanes >= 64 (padding) are discarded here.
    out = out[:M, :_OUT_DIM].astype(out_dtype)
    return out.reshape(*lead_shape, _OUT_DIM)


def init_mlps_params(key, H):
    """nn.Linear default init: U(-1/sqrt(fan_in), +1/sqrt(fan_in))."""
    dims = [H] + _LAYER_DIMS
    params = []
    for l in range(len(_LAYER_DIMS)):
        fan_in, fan_out = dims[l], dims[l + 1]
        key, kw, kb = jax.random.split(key, 3)
        bound = 1.0 / jnp.sqrt(jnp.float32(fan_in))
        # stored as (in, out) so the kernel does x @ W directly
        w = jax.random.uniform(kw, (fan_in, fan_out), jnp.float32, -bound, bound)
        b = jax.random.uniform(kb, (1, fan_out), jnp.float32, -bound, bound)
        params += [w, b]
    return tuple(params)


def mlps_reference_f32(bert_tensor, params):
    """Pure-f32 JAX reference matching the PyTorch module."""
    h = bert_tensor.astype(jnp.float32)
    for w, b in zip(params[0::2], params[1::2]):
        h = jnp.maximum(h @ w + b.reshape(1, -1), 0.0)
    return h


def mlps_reference_mixed(bert_tensor, params):
    """Reference emulating the kernel's bf16-operand / f32-accumulate / bf16-
    activation arithmetic (including the bf16 output store)."""
    h = bert_tensor.astype(jnp.bfloat16)
    n = len(params) // 2
    for l in range(n):
        w = params[2 * l].astype(jnp.bfloat16)
        b = params[2 * l + 1].astype(jnp.float32).reshape(1, -1)
        acc = jnp.dot(h, w, preferred_element_type=jnp.float32)
        a = jnp.maximum(acc + b, 0.0)
        h = a.astype(jnp.bfloat16)
    return h.astype(jnp.float32)


if __name__ == "__main__":
    key = jax.random.PRNGKey(0)
    batch, seq, H = 2, 8, 32     # small smoke-test shapes; flattened M = 16

    k_x, k_p = jax.random.split(key)
    bert_tensor = jax.random.normal(k_x, (batch, seq, H), jnp.float32)
    params = init_mlps_params(k_p, H)

    out = mlps_forward(bert_tensor, params)
    out = jax.block_until_ready(out)
    assert out.shape == (batch, seq, _OUT_DIM), out.shape
    assert out.dtype == jnp.float32, out.dtype

    # Tight-ish check vs a reference using the same bf16/f32 mixed arithmetic.
    ref_mixed = mlps_reference_mixed(bert_tensor, params)
    assert jnp.allclose(out, ref_mixed, atol=2e-2, rtol=2e-2), \
        "mismatch vs mixed-precision reference"

    # Bounded-drift check vs the pure-f32 math of the original module.
    ref_f32 = mlps_reference_f32(bert_tensor, params)
    assert jnp.allclose(out, ref_f32, atol=8e-2, rtol=1e-1), \
        "excessive drift vs f32 reference"

    print("KERNEL_OK")
</pallas_src>

<mosaic_0001>
module attributes {stable_mosaic.version = 11 : i64} {
  func.func @_mlps_kernel(%arg0: i32, %arg1: memref<16x32xbf16, #tpu.memory_space<vmem>>, %arg2: memref<32x1024xbf16, #tpu.memory_space<vmem>>, %arg3: memref<1024x1024xbf16, #tpu.memory_space<vmem>>, %arg4: memref<1024x512xbf16, #tpu.memory_space<vmem>>, %arg5: memref<512x256xbf16, #tpu.memory_space<vmem>>, %arg6: memref<256x128xbf16, #tpu.memory_space<vmem>>, %arg7: memref<128x128xbf16, #tpu.memory_space<vmem>>, %arg8: memref<1x3072xf32, #tpu.memory_space<vmem>>, %arg9: memref<16x128xbf16, #tpu.memory_space<vmem>>) attributes {dimension_semantics = [#tpu.dimension_semantics<parallel>], iteration_bounds = array<i64: 1>, scalar_prefetch = 0 : i64, scratch_operands = 0 : i64, tpu.core_type = #tpu.core_type<tc>, window_params = [{transform_indices = @transform_0, window_bounds = array<i64: 16, 32>}, {pipeline_mode = #tpu.pipeline_mode<synchronous>, transform_indices = @transform_1, window_bounds = array<i64: 32, 1024>}, {pipeline_mode = #tpu.pipeline_mode<synchronous>, transform_indices = @transform_2, window_bounds = array<i64: 1024, 1024>}, {pipeline_mode = #tpu.pipeline_mode<synchronous>, transform_indices = @transform_3, window_bounds = array<i64: 1024, 512>}, {pipeline_mode = #tpu.pipeline_mode<synchronous>, transform_indices = @transform_4, window_bounds = array<i64: 512, 256>}, {pipeline_mode = #tpu.pipeline_mode<synchronous>, transform_indices = @transform_5, window_bounds = array<i64: 256, 128>}, {pipeline_mode = #tpu.pipeline_mode<synchronous>, transform_indices = @transform_6, window_bounds = array<i64: 128, 128>}, {pipeline_mode = #tpu.pipeline_mode<synchronous>, transform_indices = @transform_7, window_bounds = array<i64: 1, 3072>}, {transform_indices = @transform_8, window_bounds = array<i64: 16, 128>}]} {
    %c0 = arith.constant 0 : index
    %c0_0 = arith.constant 0 : index
    %0 = vector.load %arg1[%c0, %c0_0] : memref<16x32xbf16, #tpu.memory_space<vmem>>, vector<16x32xbf16>
    %c0_1 = arith.constant 0 : index
    %c0_2 = arith.constant 0 : index
    %1 = vector.load %arg2[%c0_1, %c0_2] : memref<32x1024xbf16, #tpu.memory_space<vmem>>, vector<32x1024xbf16>
    %c0_3 = arith.constant 0 : index
    %c0_4 = arith.constant 0 : index
    %2 = vector.load %arg8[%c0_3, %c0_4] : memref<1x3072xf32, #tpu.memory_space<vmem>>, vector<1x1024xf32>
    %cst = arith.constant dense<0.000000e+00> : vector<16x1024xf32>
    %3 = tpu.matmul %0, %1, %cst {dimension_numbers = #tpu.dot_dimension_numbers<[1], [0], [0], [1], [0, 0, 1, 1], [], []>} : vector<16x32xbf16>, vector<32x1024xbf16>, vector<16x1024xf32> -> vector<16x1024xf32>
    %4 = vector.broadcast %2 : vector<1x1024xf32> to vector<16x1024xf32>
    %5 = arith.addf %3, %4 : vector<16x1024xf32>
    %cst_5 = arith.constant 0.000000e+00 : f32
    %6 = vector.broadcast %cst_5 : f32 to vector<16x1024xf32>
    %7 = arith.maximumf %5, %6 : vector<16x1024xf32>
    %8 = arith.truncf %7 : vector<16x1024xf32> to vector<16x1024xbf16>
    %c0_6 = arith.constant 0 : index
    %c0_7 = arith.constant 0 : index
    %9 = vector.load %arg3[%c0_6, %c0_7] : memref<1024x1024xbf16, #tpu.memory_space<vmem>>, vector<1024x1024xbf16>
    %c0_8 = arith.constant 0 : index
    %c1024 = arith.constant 1024 : index
    %10 = vector.load %arg8[%c0_8, %c1024] : memref<1x3072xf32, #tpu.memory_space<vmem>>, vector<1x1024xf32>
    %cst_9 = arith.constant dense<0.000000e+00> : vector<16x1024xf32>
    %11 = tpu.matmul %8, %9, %cst_9 {dimension_numbers = #tpu.dot_dimension_numbers<[1], [0], [0], [1], [0, 0, 1, 1], [], []>} : vector<16x1024xbf16>, vector<1024x1024xbf16>, vector<16x1024xf32> -> vector<16x1024xf32>
    %12 = vector.broadcast %10 : vector<1x1024xf32> to vector<16x1024xf32>
    %13 = arith.addf %11, %12 : vector<16x1024xf32>
    %cst_10 = arith.constant 0.000000e+00 : f32
    %14 = vector.broadcast %cst_10 : f32 to vector<16x1024xf32>
    %15 = arith.maximumf %13, %14 : vector<16x1024xf32>
    %16 = arith.truncf %15 : vector<16x1024xf32> to vector<16x1024xbf16>
    %c0_11 = arith.constant 0 : index
    %c0_12 = arith.constant 0 : index
    %17 = vector.load %arg4[%c0_11, %c0_12] : memref<1024x512xbf16, #tpu.memory_space<vmem>>, vector<1024x512xbf16>
    %c0_13 = arith.constant 0 : index
    %c2048 = arith.constant 2048 : index
    %18 = vector.load %arg8[%c0_13, %c2048] : memref<1x3072xf32, #tpu.memory_space<vmem>>, vector<1x512xf32>
    %cst_14 = arith.constant dense<0.000000e+00> : vector<16x512xf32>
    %19 = tpu.matmul %16, %17, %cst_14 {dimension_numbers = #tpu.dot_dimension_numbers<[1], [0], [0], [1], [0, 0, 1, 1], [], []>} : vector<16x1024xbf16>, vector<1024x512xbf16>, vector<16x512xf32> -> vector<16x512xf32>
    %20 = vector.broadcast %18 : vector<1x512xf32> to vector<16x512xf32>
    %21 = arith.addf %19, %20 : vector<16x512xf32>
    %cst_15 = arith.constant 0.000000e+00 : f32
    %22 = vector.broadcast %cst_15 : f32 to vector<16x512xf32>
    %23 = arith.maximumf %21, %22 : vector<16x512xf32>
    %24 = arith.truncf %23 : vector<16x512xf32> to vector<16x512xbf16>
    %c0_16 = arith.constant 0 : index
    %c0_17 = arith.constant 0 : index
    %25 = vector.load %arg5[%c0_16, %c0_17] : memref<512x256xbf16, #tpu.memory_space<vmem>>, vector<512x256xbf16>
    %c0_18 = arith.constant 0 : index
    %c2560 = arith.constant 2560 : index
    %26 = vector.load %arg8[%c0_18, %c2560] : memref<1x3072xf32, #tpu.memory_space<vmem>>, vector<1x256xf32>
    %cst_19 = arith.constant dense<0.000000e+00> : vector<16x256xf32>
    %27 = tpu.matmul %24, %25, %cst_19 {dimension_numbers = #tpu.dot_dimension_numbers<[1], [0], [0], [1], [0, 0, 1, 1], [], []>} : vector<16x512xbf16>, vector<512x256xbf16>, vector<16x256xf32> -> vector<16x256xf32>
    %28 = vector.broadcast %26 : vector<1x256xf32> to vector<16x256xf32>
    %29 = arith.addf %27, %28 : vector<16x256xf32>
    %cst_20 = arith.constant 0.000000e+00 : f32
    %30 = vector.broadcast %cst_20 : f32 to vector<16x256xf32>
    %31 = arith.maximumf %29, %30 : vector<16x256xf32>
    %32 = arith.truncf %31 : vector<16x256xf32> to vector<16x256xbf16>
    %c0_21 = arith.constant 0 : index
    %c0_22 = arith.constant 0 : index
    %33 = vector.load %arg6[%c0_21, %c0_22] : memref<256x128xbf16, #tpu.memory_space<vmem>>, vector<256x128xbf16>
    %c0_23 = arith.constant 0 : index
    %c2816 = arith.constant 2816 : index
    %34 = vector.load %arg8[%c0_23, %c2816] : memref<1x3072xf32, #tpu.memory_space<vmem>>, vector<1x128xf32>
    %cst_24 = arith.constant dense<0.000000e+00> : vector<16x128xf32>
    %35 = tpu.matmul %32, %33, %cst_24 {dimension_numbers = #tpu.dot_dimension_numbers<[1], [0], [0], [1], [0, 0, 1, 1], [], []>} : vector<16x256xbf16>, vector<256x128xbf16>, vector<16x128xf32> -> vector<16x128xf32>
    %36 = vector.broadcast %34 : vector<1x128xf32> to vector<16x128xf32>
    %37 = arith.addf %35, %36 : vector<16x128xf32>
    %cst_25 = arith.constant 0.000000e+00 : f32
    %38 = vector.broadcast %cst_25 : f32 to vector<16x128xf32>
    %39 = arith.maximumf %37, %38 : vector<16x128xf32>
    %40 = arith.truncf %39 : vector<16x128xf32> to vector<16x128xbf16>
    %c0_26 = arith.constant 0 : index
    %c0_27 = arith.constant 0 : index
    %41 = vector.load %arg7[%c0_26, %c0_27] : memref<128x128xbf16, #tpu.memory_space<vmem>>, vector<128x128xbf16>
    %c0_28 = arith.constant 0 : index
    %c2944 = arith.constant 2944 : index
    %42 = vector.load %arg8[%c0_28, %c2944] : memref<1x3072xf32, #tpu.memory_space<vmem>>, vector<1x128xf32>
    %cst_29 = arith.constant dense<0.000000e+00> : vector<16x128xf32>
    %43 = tpu.matmul %40, %41, %cst_29 {dimension_numbers = #tpu.dot_dimension_numbers<[1], [0], [0], [1], [0, 0, 1, 1], [], []>} : vector<16x128xbf16>, vector<128x128xbf16>, vector<16x128xf32> -> vector<16x128xf32>
    %44 = vector.broadcast %42 : vector<1x128xf32> to vector<16x128xf32>
    %45 = arith.addf %43, %44 : vector<16x128xf32>
    %cst_30 = arith.constant 0.000000e+00 : f32
    %46 = vector.broadcast %cst_30 : f32 to vector<16x128xf32>
    %47 = arith.maximumf %45, %46 : vector<16x128xf32>
    %48 = arith.truncf %47 : vector<16x128xf32> to vector<16x128xbf16>
    %c0_31 = arith.constant 0 : index
    %c0_32 = arith.constant 0 : index
    %49 = vector.load %arg9[%c0_31, %c0_32] : memref<16x128xbf16, #tpu.memory_space<vmem>>, vector<16x128xbf16>
    tpu.vector_store %arg9[%c0_31, %c0_32], %48 {strides = array<i32>} : memref<16x128xbf16, #tpu.memory_space<vmem>>, vector<16x128xbf16>,
    return
  }
  func.func @transform_0(%arg0: i32) -> (i32, i32) {
    %c0_i32 = arith.constant 0 : i32
    %c0_i32_0 = arith.constant 0 : i32
    return %arg0, %c0_i32 : i32, i32
  }
  func.func @transform_1(%arg0: i32) -> (i32, i32) {
    %c0_i32 = arith.constant 0 : i32
    %c0_i32_0 = arith.constant 0 : i32
    %c0_i32_1 = arith.constant 0 : i32
    return %c0_i32, %c0_i32_0 : i32, i32
  }
  func.func @transform_2(%arg0: i32) -> (i32, i32) {
    %c0_i32 = arith.constant 0 : i32
    %c0_i32_0 = arith.constant 0 : i32
    %c0_i32_1 = arith.constant 0 : i32
    return %c0_i32, %c0_i32_0 : i32, i32
  }
  func.func @transform_3(%arg0: i32) -> (i32, i32) {
    %c0_i32 = arith.constant 0 : i32
    %c0_i32_0 = arith.constant 0 : i32
    %c0_i32_1 = arith.constant 0 : i32
    return %c0_i32, %c0_i32_0 : i32, i32
  }
  func.func @transform_4(%arg0: i32) -> (i32, i32) {
    %c0_i32 = arith.constant 0 : i32
    %c0_i32_0 = arith.constant 0 : i32
    %c0_i32_1 = arith.constant 0 : i32
    return %c0_i32, %c0_i32_0 : i32, i32
  }
  func.func @transform_5(%arg0: i32) -> (i32, i32) {
    %c0_i32 = arith.constant 0 : i32
    %c0_i32_0 = arith.constant 0 : i32
    %c0_i32_1 = arith.constant 0 : i32
    return %c0_i32, %c0_i32_0 : i32, i32
  }
  func.func @transform_6(%arg0: i32) -> (i32, i32) {
    %c0_i32 = arith.constant 0 : i32
    %c0_i32_0 = arith.constant 0 : i32
    %c0_i32_1 = arith.constant 0 : i32
    return %c0_i32, %c0_i32_0 : i32, i32
  }
  func.func @transform_7(%arg0: i32) -> (i32, i32) {
    %c0_i32 = arith.constant 0 : i32
    %c0_i32_0 = arith.constant 0 : i32
    %c0_i32_1 = arith.constant 0 : i32
    return %c0_i32, %c0_i32_0 : i32, i32
  }
  func.func @transform_8(%arg0: i32) -> (i32, i32) {
    %c0_i32 = arith.constant 0 : i32
    %c0_i32_0 = arith.constant 0 : i32
    return %arg0, %c0_i32 : i32, i32
  }
}

</mosaic_0001>

<llo_original>
// kernel: _mlps_impl.1
$region0: #{_mlps_impl.1}
  #allocation0 [shape = 'u32[]', space=smem, size = 0x4, offset = 0x4, fixed_abs, tag = 'smem constant byte address 0x4 - core index']
  #allocation1 [shape = 'u32[144,128]{1,0:T(1,128)}', space=vmem, size = 0x12000, scoped, tag = 'internal scratch']
  %s0 = inlined_call_operand.hbm [shape: bf16[16,32], index: 0, kind: input, shape index: {}]
  %s1 = inlined_call_operand.hbm [shape: bf16[32,1024], index: 1, kind: input, shape index: {}]
  %s2 = inlined_call_operand.hbm [shape: bf16[1024,1024], index: 2, kind: input, shape index: {}]
  %s3 = inlined_call_operand.hbm [shape: bf16[1024,512], index: 3, kind: input, shape index: {}]
  %s4 = inlined_call_operand.hbm [shape: bf16[512,256], index: 4, kind: input, shape index: {}]
  %s5 = inlined_call_operand.hbm [shape: bf16[256,128], index: 5, kind: input, shape index: {}]
  %s6 = inlined_call_operand.hbm [shape: bf16[128,128], index: 6, kind: input, shape index: {}]
  %s7 = inlined_call_operand.hbm [shape: f32[1,3072], index: 7, kind: input, shape index: {}]
  %s8 = inlined_call_operand.hbm [shape: bf16[16,128], index: 8, kind: output, shape index: {}]
  %s9 = sld [smem:[#allocation0]]
  $region74: #{_mlps_impl.1} parent=0
    _
  %s11 = ssub.s32 1, %s9
  %s12 = scalar_select 0, %s11, %s9
  $region1: #{_mlps_impl.1} parent=0
    #allocation2 [shape = 'u8[4096]{0}', space=vmem, size = 0x1000, scoped, tag = 'input window, operand 0, single buffered']
    #allocation3 [shape = 's32[1]{0}', space=sflag, size = 0x4, scoped, tag = 'scoped memory for _mlps_impl.1']
    #allocation4 [shape = 's32[1]{0}', space=sflag, size = 0x4, scoped, tag = 'scoped memory for _mlps_impl.1']
    #allocation5 [shape = 'u8[65536]{0}', space=vmem, size = 0x10000, scoped, tag = 'input window, operand 1, single buffered']
    #allocation6 [shape = 's32[1]{0}', space=sflag, size = 0x4, scoped, tag = 'scoped memory for _mlps_impl.1']
    #allocation7 [shape = 'u8[2097152]{0}', space=vmem, size = 0x200000, scoped, tag = 'input window, operand 2, single buffered']
    #allocation8 [shape = 'u8[1048576]{0}', space=vmem, size = 0x100000, scoped, tag = 'input window, operand 3, single buffered']
    #allocation9 [shape = 's32[1]{0}', space=sflag, size = 0x4, scoped, tag = 'scoped memory for _mlps_impl.1']
    #allocation10 [shape = 'u8[262144]{0}', space=vmem, size = 0x40000, scoped, tag = 'input window, operand 4, single buffered']
    #allocation11 [shape = 'u8[65536]{0}', space=vmem, size = 0x10000, scoped, tag = 'input window, operand 5, single buffered']
    #allocation12 [shape = 's32[1]{0}', space=sflag, size = 0x4, scoped, tag = 'scoped memory for _mlps_impl.1']
    #allocation13 [shape = 'u8[32768]{0}', space=vmem, size = 0x8000, scoped, tag = 'input window, operand 6, single buffered']
    #allocation14 [shape = 'u8[12288]{0}', space=vmem, size = 0x3000, scoped, tag = 'input window, operand 7, single buffered']
    #allocation15 [shape = 's32[1]{0}', space=sflag, size = 0x4, scoped, tag = 'scoped memory for _mlps_impl.1']
    #allocation16 [shape = 'u8[4096]{0}', space=vmem, size = 0x1000, scoped, tag = 'output window, operand 0, single buffered']
    %13 = vsyncpa [#allocation3], 0
    %14 = vsyncpa [#allocation6], 0
    %15 = vsyncpa [#allocation9], 0
    %16 = vsyncpa [#allocation12], 0
    %17 = vsyncpa [#allocation15], 0
    %18 = vsyncpa [#allocation4], 0
    // Predicated region
    $region2: #{_mlps_impl.1} parent=1 // pred_check
      _
    $region3: #{_mlps_impl.1} parent=1 // pred_check_branch
      %20 = sbr.rel (0) target = $region5
    $region4: #{_mlps_impl.1} parent=1 // pred_region
      %s22 = ssub.s32 128, 128
      %23 = vsyncadd [#allocation3], %s22
      %s24 = sshll.u32 [#allocation2], 4
      %s25 = int_to_ptr.vmem [resolvable:$true] %s24
      %30 = dma.hbm_to_vmem [thread:$0]  %s0, 128, %s25, [#allocation3], 64, 64, 4
    $region5: #{_mlps_impl.1} parent=1 // pred_fallthru
      _
    // Predicated region
    $region6: #{_mlps_impl.1} parent=1 // pred_check
      _
    $region7: #{_mlps_impl.1} parent=1 // pred_check_branch
      %32 = sbr.rel (0) target = $region9
    $region8: #{_mlps_impl.1} parent=1 // pred_region
      %s34 = ssub.s32 2048, 2048
      %35 = vsyncadd [#allocation6], %s34
      %s36 = sshll.u32 [#allocation5], 4
      %s37 = int_to_ptr.vmem [resolvable:$true] %s36
      %42 = dma.hbm_to_vmem [thread:$0]  %s1, 2048, %s37, [#allocation6], 512, 512, 32
    $region9: #{_mlps_impl.1} parent=1 // pred_fallthru
      _
    // Predicated region
    $region10: #{_mlps_impl.1} parent=1 // pred_check
      _
    $region11: #{_mlps_impl.1} parent=1 // pred_check_branch
      %44 = sbr.rel (0) target = $region13
    $region12: #{_mlps_impl.1} parent=1 // pred_region
      %s46 = ssub.s32 65536, 65536
      %47 = vsyncadd [#allocation6], %s46
      %s48 = sshll.u32 [#allocation7], 4
      %s49 = int_to_ptr.vmem [resolvable:$true] %s48
      %54 = dma.hbm_to_vmem [thread:$0]  %s2, 65536, %s49, [#allocation6], 512, 512, 32
    $region13: #{_mlps_impl.1} parent=1 // pred_fallthru
      _
    // Predicated region
    $region14: #{_mlps_impl.1} parent=1 // pred_check
      _
    $region15: #{_mlps_impl.1} parent=1 // pred_check_branch
      %56 = sbr.rel (0) target = $region17
    $region16: #{_mlps_impl.1} parent=1 // pred_region
      %s58 = ssub.s32 32768, 32768
      %59 = vsyncadd [#allocation9], %s58
      %s60 = sshll.u32 [#allocation8], 4
      %s61 = int_to_ptr.vmem [resolvable:$true] %s60
      %66 = dma.hbm_to_vmem [thread:$0]  %s3, 32768, %s61, [#allocation9], 256, 256, 16
    $region17: #{_mlps_impl.1} parent=1 // pred_fallthru
      _
    // Predicated region
    $region18: #{_mlps_impl.1} parent=1 // pred_check
      _
    $region19: #{_mlps_impl.1} parent=1 // pred_check_branch
      %68 = sbr.rel (0) target = $region21
    $region20: #{_mlps_impl.1} parent=1 // pred_region
      %s70 = ssub.s32 8192, 8192
      %71 = vsyncadd [#allocation9], %s70
      %s72 = sshll.u32 [#allocation10], 4
      %s73 = int_to_ptr.vmem [resolvable:$true] %s72
      %78 = dma.hbm_to_vmem [thread:$0]  %s4, 8192, %s73, [#allocation9], 128, 128, 8
    $region21: #{_mlps_impl.1} parent=1 // pred_fallthru
      _
    // Predicated region
    $region22: #{_mlps_impl.1} parent=1 // pred_check
      _
    $region23: #{_mlps_impl.1} parent=1 // pred_check_branch
      %80 = sbr.rel (0) target = $region25
    $region24: #{_mlps_impl.1} parent=1 // pred_region
      %s82 = ssub.s32 2048, 2048
      %83 = vsyncadd [#allocation12], %s82
      %s84 = sshll.u32 [#allocation11], 4
      %s85 = int_to_ptr.vmem [resolvable:$true] %s84
      %90 = dma.hbm_to_vmem [thread:$0]  %s5, 2048, %s85, [#allocation12], 64, 64, 4
    $region25: #{_mlps_impl.1} parent=1 // pred_fallthru
      _
    // Predicated region
    $region26: #{_mlps_impl.1} parent=1 // pred_check
      _
    $region27: #{_mlps_impl.1} parent=1 // pred_check_branch
      %92 = sbr.rel (0) target = $region29
    $region28: #{_mlps_impl.1} parent=1 // pred_region
      %s94 = ssub.s32 1024, 1024
      %95 = vsyncadd [#allocation12], %s94
      %s96 = sshll.u32 [#allocation13], 4
      %s97 = int_to_ptr.vmem [resolvable:$true] %s96
      %102 = dma.hbm_to_vmem [thread:$0]  %s6, 1024, %s97, [#allocation12], 64, 64, 4
    $region29: #{_mlps_impl.1} parent=1 // pred_fallthru
      _
    // Predicated region
    $region30: #{_mlps_impl.1} parent=1 // pred_check
      _
    $region31: #{_mlps_impl.1} parent=1 // pred_check_branch
      %104 = sbr.rel (0) target = $region33
    $region32: #{_mlps_impl.1} parent=1 // pred_region
      %s106 = ssub.s32 384, 384
      %107 = vsyncadd [#allocation15], %s106
      %s109 = sshll.u32 [#allocation14], 4
      %s110 = int_to_ptr.vmem [resolvable:$true] %s109
      %112 = dma.hbm_to_vmem [thread:$0]  %s7, 384, %s110, [#allocation15]
    $region33: #{_mlps_impl.1} parent=1 // pred_fallthru
      _
    // Predicated region
    $region34: #{_mlps_impl.1} parent=1 // pred_check
      _
    $region35: #{_mlps_impl.1} parent=1 // pred_check_branch
      %114 = sbr.rel (0) target = $region37
    $region36: #{_mlps_impl.1} parent=1 // pred_region
      %115 = dma.done [#allocation3], 128
    $region37: #{_mlps_impl.1} parent=1 // pred_fallthru
      _
    // Predicated region
    $region38: #{_mlps_impl.1} parent=1 // pred_check
      _
    $region39: #{_mlps_impl.1} parent=1 // pred_check_branch
      %117 = sbr.rel (0) target = $region41
    $region40: #{_mlps_impl.1} parent=1 // pred_region
      %118 = dma.done [#allocation6], 2048
    $region41: #{_mlps_impl.1} parent=1 // pred_fallthru
      _
    // Predicated region
    $region42: #{_mlps_impl.1} parent=1 // pred_check
      _
    $region43: #{_mlps_impl.1} parent=1 // pred_check_branch
      %120 = sbr.rel (0) target = $region45
    $region44: #{_mlps_impl.1} parent=1 // pred_region
      %121 = dma.done [#allocation6], 65536
    $region45: #{_mlps_impl.1} parent=1 // pred_fallthru
      _
    // Predicated region
    $region46: #{_mlps_impl.1} parent=1 // pred_check
      _
    $region47: #{_mlps_impl.1} parent=1 // pred_check_branch
      %123 = sbr.rel (0) target = $region49
    $region48: #{_mlps_impl.1} parent=1 // pred_region
      %124 = dma.done [#allocation9], 32768
    $region49: #{_mlps_impl.1} parent=1 // pred_fallthru
      _
    // Predicated region
    $region50: #{_mlps_impl.1} parent=1 // pred_check
      _
    $region51: #{_mlps_impl.1} parent=1 // pred_check_branch
      %126 = sbr.rel (0) target = $region53
    $region52: #{_mlps_impl.1} parent=1 // pred_region
      %127 = dma.done [#allocation9], 8192
    $region53: #{_mlps_impl.1} parent=1 // pred_fallthru
      _
    // Predicated region
    $region54: #{_mlps_impl.1} parent=1 // pred_check
      _
    $region55: #{_mlps_impl.1} parent=1 // pred_check_branch
      %129 = sbr.rel (0) target = $region57
    $region56: #{_mlps_impl.1} parent=1 // pred_region
      %130 = dma.done [#allocation12], 2048
    $region57: #{_mlps_impl.1} parent=1 // pred_fallthru
      _
    // Predicated region
    $region58: #{_mlps_impl.1} parent=1 // pred_check
      _
    $region59: #{_mlps_impl.1} parent=1 // pred_check_branch
      %132 = sbr.rel (0) target = $region61
    $region60: #{_mlps_impl.1} parent=1 // pred_region
      %133 = dma.done [#allocation12], 1024
    $region61: #{_mlps_impl.1} parent=1 // pred_fallthru
      _
    // Predicated region
    $region62: #{_mlps_impl.1} parent=1 // pred_check
      _
    $region63: #{_mlps_impl.1} parent=1 // pred_check_branch
      %135 = sbr.rel (0) target = $region65
    $region64: #{_mlps_impl.1} parent=1 // pred_region
      %136 = dma.done [#allocation15], 384
    $region65: #{_mlps_impl.1} parent=1 // pred_fallthru
      _
    %v138 = vld [vmem:[#allocation2] sm:$0xf]
    %v139 = vld [vmem:[#allocation2 + $0x4] sm:$0xf]
    %v140 = vld [vmem:[#allocation5] sm:$0xff]
    %v141 = vld [vmem:[#allocation5 + $0x8] sm:$0xff]
    %v142 = vld [vmem:[#allocation5 + $0x10] sm:$0xff]
    %v143 = vld [vmem:[#allocation5 + $0x18] sm:$0xff]
    %v144 = vld [vmem:[#allocation5 + $0x20] sm:$0xff]
    %v145 = vld [vmem:[#allocation5 + $0x28] sm:$0xff]
    %v146 = vld [vmem:[#allocation5 + $0x30] sm:$0xff]
    %v147 = vld [vmem:[#allocation5 + $0x38] sm:$0xff]
    %v148 = vld [vmem:[#allocation5 + $0x40] sm:$0xff]
    %v149 = vld [vmem:[#allocation5 + $0x48] sm:$0xff]
    %v150 = vld [vmem:[#allocation5 + $0x50] sm:$0xff]
    %v151 = vld [vmem:[#allocation5 + $0x58] sm:$0xff]
    %v152 = vld [vmem:[#allocation5 + $0x60] sm:$0xff]
    %v153 = vld [vmem:[#allocation5 + $0x68] sm:$0xff]
    %v154 = vld [vmem:[#allocation5 + $0x70] sm:$0xff]
    %v155 = vld [vmem:[#allocation5 + $0x78] sm:$0xff]
    %v156 = vld [vmem:[#allocation14] sm:$0xff]
    %v158 = vlaneseq
    %v159 = vshrl.u32 %v158, 7
    %v160 = vsub.s32 0, %v159
    %v161 = vrot.slane %v156, %v160
    %v162 = vlaneseq
    %v163 = vshrl.u32 %v162, 7
    %v164 = vsub.s32 1, %v163
    %v165 = vrot.slane %v156, %v164
    %v166 = vlaneseq
    %v167 = vshrl.u32 %v166, 7
    %v168 = vsub.s32 2, %v167
    %v169 = vrot.slane %v156, %v168
    %v170 = vlaneseq
    %v171 = vshrl.u32 %v170, 7
    %v172 = vsub.s32 3, %v171
    %v173 = vrot.slane %v156, %v172
    %v174 = vlaneseq
    %v175 = vshrl.u32 %v174, 7
    %v176 = vsub.s32 4, %v175
    %v177 = vrot.slane %v156, %v176
    %v178 = vlaneseq
    %v179 = vshrl.u32 %v178, 7
    %v180 = vsub.s32 5, %v179
    %v181 = vrot.slane %v156, %v180
    %v182 = vlaneseq
    %v183 = vshrl.u32 %v182, 7
    %v184 = vsub.s32 6, %v183
    %v185 = vrot.slane %v156, %v184
    %v186 = vlaneseq
    %v187 = vshrl.u32 %v186, 7
    %v188 = vsub.s32 7, %v187
    %v189 = vrot.slane %v156, %v188
    %v200 = vunpack.c.l.b16 %v138
    %v201 = vunpack.c.l.b16 %v139
    %v202 = vpack.c.b16 %v201, %v200
    %v219 = vunpack.c.l.b16 %v140
    %v220 = vunpack.c.h.b16 %v140
    %v221 = vunpack.c.l.b16 %v141
    %v222 = vunpack.c.h.b16 %v141
    %v223 = vunpack.c.l.b16 %v142
    %v224 = vunpack.c.h.b16 %v142
    %v225 = vunpack.c.l.b16 %v143
    %v226 = vunpack.c.h.b16 %v143
    %v227 = vunpack.c.l.b16 %v144
    %v228 = vunpack.c.h.b16 %v144
    %v229 = vunpack.c.l.b16 %v145
    %v230 = vunpack.c.h.b16 %v145
    %v231 = vunpack.c.l.b16 %v146
    %v232 = vunpack.c.h.b16 %v146
    %v233 = vunpack.c.l.b16 %v147
    %v234 = vunpack.c.h.b16 %v147
    %v235 = vunpack.c.l.b16 %v148
    %v236 = vunpack.c.h.b16 %v148
    %v237 = vunpack.c.l.b16 %v149
    %v238 = vunpack.c.h.b16 %v149
    %v239 = vunpack.c.l.b16 %v150
    %v240 = vunpack.c.h.b16 %v150
    %v241 = vunpack.c.l.b16 %v151
    %v242 = vunpack.c.h.b16 %v151
    %v243 = vunpack.c.l.b16 %v152
    %v244 = vunpack.c.h.b16 %v152
    %v245 = vunpack.c.l.b16 %v153
    %v246 = vunpack.c.h.b16 %v153
    %v247 = vunpack.c.l.b16 %v154
    %v248 = vunpack.c.h.b16 %v154
    %v249 = vunpack.c.l.b16 %v155
    %v250 = vunpack.c.h.b16 %v155
    %v251 = vpack.c.b16 %v227, %v219
    %v252 = vpack.c.b16 %v228, %v220
    %v253 = vpack.c.b16 %v229, %v221
    %v254 = vpack.c.b16 %v230, %v222
    %v255 = vpack.c.b16 %v231, %v223
    %v256 = vpack.c.b16 %v232, %v224
    %v257 = vpack.c.b16 %v233, %v225
    %v258 = vpack.c.b16 %v234, %v226
    %v259 = vpack.c.b16 %v243, %v235
    %v260 = vpack.c.b16 %v244, %v236
    %v261 = vpack.c.b16 %v245, %v237
    %v262 = vpack.c.b16 %v246, %v238
    %v263 = vpack.c.b16 %v247, %v239
    %v264 = vpack.c.b16 %v248, %v240
    %v265 = vpack.c.b16 %v249, %v241
    %v266 = vpack.c.b16 %v250, %v242
    %vm283 = vcmask 261120
    %v285 = vsel %vm283, %v202, 0
    %287 = vmatprep.subr.bf16.mxu0 0
    %288 = vmatpush1.bf16.msra.mxu0 0
    %289 = vmatprep.subr.bf16.mxu0 0
    %290 = vmatpush1.bf16.msra.mxu0 0
    %291 = vmatprep.subr.bf16.mxu0 0
    %292 = vmatpush1.bf16.msra.mxu0 0
    %293 = vmatprep.subr.bf16.mxu0 0
    %294 = vmatpush1.bf16.msra.mxu0 0
    %295 = vmatprep.subr.bf16.mxu0 0
    %296 = vmatpush1.bf16.msra.mxu0 0
    %297 = vmatprep.subr.bf16.mxu0 0
    %298 = vmatpush1.bf16.msra.mxu0 0
    %299 = vmatprep.subr.bf16.mxu0 %v260
    %300 = vmatpush1.bf16.msra.mxu0 %v259
    %301 = vmatprep.subr.bf16.mxu0 %v252
    %302 = vmatpush1.bf16.msra.mxu0 %v251
    %303 = vmatprep.subr.bf16.mxu0 0
    %304 = vmatpush2.bf16.msra.mxu0 0
    %305 = vmatprep.subr.bf16.mxu0 0
    %306 = vmatpush2.bf16.msra.mxu0 0
    %307 = vmatprep.subr.bf16.mxu0 0
    %308 = vmatpush2.bf16.msra.mxu0 0
    %309 = vmatprep.subr.bf16.mxu0 0
    %310 = vmatpush2.bf16.msra.mxu0 0
    %311 = vmatprep.subr.bf16.mxu0 0
    %312 = vmatpush2.bf16.msra.mxu0 0
    %313 = vmatprep.subr.bf16.mxu0 0
    %314 = vmatpush2.bf16.msra.mxu0 0
    %315 = vmatprep.subr.bf16.mxu0 0
    %316 = vmatpush2.bf16.msra.mxu0 0
    %317 = vmatprep.subr.bf16.mxu0 0
    %318 = vmatpush2.bf16.msra.mxu0 0
    %319 = vmatprep.mubr.bf16.mxu0 0
    %320 = vmatmul.mubr.bf16.gmra.mxu0 %v285
    %v321 = vpop.f32.mrf.mxu0
    %v322 = vadd.f32 %v161, %v321
    %v323 = vpop.f32.mrf.mxu0
    %v324 = vadd.f32 %v165, %v323
    %v325 = vpop.f32.mrf.mxu0
    %v326 = vadd.f32 %v161, %v325
    %v327 = vpop.f32.mrf.mxu0
    %v328 = vadd.f32 %v165, %v327
    %329 = vdwg.mxu0
    %330 = vmatprep.subr.bf16.mxu0 0
    %331 = vmatpush1.bf16.msra.mxu0 0
    %332 = vmatprep.subr.bf16.mxu0 0
    %333 = vmatpush1.bf16.msra.mxu0 0
    %334 = vmatprep.subr.bf16.mxu0 0
    %335 = vmatpush1.bf16.msra.mxu0 0
    %336 = vmatprep.subr.bf16.mxu0 0
    %337 = vmatpush1.bf16.msra.mxu0 0
    %338 = vmatprep.subr.bf16.mxu0 0
    %339 = vmatpush1.bf16.msra.mxu0 0
    %340 = vmatprep.subr.bf16.mxu0 0
    %341 = vmatpush1.bf16.msra.mxu0 0
    %342 = vmatprep.subr.bf16.mxu0 %v262
    %343 = vmatpush1.bf16.msra.mxu0 %v261
    %344 = vmatprep.subr.bf16.mxu0 %v254
    %345 = vmatpush1.bf16.msra.mxu0 %v253
    %346 = vmatprep.subr.bf16.mxu0 0
    %347 = vmatpush2.bf16.msra.mxu0 0
    %348 = vmatprep.subr.bf16.mxu0 0
    %349 = vmatpush2.bf16.msra.mxu0 0
    %350 = vmatprep.subr.bf16.mxu0 0
    %351 = vmatpush2.bf16.msra.mxu0 0
    %352 = vmatprep.subr.bf16.mxu0 0
    %353 = vmatpush2.bf16.msra.mxu0 0
    %354 = vmatprep.subr.bf16.mxu0 0
    %355 = vmatpush2.bf16.msra.mxu0 0
    %356 = vmatprep.subr.bf16.mxu0 0
    %357 = vmatpush2.bf16.msra.mxu0 0
    %358 = vmatprep.subr.bf16.mxu0 0
    %359 = vmatpush2.bf16.msra.mxu0 0
    %360 = vmatprep.subr.bf16.mxu0 0
    %361 = vmatpush2.bf16.msra.mxu0 0
    %362 = vmatprep.mubr.bf16.mxu0 0
    %363 = vmatmul.mubr.bf16.gmra.mxu0 %v285
    %v364 = vpop.f32.mrf.mxu0
    %v365 = vadd.f32 %v169, %v364
    %v366 = vpop.f32.mrf.mxu0
    %v367 = vadd.f32 %v173, %v366
    %v368 = vpop.f32.mrf.mxu0
    %v369 = vadd.f32 %v169, %v368
    %v370 = vpop.f32.mrf.mxu0
    %v371 = vadd.f32 %v173, %v370
    %372 = vdwg.mxu0
    %373 = vmatprep.subr.bf16.mxu0 0
    %374 = vmatpush1.bf16.msra.mxu0 0
    %375 = vmatprep.subr.bf16.mxu0 0
    %376 = vmatpush1.bf16.msra.mxu0 0
    %377 = vmatprep.subr.bf16.mxu0 0
    %378 = vmatpush1.bf16.msra.mxu0 0
    %379 = vmatprep.subr.bf16.mxu0 0
    %380 = vmatpush1.bf16.msra.mxu0 0
    %381 = vmatprep.subr.bf16.mxu0 0
    %382 = vmatpush1.bf16.msra.mxu0 0
    %383 = vmatprep.subr.bf16.mxu0 0
    %384 = vmatpush1.bf16.msra.mxu0 0
    %385 = vmatprep.subr.bf16.mxu0 %v264
    %386 = vmatpush1.bf16.msra.mxu0 %v263
    %387 = vmatprep.subr.bf16.mxu0 %v256
    %388 = vmatpush1.bf16.msra.mxu0 %v255
    %389 = vmatprep.subr.bf16.mxu0 0
    %390 = vmatpush2.bf16.msra.mxu0 0
    %391 = vmatprep.subr.bf16.mxu0 0
    %392 = vmatpush2.bf16.msra.mxu0 0
    %393 = vmatprep.subr.bf16.mxu0 0
    %394 = vmatpush2.bf16.msra.mxu0 0
    %395 = vmatprep.subr.bf16.mxu0 0
    %396 = vmatpush2.bf16.msra.mxu0 0
    %397 = vmatprep.subr.bf16.mxu0 0
    %398 = vmatpush2.bf16.msra.mxu0 0
    %399 = vmatprep.subr.bf16.mxu0 0
    %400 = vmatpush2.bf16.msra.mxu0 0
    %401 = vmatprep.subr.bf16.mxu0 0
    %402 = vmatpush2.bf16.msra.mxu0 0
    %403 = vmatprep.subr.bf16.mxu0 0
    %404 = vmatpush2.bf16.msra.mxu0 0
    %405 = vmatprep.mubr.bf16.mxu0 0
    %406 = vmatmul.mubr.bf16.gmra.mxu0 %v285
    %v407 = vpop.f32.mrf.mxu0
    %v408 = vadd.f32 %v177, %v407
    %v409 = vpop.f32.mrf.mxu0
    %v410 = vadd.f32 %v181, %v409
    %v411 = vpop.f32.mrf.mxu0
    %v412 = vadd.f32 %v177, %v411
    %v413 = vpop.f32.mrf.mxu0
    %v414 = vadd.f32 %v181, %v413
    %415 = vdwg.mxu0
    %416 = vmatprep.subr.bf16.mxu0 0
    %417 = vmatpush1.bf16.msra.mxu0 0
    %418 = vmatprep.subr.bf16.mxu0 0
    %419 = vmatpush1.bf16.msra.mxu0 0
    %420 = vmatprep.subr.bf16.mxu0 0
    %421 = vmatpush1.bf16.msra.mxu0 0
    %422 = vmatprep.subr.bf16.mxu0 0
    %423 = vmatpush1.bf16.msra.mxu0 0
    %424 = vmatprep.subr.bf16.mxu0 0
    %425 = vmatpush1.bf16.msra.mxu0 0
    %426 = vmatprep.subr.bf16.mxu0 0
    %427 = vmatpush1.bf16.msra.mxu0 0
    %428 = vmatprep.subr.bf16.mxu0 %v266
    %429 = vmatpush1.bf16.msra.mxu0 %v265
    %430 = vmatprep.subr.bf16.mxu0 %v258
    %431 = vmatpush1.bf16.msra.mxu0 %v257
    %432 = vmatprep.subr.bf16.mxu0 0
    %433 = vmatpush2.bf16.msra.mxu0 0
    %434 = vmatprep.subr.bf16.mxu0 0
    %435 = vmatpush2.bf16.msra.mxu0 0
    %436 = vmatprep.subr.bf16.mxu0 0
    %437 = vmatpush2.bf16.msra.mxu0 0
    %438 = vmatprep.subr.bf16.mxu0 0
    %439 = vmatpush2.bf16.msra.mxu0 0
    %440 = vmatprep.subr.bf16.mxu0 0
    %441 = vmatpush2.bf16.msra.mxu0 0
    %442 = vmatprep.subr.bf16.mxu0 0
    %443 = vmatpush2.bf16.msra.mxu0 0
    %444 = vmatprep.subr.bf16.mxu0 0
    %445 = vmatpush2.bf16.msra.mxu0 0
    %446 = vmatprep.subr.bf16.mxu0 0
    %447 = vmatpush2.bf16.msra.mxu0 0
    %448 = vmatprep.mubr.bf16.mxu0 0
    %449 = vmatmul.mubr.bf16.gmra.mxu0 %v285
    %v450 = vpop.f32.mrf.mxu0
    %v451 = vadd.f32 %v185, %v450
    %v452 = vpop.f32.mrf.mxu0
    %v453 = vadd.f32 %v189, %v452
    %v454 = vpop.f32.mrf.mxu0
    %v455 = vadd.f32 %v185, %v454
    %v456 = vpop.f32.mrf.mxu0
    %v457 = vadd.f32 %v189, %v456
    %458 = vdwg.mxu0
    %v459 = vmax.f32 %v322, 0.0
    %v460 = vmax.f32 %v324, 0.0
    %v461 = vmax.f32 %v365, 0.0
    %v462 = vmax.f32 %v367, 0.0
    %v463 = vmax.f32 %v408, 0.0
    %v464 = vmax.f32 %v410, 0.0
    %v465 = vmax.f32 %v451, 0.0
    %v466 = vmax.f32 %v453, 0.0
    %v467 = vmax.f32 %v326, 0.0
    %v468 = vmax.f32 %v328, 0.0
    %v469 = vmax.f32 %v369, 0.0
    %v470 = vmax.f32 %v371, 0.0
    %v471 = vmax.f32 %v412, 0.0
    %v472 = vmax.f32 %v414, 0.0
    %v473 = vmax.f32 %v455, 0.0
    %v474 = vmax.f32 %v457, 0.0
    %v475 = vpack.c.bf16 %v467, %v459
    %v476 = vpack.c.bf16 %v468, %v460
    %v477 = vpack.c.bf16 %v469, %v461
    %v478 = vpack.c.bf16 %v470, %v462
    %v479 = vpack.c.bf16 %v471, %v463
    %v480 = vpack.c.bf16 %v472, %v464
    %v481 = vpack.c.bf16 %v473, %v465
    %v482 = vpack.c.bf16 %v474, %v466
    %v483 = vld [vmem:[#allocation7] sm:$0xff]
    %v484 = vld [vmem:[#allocation7 + $0x8] sm:$0xff]
    %v485 = vld [vmem:[#allocation7 + $0x10] sm:$0xff]
    %v486 = vld [vmem:[#allocation7 + $0x18] sm:$0xff]
    %v487 = vld [vmem:[#allocation7 + $0x20] sm:$0xff]
    %v488 = vld [vmem:[#allocation7 + $0x28] sm:$0xff]
    %v489 = vld [vmem:[#allocation7 + $0x30] sm:$0xff]
    %v490 = vld [vmem:[#allocation7 + $0x38] sm:$0xff]
    %v491 = vld [vmem:[#allocation7 + $0x40] sm:$0xff]
    %v492 = vld [vmem:[#allocation7 + $0x48] sm:$0xff]
    %v493 = vld [vmem:[#allocation7 + $0x50] sm:$0xff]
    %v494 = vld [vmem:[#allocation7 + $0x58] sm:$0xff]
    %v495 = vld [vmem:[#allocation7 + $0x60] sm:$0xff]
    %v496 = vld [vmem:[#allocation7 + $0x68] sm:$0xff]
    %v497 = vld [vmem:[#allocation7 + $0x70] sm:$0xff]
    %v498 = vld [vmem:[#allocation7 + $0x78] sm:$0xff]
    %v499 = vld [vmem:[#allocation7 + $0x80] sm:$0xff]
    %v500 = vld [vmem:[#allocation7 + $0x88] sm:$0xff]
    %v501 = vld [vmem:[#allocation7 + $0x90] sm:$0xff]
    %v502 = vld [vmem:[#allocation7 + $0x98] sm:$0xff]
    %v503 = vld [vmem:[#allocation7 + $0xa0] sm:$0xff]
    %v504 = vld [vmem:[#allocation7 + $0xa8] sm:$0xff]
    %v505 = vld [vmem:[#allocation7 + $0xb0] sm:$0xff]
    %v506 = vld [vmem:[#allocation7 + $0xb8] sm:$0xff]
    %v507 = vld [vmem:[#allocation7 + $0xc0] sm:$0xff]
    %v508 = vld [vmem:[#allocation7 + $0xc8] sm:$0xff]
    %v509 = vld [vmem:[#allocation7 + $0xd0] sm:$0xff]
    %v510 = vld [vmem:[#allocation7 + $0xd8] sm:$0xff]
    %v511 = vld [vmem:[#allocation7 + $0xe0] sm:$0xff]
    %v512 = vld [vmem:[#allocation7 + $0xe8] sm:$0xff]
    %v513 = vld [vmem:[#allocation7 + $0xf0] sm:$0xff]
    %v514 = vld [vmem:[#allocation7 + $0xf8] sm:$0xff]
    %v515 = vld [vmem:[#allocation7 + $0x100] sm:$0xff]
    %v516 = vld [vmem:[#allocation7 + $0x108] sm:$0xff]
    %v517 = vld [vmem:[#allocation7 + $0x110] sm:$0xff]
    %v518 = vld [vmem:[#allocation7 + $0x118] sm:$0xff]
    %v519 = vld [vmem:[#allocation7 + $0x120] sm:$0xff]
    %v520 = vld [vmem:[#allocation7 + $0x128] sm:$0xff]
    %v521 = vld [vmem:[#allocation7 + $0x130] sm:$0xff]
    %v522 = vld [vmem:[#allocation7 + $0x138] sm:$0xff]
    %v523 = vld [vmem:[#allocation7 + $0x140] sm:$0xff]
    %v524 = vld [vmem:[#allocation7 + $0x148] sm:$0xff]
    %v525 = vld [vmem:[#allocation7 + $0x150] sm:$0xff]
    %v526 = vld [vmem:[#allocation7 + $0x158] sm:$0xff]
    %v527 = vld [vmem:[#allocation7 + $0x160] sm:$0xff]
    %v528 = vld [vmem:[#allocation7 + $0x168] sm:$0xff]
    %v529 = vld [vmem:[#allocation7 + $0x170] sm:$0xff]
    %v530 = vld [vmem:[#allocation7 + $0x178] sm:$0xff]
    %v531 = vld [vmem:[#allocation7 + $0x180] sm:$0xff]
    %v532 = vld [vmem:[#allocation7 + $0x188] sm:$0xff]
    %v533 = vld [vmem:[#allocation7 + $0x190] sm:$0xff]
    %v534 = vld [vmem:[#allocation7 + $0x198] sm:$0xff]
    %v535 = vld [vmem:[#allocation7 + $0x1a0] sm:$0xff]
    %v536 = vld [vmem:[#allocation7 + $0x1a8] sm:$0xff]
    %v537 = vld [vmem:[#allocation7 + $0x1b0] sm:$0xff]
    %v538 = vld [vmem:[#allocation7 + $0x1b8] sm:$0xff]
    %v539 = vld [vmem:[#allocation7 + $0x1c0] sm:$0xff]
    %v540 = vld [vmem:[#allocation7 + $0x1c8] sm:$0xff]
    %v541 = vld [vmem:[#allocation7 + $0x1d0] sm:$0xff]
    %v542 = vld [vmem:[#allocation7 + $0x1d8] sm:$0xff]
    %v543 = vld [vmem:[#allocation7 + $0x1e0] sm:$0xff]
    %v544 = vld [vmem:[#allocation7 + $0x1e8] sm:$0xff]
    %v545 = vld [vmem:[#allocation7 + $0x1f0] sm:$0xff]
    %v546 = vld [vmem:[#allocation7 + $0x1f8] sm:$0xff]
    %v547 = vld [vmem:[#allocation7 + $0x200] sm:$0xff]
    %v548 = vld [vmem:[#allocation7 + $0x208] sm:$0xff]
    %v549 = vld [vmem:[#allocation7 + $0x210] sm:$0xff]
    %v550 = vld [vmem:[#allocation7 + $0x218] sm:$0xff]
    %v551 = vld [vmem:[#allocation7 + $0x220] sm:$0xff]
    %v552 = vld [vmem:[#allocation7 + $0x228] sm:$0xff]
    %v553 = vld [vmem:[#allocation7 + $0x230] sm:$0xff]
    %v554 = vld [vmem:[#allocation7 + $0x238] sm:$0xff]
    %v555 = vld [vmem:[#allocation7 + $0x240] sm:$0xff]
    %v556 = vld [vmem:[#allocation7 + $0x248] sm:$0xff]
    %v557 = vld [vmem:[#allocation7 + $0x250] sm:$0xff]
    %v558 = vld [vmem:[#allocation7 + $0x258] sm:$0xff]
    %v559 = vld [vmem:[#allocation7 + $0x260] sm:$0xff]
    %v560 = vld [vmem:[#allocation7 + $0x268] sm:$0xff]
    %v561 = vld [vmem:[#allocation7 + $0x270] sm:$0xff]
    %v562 = vld [vmem:[#allocation7 + $0x278] sm:$0xff]
    %v563 = vld [vmem:[#allocation7 + $0x280] sm:$0xff]
    %v564 = vld [vmem:[#allocation7 + $0x288] sm:$0xff]
    %v565 = vld [vmem:[#allocation7 + $0x290] sm:$0xff]
    %v566 = vld [vmem:[#allocation7 + $0x298] sm:$0xff]
    %v567 = vld [vmem:[#allocation7 + $0x2a0] sm:$0xff]
    %v568 = vld [vmem:[#allocation7 + $0x2a8] sm:$0xff]
    %v569 = vld [vmem:[#allocation7 + $0x2b0] sm:$0xff]
    %v570 = vld [vmem:[#allocation7 + $0x2b8] sm:$0xff]
    %v571 = vld [vmem:[#allocation7 + $0x2c0] sm:$0xff]
    %v572 = vld [vmem:[#allocation7 + $0x2c8] sm:$0xff]
    %v573 = vld [vmem:[#allocation7 + $0x2d0] sm:$0xff]
    %v574 = vld [vmem:[#allocation7 + $0x2d8] sm:$0xff]
    %v575 = vld [vmem:[#allocation7 + $0x2e0] sm:$0xff]
    %v576 = vld [vmem:[#allocation7 + $0x2e8] sm:$0xff]
    %v577 = vld [vmem:[#allocation7 + $0x2f0] sm:$0xff]
    %v578 = vld [vmem:[#allocation7 + $0x2f8] sm:$0xff]
    %v579 = vld [vmem:[#allocation7 + $0x300] sm:$0xff]
    %v580 = vld [vmem:[#allocation7 + $0x308] sm:$0xff]
    %v581 = vld [vmem:[#allocation7 + $0x310] sm:$0xff]
    %v582 = vld [vmem:[#allocation7 + $0x318] sm:$0xff]
    %v583 = vld [vmem:[#allocation7 + $0x320] sm:$0xff]
    %v584 = vld [vmem:[#allocation7 + $0x328] sm:$0xff]
    %v585 = vld [vmem:[#allocation7 + $0x330] sm:$0xff]
    %v586 = vld [vmem:[#allocation7 + $0x338] sm:$0xff]
    %v587 = vld [vmem:[#allocation7 + $0x340] sm:$0xff]
    %v588 = vld [vmem:[#allocation7 + $0x348] sm:$0xff]
    %v589 = vld [vmem:[#allocation7 + $0x350] sm:$0xff]
    %v590 = vld [vmem:[#allocation7 + $0x358] sm:$0xff]
    %v591 = vld [vmem:[#allocation7 + $0x360] sm:$0xff]
    %v592 = vld [vmem:[#allocation7 + $0x368] sm:$0xff]
    %v593 = vld [vmem:[#allocation7 + $0x370] sm:$0xff]
    %v594 = vld [vmem:[#allocation7 + $0x378] sm:$0xff]
    %v595 = vld [vmem:[#allocation7 + $0x380] sm:$0xff]
    %v596 = vld [vmem:[#allocation7 + $0x388] sm:$0xff]
    %v597 = vld [vmem:[#allocation7 + $0x390] sm:$0xff]
    %v598 = vld [vmem:[#allocation7 + $0x398] sm:$0xff]
    %v599 = vld [vmem:[#allocation7 + $0x3a0] sm:$0xff]
    %v600 = vld [vmem:[#allocation7 + $0x3a8] sm:$0xff]
    %v601 = vld [vmem:[#allocation7 + $0x3b0] sm:$0xff]
    %v602 = vld [vmem:[#allocation7 + $0x3b8] sm:$0xff]
    %v603 = vld [vmem:[#allocation7 + $0x3c0] sm:$0xff]
    %v604 = vld [vmem:[#allocation7 + $0x3c8] sm:$0xff]
    %v605 = vld [vmem:[#allocation7 + $0x3d0] sm:$0xff]
    %v606 = vld [vmem:[#allocation7 + $0x3d8] sm:$0xff]
    %v607 = vld [vmem:[#allocation7 + $0x3e0] sm:$0xff]
    %v608 = vld [vmem:[#allocation7 + $0x3e8] sm:$0xff]
    %v609 = vld [vmem:[#allocation7 + $0x3f0] sm:$0xff]
    %v610 = vld [vmem:[#allocation7 + $0x3f8] sm:$0xff]
    %v611 = vld [vmem:[#allocation7 + $0x400] sm:$0xff]
    %v612 = vld [vmem:[#allocation7 + $0x408] sm:$0xff]
    %v613 = vld [vmem:[#allocation7 + $0x410] sm:$0xff]
    %v614 = vld [vmem:[#allocation7 + $0x418] sm:$0xff]
    %v615 = vld [vmem:[#allocation7 + $0x420] sm:$0xff]
    %v616 = vld [vmem:[#allocation7 + $0x428] sm:$0xff]
    %v617 = vld [vmem:[#allocation7 + $0x430] sm:$0xff]
    %v618 = vld [vmem:[#allocation7 + $0x438] sm:$0xff]
    %v619 = vld [vmem:[#allocation7 + $0x440] sm:$0xff]
    %v620 = vld [vmem:[#allocation7 + $0x448] sm:$0xff]
    %v621 = vld [vmem:[#allocation7 + $0x450] sm:$0xff]
    %v622 = vld [vmem:[#allocation7 + $0x458] sm:$0xff]
    %v623 = vld [vmem:[#allocation7 + $0x460] sm:$0xff]
    %v624 = vld [vmem:[#allocation7 + $0x468] sm:$0xff]
    %v625 = vld [vmem:[#allocation7 + $0x470] sm:$0xff]
    %v626 = vld [vmem:[#allocation7 + $0x478] sm:$0xff]
    %v627 = vld [vmem:[#allocation7 + $0x480] sm:$0xff]
    %v628 = vld [vmem:[#allocation7 + $0x488] sm:$0xff]
    %v629 = vld [vmem:[#allocation7 + $0x490] sm:$0xff]
    %v630 = vld [vmem:[#allocation7 + $0x498] sm:$0xff]
    %v631 = vld [vmem:[#allocation7 + $0x4a0] sm:$0xff]
    %v632 = vld [vmem:[#allocation7 + $0x4a8] sm:$0xff]
    %v633 = vld [vmem:[#allocation7 + $0x4b0] sm:$0xff]
    %v634 = vld [vmem:[#allocation7 + $0x4b8] sm:$0xff]
    %v635 = vld [vmem:[#allocation7 + $0x4c0] sm:$0xff]
    %v636 = vld [vmem:[#allocation7 + $0x4c8] sm:$0xff]
    %v637 = vld [vmem:[#allocation7 + $0x4d0] sm:$0xff]
    %v638 = vld [vmem:[#allocation7 + $0x4d8] sm:$0xff]
    %v639 = vld [vmem:[#allocation7 + $0x4e0] sm:$0xff]
    %v640 = vld [vmem:[#allocation7 + $0x4e8] sm:$0xff]
    %v641 = vld [vmem:[#allocation7 + $0x4f0] sm:$0xff]
    %v642 = vld [vmem:[#allocation7 + $0x4f8] sm:$0xff]
    %v643 = vld [vmem:[#allocation7 + $0x500] sm:$0xff]
    %v644 = vld [vmem:[#allocation7 + $0x508] sm:$0xff]
    %v645 = vld [vmem:[#allocation7 + $0x510] sm:$0xff]
    %v646 = vld [vmem:[#allocation7 + $0x518] sm:$0xff]
    %v647 = vld [vmem:[#allocation7 + $0x520] sm:$0xff]
    %v648 = vld [vmem:[#allocation7 + $0x528] sm:$0xff]
    %v649 = vld [vmem:[#allocation7 + $0x530] sm:$0xff]
    %v650 = vld [vmem:[#allocation7 + $0x538] sm:$0xff]
    %v651 = vld [vmem:[#allocation7 + $0x540] sm:$0xff]
    %v652 = vld [vmem:[#allocation7 + $0x548] sm:$0xff]
    %v653 = vld [vmem:[#allocation7 + $0x550] sm:$0xff]
    %v654 = vld [vmem:[#allocation7 + $0x558] sm:$0xff]
    %v655 = vld [vmem:[#allocation7 + $0x560] sm:$0xff]
    %v656 = vld [vmem:[#allocation7 + $0x568] sm:$0xff]
    %v657 = vld [vmem:[#allocation7 + $0x570] sm:$0xff]
    %v658 = vld [vmem:[#allocation7 + $0x578] sm:$0xff]
    %v659 = vld [vmem:[#allocation7 + $0x580] sm:$0xff]
    %v660 = vld [vmem:[#allocation7 + $0x588] sm:$0xff]
    %v661 = vld [vmem:[#allocation7 + $0x590] sm:$0xff]
    %v662 = vld [vmem:[#allocation7 + $0x598] sm:$0xff]
    %v663 = vld [vmem:[#allocation7 + $0x5a0] sm:$0xff]
    %v664 = vld [vmem:[#allocation7 + $0x5a8] sm:$0xff]
    %v665 = vld [vmem:[#allocation7 + $0x5b0] sm:$0xff]
    %v666 = vld [vmem:[#allocation7 + $0x5b8] sm:$0xff]
    %v667 = vld [vmem:[#allocation7 + $0x5c0] sm:$0xff]
    %v668 = vld [vmem:[#allocation7 + $0x5c8] sm:$0xff]
    %v669 = vld [vmem:[#allocation7 + $0x5d0] sm:$0xff]
    %v670 = vld [vmem:[#allocation7 + $0x5d8] sm:$0xff]
    %v671 = vld [vmem:[#allocation7 + $0x5e0] sm:$0xff]
    %v672 = vld [vmem:[#allocation7 + $0x5e8] sm:$0xff]
    %v673 = vld [vmem:[#allocation7 + $0x5f0] sm:$0xff]
    %v674 = vld [vmem:[#allocation7 + $0x5f8] sm:$0xff]
    %v675 = vld [vmem:[#allocation7 + $0x600] sm:$0xff]
    %v676 = vld [vmem:[#allocation7 + $0x608] sm:$0xff]
    %v677 = vld [vmem:[#allocation7 + $0x610] sm:$0xff]
    %v678 = vld [vmem:[#allocation7 + $0x618] sm:$0xff]
    %v679 = vld [vmem:[#allocation7 + $0x620] sm:$0xff]
    %v680 = vld [vmem:[#allocation7 + $0x628] sm:$0xff]
    %v681 = vld [vmem:[#allocation7 + $0x630] sm:$0xff]
    %v682 = vld [vmem:[#allocation7 + $0x638] sm:$0xff]
    %v683 = vld [vmem:[#allocation7 + $0x640] sm:$0xff]
    %v684 = vld [vmem:[#allocation7 + $0x648] sm:$0xff]
    %v685 = vld [vmem:[#allocation7 + $0x650] sm:$0xff]
    %v686 = vld [vmem:[#allocation7 + $0x658] sm:$0xff]
    %v687 = vld [vmem:[#allocation7 + $0x660] sm:$0xff]
    %v688 = vld [vmem:[#allocation7 + $0x668] sm:$0xff]
    %v689 = vld [vmem:[#allocation7 + $0x670] sm:$0xff]
    %v690 = vld [vmem:[#allocation7 + $0x678] sm:$0xff]
    %v691 = vld [vmem:[#allocation7 + $0x680] sm:$0xff]
    %v692 = vld [vmem:[#allocation7 + $0x688] sm:$0xff]
    %v693 = vld [vmem:[#allocation7 + $0x690] sm:$0xff]
    %v694 = vld [vmem:[#allocation7 + $0x698] sm:$0xff]
    %v695 = vld [vmem:[#allocation7 + $0x6a0] sm:$0xff]
    %v696 = vld [vmem:[#allocation7 + $0x6a8] sm:$0xff]
    %v697 = vld [vmem:[#allocation7 + $0x6b0] sm:$0xff]
    %v698 = vld [vmem:[#allocation7 + $0x6b8] sm:$0xff]
    %v699 = vld [vmem:[#allocation7 + $0x6c0] sm:$0xff]
    %v700 = vld [vmem:[#allocation7 + $0x6c8] sm:$0xff]
    %v701 = vld [vmem:[#allocation7 + $0x6d0] sm:$0xff]
    %v702 = vld [vmem:[#allocation7 + $0x6d8] sm:$0xff]
    %v703 = vld [vmem:[#allocation7 + $0x6e0] sm:$0xff]
    %v704 = vld [vmem:[#allocation7 + $0x6e8] sm:$0xff]
    %v705 = vld [vmem:[#allocation7 + $0x6f0] sm:$0xff]
    %v706 = vld [vmem:[#allocation7 + $0x6f8] sm:$0xff]
    %v707 = vld [vmem:[#allocation7 + $0x700] sm:$0xff]
    %v708 = vld [vmem:[#allocation7 + $0x708] sm:$0xff]
    %v709 = vld [vmem:[#allocation7 + $0x710] sm:$0xff]
    %v710 = vld [vmem:[#allocation7 + $0x718] sm:$0xff]
    %v711 = vld [vmem:[#allocation7 + $0x720] sm:$0xff]
    %v712 = vld [vmem:[#allocation7 + $0x728] sm:$0xff]
    %v713 = vld [vmem:[#allocation7 + $0x730] sm:$0xff]
    %v714 = vld [vmem:[#allocation7 + $0x738] sm:$0xff]
    %v715 = vld [vmem:[#allocation7 + $0x740] sm:$0xff]
    %v716 = vld [vmem:[#allocation7 + $0x748] sm:$0xff]
    %v717 = vld [vmem:[#allocation7 + $0x750] sm:$0xff]
    %v718 = vld [vmem:[#allocation7 + $0x758] sm:$0xff]
    %v719 = vld [vmem:[#allocation7 + $0x760] sm:$0xff]
    %v720 = vld [vmem:[#allocation7 + $0x768] sm:$0xff]
    %v721 = vld [vmem:[#allocation7 + $0x770] sm:$0xff]
    %v722 = vld [vmem:[#allocation7 + $0x778] sm:$0xff]
    %v723 = vld [vmem:[#allocation7 + $0x780] sm:$0xff]
    %v724 = vld [vmem:[#allocation7 + $0x788] sm:$0xff]
    %v725 = vld [vmem:[#allocation7 + $0x790] sm:$0xff]
    %v726 = vld [vmem:[#allocation7 + $0x798] sm:$0xff]
    %v727 = vld [vmem:[#allocation7 + $0x7a0] sm:$0xff]
    %v728 = vld [vmem:[#allocation7 + $0x7a8] sm:$0xff]
    %v729 = vld [vmem:[#allocation7 + $0x7b0] sm:$0xff]
    %v730 = vld [vmem:[#allocation7 + $0x7b8] sm:$0xff]
    %v731 = vld [vmem:[#allocation7 + $0x7c0] sm:$0xff]
    %v732 = vld [vmem:[#allocation7 + $0x7c8] sm:$0xff]
    %v733 = vld [vmem:[#allocation7 + $0x7d0] sm:$0xff]
    %v734 = vld [vmem:[#allocation7 + $0x7d8] sm:$0xff]
    %v735 = vld [vmem:[#allocation7 + $0x7e0] sm:$0xff]
    %v736 = vld [vmem:[#allocation7 + $0x7e8] sm:$0xff]
    %v737 = vld [vmem:[#allocation7 + $0x7f0] sm:$0xff]
    %v738 = vld [vmem:[#allocation7 + $0x7f8] sm:$0xff]
    %v739 = vld [vmem:[#allocation7 + $0x800] sm:$0xff]
    %v740 = vld [vmem:[#allocation7 + $0x808] sm:$0xff]
    %v741 = vld [vmem:[#allocation7 + $0x810] sm:$0xff]
    %v742 = vld [vmem:[#allocation7 + $0x818] sm:$0xff]
    %v743 = vld [vmem:[#allocation7 + $0x820] sm:$0xff]
    %v744 = vld [vmem:[#allocation7 + $0x828] sm:$0xff]
    %v745 = vld [vmem:[#allocation7 + $0x830] sm:$0xff]
    %v746 = vld [vmem:[#allocation7 + $0x838] sm:$0xff]
    %v747 = vld [vmem:[#allocation7 + $0x840] sm:$0xff]
    %v748 = vld [vmem:[#allocation7 + $0x848] sm:$0xff]
    %v749 = vld [vmem:[#allocation7 + $0x850] sm:$0xff]
    %v750 = vld [vmem:[#allocation7 + $0x858] sm:$0xff]
    %v751 = vld [vmem:[#allocation7 + $0x860] sm:$0xff]
    %v752 = vld [vmem:[#allocation7 + $0x868] sm:$0xff]
    %v753 = vld [vmem:[#allocation7 + $0x870] sm:$0xff]
    %v754 = vld [vmem:[#allocation7 + $0x878] sm:$0xff]
    %v755 = vld [vmem:[#allocation7 + $0x880] sm:$0xff]
    %v756 = vld [vmem:[#allocation7 + $0x888] sm:$0xff]
    %v757 = vld [vmem:[#allocation7 + $0x890] sm:$0xff]
    %v758 = vld [vmem:[#allocation7 + $0x898] sm:$0xff]
    %v759 = vld [vmem:[#allocation7 + $0x8a0] sm:$0xff]
    %v760 = vld [vmem:[#allocation7 + $0x8a8] sm:$0xff]
    %v761 = vld [vmem:[#allocation7 + $0x8b0] sm:$0xff]
    %v762 = vld [vmem:[#allocation7 + $0x8b8] sm:$0xff]
    %v763 = vld [vmem:[#allocation7 + $0x8c0] sm:$0xff]
    %v764 = vld [vmem:[#allocation7 + $0x8c8] sm:$0xff]
    %v765 = vld [vmem:[#allocation7 + $0x8d0] sm:$0xff]
    %v766 = vld [vmem:[#allocation7 + $0x8d8] sm:$0xff]
    %v767 = vld [vmem:[#allocation7 + $0x8e0] sm:$0xff]
    %v768 = vld [vmem:[#allocation7 + $0x8e8] sm:$0xff]
    %v769 = vld [vmem:[#allocation7 + $0x8f0] sm:$0xff]
    %v770 = vld [vmem:[#allocation7 + $0x8f8] sm:$0xff]
    %v771 = vld [vmem:[#allocation7 + $0x900] sm:$0xff]
    %v772 = vld [vmem:[#allocation7 + $0x908] sm:$0xff]
    %v773 = vld [vmem:[#allocation7 + $0x910] sm:$0xff]
    %v774 = vld [vmem:[#allocation7 + $0x918] sm:$0xff]
    %v775 = vld [vmem:[#allocation7 + $0x920] sm:$0xff]
    %v776 = vld [vmem:[#allocation7 + $0x928] sm:$0xff]
    %v777 = vld [vmem:[#allocation7 + $0x930] sm:$0xff]
    %v778 = vld [vmem:[#allocation7 + $0x938] sm:$0xff]
    %v779 = vld [vmem:[#allocation7 + $0x940] sm:$0xff]
    %v780 = vld [vmem:[#allocation7 + $0x948] sm:$0xff]
    %v781 = vld [vmem:[#allocation7 + $0x950] sm:$0xff]
    %v782 = vld [vmem:[#allocation7 + $0x958] sm:$0xff]
    %v783 = vld [vmem:[#allocation7 + $0x960] sm:$0xff]
    %v784 = vld [vmem:[#allocation7 + $0x968] sm:$0xff]
    %v785 = vld [vmem:[#allocation7 + $0x970] sm:$0xff]
    %v786 = vld [vmem:[#allocation7 + $0x978] sm:$0xff]
    %v787 = vld [vmem:[#allocation7 + $0x980] sm:$0xff]
    %v788 = vld [vmem:[#allocation7 + $0x988] sm:$0xff]
    %v789 = vld [vmem:[#allocation7 + $0x990] sm:$0xff]
    %v790 = vld [vmem:[#allocation7 + $0x998] sm:$0xff]
    %v791 = vld [vmem:[#allocation7 + $0x9a0] sm:$0xff]
    %v792 = vld [vmem:[#allocation7 + $0x9a8] sm:$0xff]
    %v793 = vld [vmem:[#allocation7 + $0x9b0] sm:$0xff]
    %v794 = vld [vmem:[#allocation7 + $0x9b8] sm:$0xff]
    %v795 = vld [vmem:[#allocation7 + $0x9c0] sm:$0xff]
    %v796 = vld [vmem:[#allocation7 + $0x9c8] sm:$0xff]
    %v797 = vld [vmem:[#allocation7 + $0x9d0] sm:$0xff]
    %v798 = vld [vmem:[#allocation7 + $0x9d8] sm:$0xff]
    %v799 = vld [vmem:[#allocation7 + $0x9e0] sm:$0xff]
    %v800 = vld [vmem:[#allocation7 + $0x9e8] sm:$0xff]
    %v801 = vld [vmem:[#allocation7 + $0x9f0] sm:$0xff]
    %v802 = vld [vmem:[#allocation7 + $0x9f8] sm:$0xff]
    %v803 = vld [vmem:[#allocation7 + $0xa00] sm:$0xff]
    %v804 = vld [vmem:[#allocation7 + $0xa08] sm:$0xff]
    %v805 = vld [vmem:[#allocation7 + $0xa10] sm:$0xff]
    %v806 = vld [vmem:[#allocation7 + $0xa18] sm:$0xff]
    %v807 = vld [vmem:[#allocation7 + $0xa20] sm:$0xff]
    %v808 = vld [vmem:[#allocation7 + $0xa28] sm:$0xff]
    %v809 = vld [vmem:[#allocation7 + $0xa30] sm:$0xff]
    %v810 = vld [vmem:[#allocation7 + $0xa38] sm:$0xff]
    %v811 = vld [vmem:[#allocation7 + $0xa40] sm:$0xff]
    %v812 = vld [vmem:[#allocation7 + $0xa48] sm:$0xff]
    %v813 = vld [vmem:[#allocation7 + $0xa50] sm:$0xff]
    %v814 = vld [vmem:[#allocation7 + $0xa58] sm:$0xff]
    %v815 = vld [vmem:[#allocation7 + $0xa60] sm:$0xff]
    %v816 = vld [vmem:[#allocation7 + $0xa68] sm:$0xff]
    %v817 = vld [vmem:[#allocation7 + $0xa70] sm:$0xff]
    %v818 = vld [vmem:[#allocation7 + $0xa78] sm:$0xff]
    %v819 = vld [vmem:[#allocation7 + $0xa80] sm:$0xff]
    %v820 = vld [vmem:[#allocation7 + $0xa88] sm:$0xff]
    %v821 = vld [vmem:[#allocation7 + $0xa90] sm:$0xff]
    %v822 = vld [vmem:[#allocation7 + $0xa98] sm:$0xff]
    %v823 = vld [vmem:[#allocation7 + $0xaa0] sm:$0xff]
    %v824 = vld [vmem:[#allocation7 + $0xaa8] sm:$0xff]
    %v825 = vld [vmem:[#allocation7 + $0xab0] sm:$0xff]
    %v826 = vld [vmem:[#allocation7 + $0xab8] sm:$0xff]
    %v827 = vld [vmem:[#allocation7 + $0xac0] sm:$0xff]
    %v828 = vld [vmem:[#allocation7 + $0xac8] sm:$0xff]
    %v829 = vld [vmem:[#allocation7 + $0xad0] sm:$0xff]
    %v830 = vld [vmem:[#allocation7 + $0xad8] sm:$0xff]
    %v831 = vld [vmem:[#allocation7 + $0xae0] sm:$0xff]
    %v832 = vld [vmem:[#allocation7 + $0xae8] sm:$0xff]
    %v833 = vld [vmem:[#allocation7 + $0xaf0] sm:$0xff]
    %v834 = vld [vmem:[#allocation7 + $0xaf8] sm:$0xff]
    %v835 = vld [vmem:[#allocation7 + $0xb00] sm:$0xff]
    %v836 = vld [vmem:[#allocation7 + $0xb08] sm:$0xff]
    %v837 = vld [vmem:[#allocation7 + $0xb10] sm:$0xff]
    %v838 = vld [vmem:[#allocation7 + $0xb18] sm:$0xff]
    %v839 = vld [vmem:[#allocation7 + $0xb20] sm:$0xff]
    %v840 = vld [vmem:[#allocation7 + $0xb28] sm:$0xff]
    %v841 = vld [vmem:[#allocation7 + $0xb30] sm:$0xff]
    %v842 = vld [vmem:[#allocation7 + $0xb38] sm:$0xff]
    %v843 = vld [vmem:[#allocation7 + $0xb40] sm:$0xff]
    %v844 = vld [vmem:[#allocation7 + $0xb48] sm:$0xff]
    %v845 = vld [vmem:[#allocation7 + $0xb50] sm:$0xff]
    %v846 = vld [vmem:[#allocation7 + $0xb58] sm:$0xff]
    %v847 = vld [vmem:[#allocation7 + $0xb60] sm:$0xff]
    %v848 = vld [vmem:[#allocation7 + $0xb68] sm:$0xff]
    %v849 = vld [vmem:[#allocation7 + $0xb70] sm:$0xff]
    %v850 = vld [vmem:[#allocation7 + $0xb78] sm:$0xff]
    %v851 = vld [vmem:[#allocation7 + $0xb80] sm:$0xff]
    %v852 = vld [vmem:[#allocation7 + $0xb88] sm:$0xff]
    %v853 = vld [vmem:[#allocation7 + $0xb90] sm:$0xff]
    %v854 = vld [vmem:[#allocation7 + $0xb98] sm:$0xff]
    %v855 = vld [vmem:[#allocation7 + $0xba0] sm:$0xff]
    %v856 = vld [vmem:[#allocation7 + $0xba8] sm:$0xff]
    %v857 = vld [vmem:[#allocation7 + $0xbb0] sm:$0xff]
    %v858 = vld [vmem:[#allocation7 + $0xbb8] sm:$0xff]
    %v859 = vld [vmem:[#allocation7 + $0xbc0] sm:$0xff]
    %v860 = vld [vmem:[#allocation7 + $0xbc8] sm:$0xff]
    %v861 = vld [vmem:[#allocation7 + $0xbd0] sm:$0xff]
    %v862 = vld [vmem:[#allocation7 + $0xbd8] sm:$0xff]
    %v863 = vld [vmem:[#allocation7 + $0xbe0] sm:$0xff]
    %v864 = vld [vmem:[#allocation7 + $0xbe8] sm:$0xff]
    %v865 = vld [vmem:[#allocation7 + $0xbf0] sm:$0xff]
    %v866 = vld [vmem:[#allocation7 + $0xbf8] sm:$0xff]
    %v867 = vld [vmem:[#allocation7 + $0xc00] sm:$0xff]
    %v868 = vld [vmem:[#allocation7 + $0xc08] sm:$0xff]
    %v869 = vld [vmem:[#allocation7 + $0xc10] sm:$0xff]
    %v870 = vld [vmem:[#allocation7 + $0xc18] sm:$0xff]
    %v871 = vld [vmem:[#allocation7 + $0xc20] sm:$0xff]
    %v872 = vld [vmem:[#allocation7 + $0xc28] sm:$0xff]
    %v873 = vld [vmem:[#allocation7 + $0xc30] sm:$0xff]
    %v874 = vld [vmem:[#allocation7 + $0xc38] sm:$0xff]
    %v875 = vld [vmem:[#allocation7 + $0xc40] sm:$0xff]
    %v876 = vld [vmem:[#allocation7 + $0xc48] sm:$0xff]
    %v877 = vld [vmem:[#allocation7 + $0xc50] sm:$0xff]
    %v878 = vld [vmem:[#allocation7 + $0xc58] sm:$0xff]
    %v879 = vld [vmem:[#allocation7 + $0xc60] sm:$0xff]
    %v880 = vld [vmem:[#allocation7 + $0xc68] sm:$0xff]
    %v881 = vld [vmem:[#allocation7 + $0xc70] sm:$0xff]
    %v882 = vld [vmem:[#allocation7 + $0xc78] sm:$0xff]
    %v883 = vld [vmem:[#allocation7 + $0xc80] sm:$0xff]
    %v884 = vld [vmem:[#allocation7 + $0xc88] sm:$0xff]
    %v885 = vld [vmem:[#allocation7 + $0xc90] sm:$0xff]
    %v886 = vld [vmem:[#allocation7 + $0xc98] sm:$0xff]
    %v887 = vld [vmem:[#allocation7 + $0xca0] sm:$0xff]
    %v888 = vld [vmem:[#allocation7 + $0xca8] sm:$0xff]
    %v889 = vld [vmem:[#allocation7 + $0xcb0] sm:$0xff]
    %v890 = vld [vmem:[#allocation7 + $0xcb8] sm:$0xff]
    %v891 = vld [vmem:[#allocation7 + $0xcc0] sm:$0xff]
    %v892 = vld [vmem:[#allocation7 + $0xcc8] sm:$0xff]
    %v893 = vld [vmem:[#allocation7 + $0xcd0] sm:$0xff]
    %v894 = vld [vmem:[#allocation7 + $0xcd8] sm:$0xff]
    %v895 = vld [vmem:[#allocation7 + $0xce0] sm:$0xff]
    %v896 = vld [vmem:[#allocation7 + $0xce8] sm:$0xff]
    %v897 = vld [vmem:[#allocation7 + $0xcf0] sm:$0xff]
    %v898 = vld [vmem:[#allocation7 + $0xcf8] sm:$0xff]
    %v899 = vld [vmem:[#allocation7 + $0xd00] sm:$0xff]
    %v900 = vld [vmem:[#allocation7 + $0xd08] sm:$0xff]
    %v901 = vld [vmem:[#allocation7 + $0xd10] sm:$0xff]
    %v902 = vld [vmem:[#allocation7 + $0xd18] sm:$0xff]
    %v903 = vld [vmem:[#allocation7 + $0xd20] sm:$0xff]
    %v904 = vld [vmem:[#allocation7 + $0xd28] sm:$0xff]
    %v905 = vld [vmem:[#allocation7 + $0xd30] sm:$0xff]
    %v906 = vld [vmem:[#allocation7 + $0xd38] sm:$0xff]
    %v907 = vld [vmem:[#allocation7 + $0xd40] sm:$0xff]
    %v908 = vld [vmem:[#allocation7 + $0xd48] sm:$0xff]
    %v909 = vld [vmem:[#allocation7 + $0xd50] sm:$0xff]
    %v910 = vld [vmem:[#allocation7 + $0xd58] sm:$0xff]
    %v911 = vld [vmem:[#allocation7 + $0xd60] sm:$0xff]
    %v912 = vld [vmem:[#allocation7 + $0xd68] sm:$0xff]
    %v913 = vld [vmem:[#allocation7 + $0xd70] sm:$0xff]
    %v914 = vld [vmem:[#allocation7 + $0xd78] sm:$0xff]
    %v915 = vld [vmem:[#allocation7 + $0xd80] sm:$0xff]
    %v916 = vld [vmem:[#allocation7 + $0xd88] sm:$0xff]
    %v917 = vld [vmem:[#allocation7 + $0xd90] sm:$0xff]
    %v918 = vld [vmem:[#allocation7 + $0xd98] sm:$0xff]
    %v919 = vld [vmem:[#allocation7 + $0xda0] sm:$0xff]
    %v920 = vld [vmem:[#allocation7 + $0xda8] sm:$0xff]
    %v921 = vld [vmem:[#allocation7 + $0xdb0] sm:$0xff]
    %v922 = vld [vmem:[#allocation7 + $0xdb8] sm:$0xff]
    %v923 = vld [vmem:[#allocation7 + $0xdc0] sm:$0xff]
    %v924 = vld [vmem:[#allocation7 + $0xdc8] sm:$0xff]
    %v925 = vld [vmem:[#allocation7 + $0xdd0] sm:$0xff]
    %v926 = vld [vmem:[#allocation7 + $0xdd8] sm:$0xff]
    %v927 = vld [vmem:[#allocation7 + $0xde0] sm:$0xff]
    %v928 = vld [vmem:[#allocation7 + $0xde8] sm:$0xff]
    %v929 = vld [vmem:[#allocation7 + $0xdf0] sm:$0xff]
    %v930 = vld [vmem:[#allocation7 + $0xdf8] sm:$0xff]
    %v931 = vld [vmem:[#allocation7 + $0xe00] sm:$0xff]
    %v932 = vld [vmem:[#allocation7 + $0xe08] sm:$0xff]
    %v933 = vld [vmem:[#allocation7 + $0xe10] sm:$0xff]
    %v934 = vld [vmem:[#allocation7 + $0xe18] sm:$0xff]
    %v935 = vld [vmem:[#allocation7 + $0xe20] sm:$0xff]
    %v936 = vld [vmem:[#allocation7 + $0xe28] sm:$0xff]
    %v937 = vld [vmem:[#allocation7 + $0xe30] sm:$0xff]
    %v938 = vld [vmem:[#allocation7 + $0xe38] sm:$0xff]
    %v939 = vld [vmem:[#allocation7 + $0xe40] sm:$0xff]
    %v940 = vld [vmem:[#allocation7 + $0xe48] sm:$0xff]
    %v941 = vld [vmem:[#allocation7 + $0xe50] sm:$0xff]
    %v942 = vld [vmem:[#allocation7 + $0xe58] sm:$0xff]
    %v943 = vld [vmem:[#allocation7 + $0xe60] sm:$0xff]
    %v944 = vld [vmem:[#allocation7 + $0xe68] sm:$0xff]
    %v945 = vld [vmem:[#allocation7 + $0xe70] sm:$0xff]
    %v946 = vld [vmem:[#allocation7 + $0xe78] sm:$0xff]
    %v947 = vld [vmem:[#allocation7 + $0xe80] sm:$0xff]
    %v948 = vld [vmem:[#allocation7 + $0xe88] sm:$0xff]
    %v949 = vld [vmem:[#allocation7 + $0xe90] sm:$0xff]
    %v950 = vld [vmem:[#allocation7 + $0xe98] sm:$0xff]
    %v951 = vld [vmem:[#allocation7 + $0xea0] sm:$0xff]
    %v952 = vld [vmem:[#allocation7 + $0xea8] sm:$0xff]
    %v953 = vld [vmem:[#allocation7 + $0xeb0] sm:$0xff]
    %v954 = vld [vmem:[#allocation7 + $0xeb8] sm:$0xff]
    %v955 = vld [vmem:[#allocation7 + $0xec0] sm:$0xff]
    %v956 = vld [vmem:[#allocation7 + $0xec8] sm:$0xff]
    %v957 = vld [vmem:[#allocation7 + $0xed0] sm:$0xff]
    %v958 = vld [vmem:[#allocation7 + $0xed8] sm:$0xff]
    %v959 = vld [vmem:[#allocation7 + $0xee0] sm:$0xff]
    %v960 = vld [vmem:[#allocation7 + $0xee8] sm:$0xff]
    %v961 = vld [vmem:[#allocation7 + $0xef0] sm:$0xff]
    %v962 = vld [vmem:[#allocation7 + $0xef8] sm:$0xff]
    %v963 = vld [vmem:[#allocation7 + $0xf00] sm:$0xff]
    %v964 = vld [vmem:[#allocation7 + $0xf08] sm:$0xff]
    %v965 = vld [vmem:[#allocation7 + $0xf10] sm:$0xff]
    %v966 = vld [vmem:[#allocation7 + $0xf18] sm:$0xff]
    %v967 = vld [vmem:[#allocation7 + $0xf20] sm:$0xff]
    %v968 = vld [vmem:[#allocation7 + $0xf28] sm:$0xff]
    %v969 = vld [vmem:[#allocation7 + $0xf30] sm:$0xff]
    %v970 = vld [vmem:[#allocation7 + $0xf38] sm:$0xff]
    %v971 = vld [vmem:[#allocation7 + $0xf40] sm:$0xff]
    %v972 = vld [vmem:[#allocation7 + $0xf48] sm:$0xff]
    %v973 = vld [vmem:[#allocation7 + $0xf50] sm:$0xff]
    %v974 = vld [vmem:[#allocation7 + $0xf58] sm:$0xff]
    %v975 = vld [vmem:[#allocation7 + $0xf60] sm:$0xff]
    %v976 = vld [vmem:[#allocation7 + $0xf68] sm:$0xff]
    %v977 = vld [vmem:[#allocation7 + $0xf70] sm:$0xff]
    %v978 = vld [vmem:[#allocation7 + $0xf78] sm:$0xff]
    %v979 = vld [vmem:[#allocation7 + $0xf80] sm:$0xff]
    %v980 = vld [vmem:[#allocation7 + $0xf88] sm:$0xff]
    %v981 = vld [vmem:[#allocation7 + $0xf90] sm:$0xff]
    %v982 = vld [vmem:[#allocation7 + $0xf98] sm:$0xff]
    %v983 = vld [vmem:[#allocation7 + $0xfa0] sm:$0xff]
    %v984 = vld [vmem:[#allocation7 + $0xfa8] sm:$0xff]
    %v985 = vld [vmem:[#allocation7 + $0xfb0] sm:$0xff]
    %v986 = vld [vmem:[#allocation7 + $0xfb8] sm:$0xff]
    %v987 = vld [vmem:[#allocation7 + $0xfc0] sm:$0xff]
    %v988 = vld [vmem:[#allocation7 + $0xfc8] sm:$0xff]
    %v989 = vld [vmem:[#allocation7 + $0xfd0] sm:$0xff]
    %v990 = vld [vmem:[#allocation7 + $0xfd8] sm:$0xff]
    %v991 = vld [vmem:[#allocation7 + $0xfe0] sm:$0xff]
    %v992 = vld [vmem:[#allocation7 + $0xfe8] sm:$0xff]
    %v993 = vld [vmem:[#allocation7 + $0xff0] sm:$0xff]
    %v994 = vld [vmem:[#allocation7 + $0xff8] sm:$0xff]
    %v995 = vld [vmem:[#allocation14 + $0x8] sm:$0xff]
    %v997 = vlaneseq
    %v998 = vshrl.u32 %v997, 7
    %v999 = vsub.s32 0, %v998
    %v1000 = vrot.slane %v995, %v999
    %v1001 = vlaneseq
    %v1002 = vshrl.u32 %v1001, 7
    %v1003 = vsub.s32 1, %v1002
    %v1004 = vrot.slane %v995, %v1003
    %v1005 = vlaneseq
    %v1006 = vshrl.u32 %v1005, 7
    %v1007 = vsub.s32 2, %v1006
    %v1008 = vrot.slane %v995, %v1007
    %v1009 = vlaneseq
    %v1010 = vshrl.u32 %v1009, 7
    %v1011 = vsub.s32 3, %v1010
    %v1012 = vrot.slane %v995, %v1011
    %v1013 = vlaneseq
    %v1014 = vshrl.u32 %v1013, 7
    %v1015 = vsub.s32 4, %v1014
    %v1016 = vrot.slane %v995, %v1015
    %v1017 = vlaneseq
    %v1018 = vshrl.u32 %v1017, 7
    %v1019 = vsub.s32 5, %v1018
    %v1020 = vrot.slane %v995, %v1019
    %v1021 = vlaneseq
    %v1022 = vshrl.u32 %v1021, 7
    %v1023 = vsub.s32 6, %v1022
    %v1024 = vrot.slane %v995, %v1023
    %v1025 = vlaneseq
    %v1026 = vshrl.u32 %v1025, 7
    %v1027 = vsub.s32 7, %v1026
    %v1028 = vrot.slane %v995, %v1027
    %v1549 = vunpack.c.l.b16 %v483
    %v1550 = vunpack.c.h.b16 %v483
    %v1551 = vunpack.c.l.b16 %v484
    %v1552 = vunpack.c.h.b16 %v484
    %v1553 = vunpack.c.l.b16 %v485
    %v1554 = vunpack.c.h.b16 %v485
    %v1555 = vunpack.c.l.b16 %v486
    %v1556 = vunpack.c.h.b16 %v486
    %v1557 = vunpack.c.l.b16 %v487
    %v1558 = vunpack.c.h.b16 %v487
    %v1559 = vunpack.c.l.b16 %v488
    %v1560 = vunpack.c.h.b16 %v488
    %v1561 = vunpack.c.l.b16 %v489
    %v1562 = vunpack.c.h.b16 %v489
    %v1563 = vunpack.c.l.b16 %v490
    %v1564 = vunpack.c.h.b16 %v490
    %v1565 = vunpack.c.l.b16 %v491
    %v1566 = vunpack.c.h.b16 %v491
    %v1567 = vunpack.c.l.b16 %v492
    %v1568 = vunpack.c.h.b16 %v492
    %v1569 = vunpack.c.l.b16 %v493
    %v1570 = vunpack.c.h.b16 %v493
    %v1571 = vunpack.c.l.b16 %v494
    %v1572 = vunpack.c.h.b16 %v494
    %v1573 = vunpack.c.l.b16 %v495
    %v1574 = vunpack.c.h.b16 %v495
    %v1575 = vunpack.c.l.b16 %v496
    %v1576 = vunpack.c.h.b16 %v496
    %v1577 = vunpack.c.l.b16 %v497
    %v1578 = vunpack.c.h.b16 %v497
    %v1579 = vunpack.c.l.b16 %v498
    %v1580 = vunpack.c.h.b16 %v498
    %v1581 = vunpack.c.l.b16 %v499
    %v1582 = vunpack.c.h.b16 %v499
    %v1583 = vunpack.c.l.b16 %v500
    %v1584 = vunpack.c.h.b16 %v500
    %v1585 = vunpack.c.l.b16 %v501
    %v1586 = vunpack.c.h.b16 %v501
    %v1587 = vunpack.c.l.b16 %v502
    %v1588 = vunpack.c.h.b16 %v502
    %v1589 = vunpack.c.l.b16 %v503
    %v1590 = vunpack.c.h.b16 %v503
    %v1591 = vunpack.c.l.b16 %v504
    %v1592 = vunpack.c.h.b16 %v504
    %v1593 = vunpack.c.l.b16 %v505
    %v1594 = vunpack.c.h.b16 %v505
    %v1595 = vunpack.c.l.b16 %v506
    %v1596 = vunpack.c.h.b16 %v506
    %v1597 = vunpack.c.l.b16 %v507
    %v1598 = vunpack.c.h.b16 %v507
    %v1599 = vunpack.c.l.b16 %v508
    %v1600 = vunpack.c.h.b16 %v508
    %v1601 = vunpack.c.l.b16 %v509
    %v1602 = vunpack.c.h.b16 %v509
    %v1603 = vunpack.c.l.b16 %v510
    %v1604 = vunpack.c.h.b16 %v510
    %v1605 = vunpack.c.l.b16 %v511
    %v1606 = vunpack.c.h.b16 %v511
    %v1607 = vunpack.c.l.b16 %v512
    %v1608 = vunpack.c.h.b16 %v512
    %v1609 = vunpack.c.l.b16 %v513
    %v1610 = vunpack.c.h.b16 %v513
    %v1611 = vunpack.c.l.b16 %v514
    %v1612 = vunpack.c.h.b16 %v514
    %v1613 = vunpack.c.l.b16 %v515
    %v1614 = vunpack.c.h.b16 %v515
    %v1615 = vunpack.c.l.b16 %v516
    %v1616 = vunpack.c.h.b16 %v516
    %v1617 = vunpack.c.l.b16 %v517
    %v1618 = vunpack.c.h.b16 %v517
    %v1619 = vunpack.c.l.b16 %v518
    %v1620 = vunpack.c.h.b16 %v518
    %v1621 = vunpack.c.l.b16 %v519
    %v1622 = vunpack.c.h.b16 %v519
    %v1623 = vunpack.c.l.b16 %v520
    %v1624 = vunpack.c.h.b16 %v520
    %v1625 = vunpack.c.l.b16 %v521
    %v1626 = vunpack.c.h.b16 %v521
    %v1627 = vunpack.c.l.b16 %v522
    %v1628 = vunpack.c.h.b16 %v522
    %v1629 = vunpack.c.l.b16 %v523
    %v1630 = vunpack.c.h.b16 %v523
    %v1631 = vunpack.c.l.b16 %v524
    %v1632 = vunpack.c.h.b16 %v524
    %v1633 = vunpack.c.l.b16 %v525
    %v1634 = vunpack.c.h.b16 %v525
    %v1635 = vunpack.c.l.b16 %v526
    %v1636 = vunpack.c.h.b16 %v526
    %v1637 = vunpack.c.l.b16 %v527
    %v1638 = vunpack.c.h.b16 %v527
    %v1639 = vunpack.c.l.b16 %v528
    %v1640 = vunpack.c.h.b16 %v528
    %v1641 = vunpack.c.l.b16 %v529
    %v1642 = vunpack.c.h.b16 %v529
    %v1643 = vunpack.c.l.b16 %v530
    %v1644 = vunpack.c.h.b16 %v530
    %v1645 = vunpack.c.l.b16 %v531
    %v1646 = vunpack.c.h.b16 %v531
    %v1647 = vunpack.c.l.b16 %v532
    %v1648 = vunpack.c.h.b16 %v532
    %v1649 = vunpack.c.l.b16 %v533
    %v1650 = vunpack.c.h.b16 %v533
    %v1651 = vunpack.c.l.b16 %v534
    %v1652 = vunpack.c.h.b16 %v534
    %v1653 = vunpack.c.l.b16 %v535
    %v1654 = vunpack.c.h.b16 %v535
    %v1655 = vunpack.c.l.b16 %v536
    %v1656 = vunpack.c.h.b16 %v536
    %v1657 = vunpack.c.l.b16 %v537
    %v1658 = vunpack.c.h.b16 %v537
    %v1659 = vunpack.c.l.b16 %v538
    %v1660 = vunpack.c.h.b16 %v538
    %v1661 = vunpack.c.l.b16 %v539
    %v1662 = vunpack.c.h.b16 %v539
    %v1663 = vunpack.c.l.b16 %v540
    %v1664 = vunpack.c.h.b16 %v540
    %v1665 = vunpack.c.l.b16 %v541
    %v1666 = vunpack.c.h.b16 %v541
    %v1667 = vunpack.c.l.b16 %v542
    %v1668 = vunpack.c.h.b16 %v542
    %v1669 = vunpack.c.l.b16 %v543
    %v1670 = vunpack.c.h.b16 %v543
    %v1671 = vunpack.c.l.b16 %v544
    %v1672 = vunpack.c.h.b16 %v544
    %v1673 = vunpack.c.l.b16 %v545
    %v1674 = vunpack.c.h.b16 %v545
    %v1675 = vunpack.c.l.b16 %v546
    %v1676 = vunpack.c.h.b16 %v546
    %v1677 = vunpack.c.l.b16 %v547
    %v1678 = vunpack.c.h.b16 %v547
    %v1679 = vunpack.c.l.b16 %v548
    %v1680 = vunpack.c.h.b16 %v548
    %v1681 = vunpack.c.l.b16 %v549
    %v1682 = vunpack.c.h.b16 %v549
    %v1683 = vunpack.c.l.b16 %v550
    %v1684 = vunpack.c.h.b16 %v550
    %v1685 = vunpack.c.l.b16 %v551
    %v1686 = vunpack.c.h.b16 %v551
    %v1687 = vunpack.c.l.b16 %v552
    %v1688 = vunpack.c.h.b16 %v552
    %v1689 = vunpack.c.l.b16 %v553
    %v1690 = vunpack.c.h.b16 %v553
    %v1691 = vunpack.c.l.b16 %v554
    %v1692 = vunpack.c.h.b16 %v554
    %v1693 = vunpack.c.l.b16 %v555
    %v1694 = vunpack.c.h.b16 %v555
    %v1695 = vunpack.c.l.b16 %v556
    %v1696 = vunpack.c.h.b16 %v556
    %v1697 = vunpack.c.l.b16 %v557
    %v1698 = vunpack.c.h.b16 %v557
    %v1699 = vunpack.c.l.b16 %v558
    %v1700 = vunpack.c.h.b16 %v558
    %v1701 = vunpack.c.l.b16 %v559
    %v1702 = vunpack.c.h.b16 %v559
    %v1703 = vunpack.c.l.b16 %v560
    %v1704 = vunpack.c.h.b16 %v560
    %v1705 = vunpack.c.l.b16 %v561
    %v1706 = vunpack.c.h.b16 %v561
    %v1707 = vunpack.c.l.b16 %v562
    %v1708 = vunpack.c.h.b16 %v562
    %v1709 = vunpack.c.l.b16 %v563
    %v1710 = vunpack.c.h.b16 %v563
    %v1711 = vunpack.c.l.b16 %v564
    %v1712 = vunpack.c.h.b16 %v564
    %v1713 = vunpack.c.l.b16 %v565
    %v1714 = vunpack.c.h.b16 %v565
    %v1715 = vunpack.c.l.b16 %v566
    %v1716 = vunpack.c.h.b16 %v566
    %v1717 = vunpack.c.l.b16 %v567
    %v1718 = vunpack.c.h.b16 %v567
    %v1719 = vunpack.c.l.b16 %v568
    %v1720 = vunpack.c.h.b16 %v568
    %v1721 = vunpack.c.l.b16 %v569
    %v1722 = vunpack.c.h.b16 %v569
    %v1723 = vunpack.c.l.b16 %v570
    %v1724 = vunpack.c.h.b16 %v570
    %v1725 = vunpack.c.l.b16 %v571
    %v1726 = vunpack.c.h.b16 %v571
    %v1727 = vunpack.c.l.b16 %v572
    %v1728 = vunpack.c.h.b16 %v572
    %v1729 = vunpack.c.l.b16 %v573
    %v1730 = vunpack.c.h.b16 %v573
    %v1731 = vunpack.c.l.b16 %v574
    %v1732 = vunpack.c.h.b16 %v574
    %v1733 = vunpack.c.l.b16 %v575
    %v1734 = vunpack.c.h.b16 %v575
    %v1735 = vunpack.c.l.b16 %v576
    %v1736 = vunpack.c.h.b16 %v576
    %v1737 = vunpack.c.l.b16 %v577
    %v1738 = vunpack.c.h.b16 %v577
    %v1739 = vunpack.c.l.b16 %v578
    %v1740 = vunpack.c.h.b16 %v578
    %v1741 = vunpack.c.l.b16 %v579
    %v1742 = vunpack.c.h.b16 %v579
    %v1743 = vunpack.c.l.b16 %v580
    %v1744 = vunpack.c.h.b16 %v580
    %v1745 = vunpack.c.l.b16 %v581
    %v1746 = vunpack.c.h.b16 %v581
    %v1747 = vunpack.c.l.b16 %v582
    %v1748 = vunpack.c.h.b16 %v582
    %v1749 = vunpack.c.l.b16 %v583
    %v1750 = vunpack.c.h.b16 %v583
    %v1751 = vunpack.c.l.b16 %v584
    %v1752 = vunpack.c.h.b16 %v584
    %v1753 = vunpack.c.l.b16 %v585
    %v1754 = vunpack.c.h.b16 %v585
    %v1755 = vunpack.c.l.b16 %v586
    %v1756 = vunpack.c.h.b16 %v586
    %v1757 = vunpack.c.l.b16 %v587
    %v1758 = vunpack.c.h.b16 %v587
    %v1759 = vunpack.c.l.b16 %v588
    %v1760 = vunpack.c.h.b16 %v588
    %v1761 = vunpack.c.l.b16 %v589
    %v1762 = vunpack.c.h.b16 %v589
    %v1763 = vunpack.c.l.b16 %v590
    %v1764 = vunpack.c.h.b16 %v590
    %v1765 = vunpack.c.l.b16 %v591
    %v1766 = vunpack.c.h.b16 %v591
    %v1767 = vunpack.c.l.b16 %v592
    %v1768 = vunpack.c.h.b16 %v592
    %v1769 = vunpack.c.l.b16 %v593
    %v1770 = vunpack.c.h.b16 %v593
    %v1771 = vunpack.c.l.b16 %v594
    %v1772 = vunpack.c.h.b16 %v594
    %v1773 = vunpack.c.l.b16 %v595
    %v1774 = vunpack.c.h.b16 %v595
    %v1775 = vunpack.c.l.b16 %v596
    %v1776 = vunpack.c.h.b16 %v596
    %v1777 = vunpack.c.l.b16 %v597
    %v1778 = vunpack.c.h.b16 %v597
    %v1779 = vunpack.c.l.b16 %v598
    %v1780 = vunpack.c.h.b16 %v598
    %v1781 = vunpack.c.l.b16 %v599
    %v1782 = vunpack.c.h.b16 %v599
    %v1783 = vunpack.c.l.b16 %v600
    %v1784 = vunpack.c.h.b16 %v600
    %v1785 = vunpack.c.l.b16 %v601
    %v1786 = vunpack.c.h.b16 %v601
    %v1787 = vunpack.c.l.b16 %v602
    %v1788 = vunpack.c.h.b16 %v602
    %v1789 = vunpack.c.l.b16 %v603
    %v1790 = vunpack.c.h.b16 %v603
    %v1791 = vunpack.c.l.b16 %v604
    %v1792 = vunpack.c.h.b16 %v604
    %v1793 = vunpack.c.l.b16 %v605
    %v1794 = vunpack.c.h.b16 %v605
    %v1795 = vunpack.c.l.b16 %v606
    %v1796 = vunpack.c.h.b16 %v606
    %v1797 = vunpack.c.l.b16 %v607
    %v1798 = vunpack.c.h.b16 %v607
    %v1799 = vunpack.c.l.b16 %v608
    %v1800 = vunpack.c.h.b16 %v608
    %v1801 = vunpack.c.l.b16 %v609
    %v1802 = vunpack.c.h.b16 %v609
    %v1803 = vunpack.c.l.b16 %v610
    %v1804 = vunpack.c.h.b16 %v610
    %v1805 = vunpack.c.l.b16 %v611
    %v1806 = vunpack.c.h.b16 %v611
    %v1807 = vunpack.c.l.b16 %v612
    %v1808 = vunpack.c.h.b16 %v612
    %v1809 = vunpack.c.l.b16 %v613
    %v1810 = vunpack.c.h.b16 %v613
    %v1811 = vunpack.c.l.b16 %v614
    %v1812 = vunpack.c.h.b16 %v614
    %v1813 = vunpack.c.l.b16 %v615
    %v1814 = vunpack.c.h.b16 %v615
    %v1815 = vunpack.c.l.b16 %v616
    %v1816 = vunpack.c.h.b16 %v616
    %v1817 = vunpack.c.l.b16 %v617
    %v1818 = vunpack.c.h.b16 %v617
    %v1819 = vunpack.c.l.b16 %v618
    %v1820 = vunpack.c.h.b16 %v618
    %v1821 = vunpack.c.l.b16 %v619
    %v1822 = vunpack.c.h.b16 %v619
    %v1823 = vunpack.c.l.b16 %v620
    %v1824 = vunpack.c.h.b16 %v620
    %v1825 = vunpack.c.l.b16 %v621
    %v1826 = vunpack.c.h.b16 %v621
    %v1827 = vunpack.c.l.b16 %v622
    %v1828 = vunpack.c.h.b16 %v622
    %v1829 = vunpack.c.l.b16 %v623
    %v1830 = vunpack.c.h.b16 %v623
    %v1831 = vunpack.c.l.b16 %v624
    %v1832 = vunpack.c.h.b16 %v624
    %v1833 = vunpack.c.l.b16 %v625
    %v1834 = vunpack.c.h.b16 %v625
    %v1835 = vunpack.c.l.b16 %v626
    %v1836 = vunpack.c.h.b16 %v626
    %v1837 = vunpack.c.l.b16 %v627
    %v1838 = vunpack.c.h.b16 %v627
    %v1839 = vunpack.c.l.b16 %v628
    %v1840 = vunpack.c.h.b16 %v628
    %v1841 = vunpack.c.l.b16 %v629
    %v1842 = vunpack.c.h.b16 %v629
    %v1843 = vunpack.c.l.b16 %v630
    %v1844 = vunpack.c.h.b16 %v630
    %v1845 = vunpack.c.l.b16 %v631
    %v1846 = vunpack.c.h.b16 %v631
    %v1847 = vunpack.c.l.b16 %v632
    %v1848 = vunpack.c.h.b16 %v632
    %v1849 = vunpack.c.l.b16 %v633
    %v1850 = vunpack.c.h.b16 %v633
    %v1851 = vunpack.c.l.b16 %v634
    %v1852 = vunpack.c.h.b16 %v634
    %v1853 = vunpack.c.l.b16 %v635
    %v1854 = vunpack.c.h.b16 %v635
    %v1855 = vunpack.c.l.b16 %v636
    %v1856 = vunpack.c.h.b16 %v636
    %v1857 = vunpack.c.l.b16 %v637
    %v1858 = vunpack.c.h.b16 %v637
    %v1859 = vunpack.c.l.b16 %v638
    %v1860 = vunpack.c.h.b16 %v638
    %v1861 = vunpack.c.l.b16 %v639
    %v1862 = vunpack.c.h.b16 %v639
    %v1863 = vunpack.c.l.b16 %v640
    %v1864 = vunpack.c.h.b16 %v640
    %v1865 = vunpack.c.l.b16 %v641
    %v1866 = vunpack.c.h.b16 %v641
    %v1867 = vunpack.c.l.b16 %v642
    %v1868 = vunpack.c.h.b16 %v642
    %v1869 = vunpack.c.l.b16 %v643
    %v1870 = vunpack.c.h.b16 %v643
    %v1871 = vunpack.c.l.b16 %v644
    %v1872 = vunpack.c.h.b16 %v644
    %v1873 = vunpack.c.l.b16 %v645
    %v1874 = vunpack.c.h.b16 %v645
    %v1875 = vunpack.c.l.b16 %v646
    %v1876 = vunpack.c.h.b16 %v646
    %v1877 = vunpack.c.l.b16 %v647
    %v1878 = vunpack.c.h.b16 %v647
    %v1879 = vunpack.c.l.b16 %v648
    %v1880 = vunpack.c.h.b16 %v648
    %v1881 = vunpack.c.l.b16 %v649
    %v1882 = vunpack.c.h.b16 %v649
    %v1883 = vunpack.c.l.b16 %v650
    %v1884 = vunpack.c.h.b16 %v650
    %v1885 = vunpack.c.l.b16 %v651
    %v1886 = vunpack.c.h.b16 %v651
    %v1887 = vunpack.c.l.b16 %v652
    %v1888 = vunpack.c.h.b16 %v652
    %v1889 = vunpack.c.l.b16 %v653
    %v1890 = vunpack.c.h.b16 %v653
    %v1891 = vunpack.c.l.b16 %v654
    %v1892 = vunpack.c.h.b16 %v654
    %v1893 = vunpack.c.l.b16 %v655
    %v1894 = vunpack.c.h.b16 %v655
    %v1895 = vunpack.c.l.b16 %v656
    %v1896 = vunpack.c.h.b16 %v656
    %v1897 = vunpack.c.l.b16 %v657
    %v1898 = vunpack.c.h.b16 %v657
    %v1899 = vunpack.c.l.b16 %v658
    %v1900 = vunpack.c.h.b16 %v658
    %v1901 = vunpack.c.l.b16 %v659
    %v1902 = vunpack.c.h.b16 %v659
    %v1903 = vunpack.c.l.b16 %v660
    %v1904 = vunpack.c.h.b16 %v660
    %v1905 = vunpack.c.l.b16 %v661
    %v1906 = vunpack.c.h.b16 %v661
    %v1907 = vunpack.c.l.b16 %v662
    %v1908 = vunpack.c.h.b16 %v662
    %v1909 = vunpack.c.l.b16 %v663
    %v1910 = vunpack.c.h.b16 %v663
    %v1911 = vunpack.c.l.b16 %v664
    %v1912 = vunpack.c.h.b16 %v664
    %v1913 = vunpack.c.l.b16 %v665
    %v1914 = vunpack.c.h.b16 %v665
    %v1915 = vunpack.c.l.b16 %v666
    %v1916 = vunpack.c.h.b16 %v666
    %v1917 = vunpack.c.l.b16 %v667
    %v1918 = vunpack.c.h.b16 %v667
    %v1919 = vunpack.c.l.b16 %v668
    %v1920 = vunpack.c.h.b16 %v668
    %v1921 = vunpack.c.l.b16 %v669
    %v1922 = vunpack.c.h.b16 %v669
    %v1923 = vunpack.c.l.b16 %v670
    %v1924 = vunpack.c.h.b16 %v670
    %v1925 = vunpack.c.l.b16 %v671
    %v1926 = vunpack.c.h.b16 %v671
    %v1927 = vunpack.c.l.b16 %v672
    %v1928 = vunpack.c.h.b16 %v672
    %v1929 = vunpack.c.l.b16 %v673
    %v1930 = vunpack.c.h.b16 %v673
    %v1931 = vunpack.c.l.b16 %v674
    %v1932 = vunpack.c.h.b16 %v674
    %v1933 = vunpack.c.l.b16 %v675
    %v1934 = vunpack.c.h.b16 %v675
    %v1935 = vunpack.c.l.b16 %v676
    %v1936 = vunpack.c.h.b16 %v676
    %v1937 = vunpack.c.l.b16 %v677
    %v1938 = vunpack.c.h.b16 %v677
    %v1939 = vunpack.c.l.b16 %v678
    %v1940 = vunpack.c.h.b16 %v678
    %v1941 = vunpack.c.l.b16 %v679
    %v1942 = vunpack.c.h.b16 %v679
    %v1943 = vunpack.c.l.b16 %v680
    %v1944 = vunpack.c.h.b16 %v680
    %v1945 = vunpack.c.l.b16 %v681
    %v1946 = vunpack.c.h.b16 %v681
    %v1947 = vunpack.c.l.b16 %v682
    %v1948 = vunpack.c.h.b16 %v682
    %v1949 = vunpack.c.l.b16 %v683
    %v1950 = vunpack.c.h.b16 %v683
    %v1951 = vunpack.c.l.b16 %v684
    %v1952 = vunpack.c.h.b16 %v684
    %v1953 = vunpack.c.l.b16 %v685
    %v1954 = vunpack.c.h.b16 %v685
    %v1955 = vunpack.c.l.b16 %v686
    %v1956 = vunpack.c.h.b16 %v686
    %v1957 = vunpack.c.l.b16 %v687
    %v1958 = vunpack.c.h.b16 %v687
    %v1959 = vunpack.c.l.b16 %v688
    %v1960 = vunpack.c.h.b16 %v688
    %v1961 = vunpack.c.l.b16 %v689
    %v1962 = vunpack.c.h.b16 %v689
    %v1963 = vunpack.c.l.b16 %v690
    %v1964 = vunpack.c.h.b16 %v690
    %v1965 = vunpack.c.l.b16 %v691
    %v1966 = vunpack.c.h.b16 %v691
    %v1967 = vunpack.c.l.b16 %v692
    %v1968 = vunpack.c.h.b16 %v692
    %v1969 = vunpack.c.l.b16 %v693
    %v1970 = vunpack.c.h.b16 %v693
    %v1971 = vunpack.c.l.b16 %v694
    %v1972 = vunpack.c.h.b16 %v694
    %v1973 = vunpack.c.l.b16 %v695
    %v1974 = vunpack.c.h.b16 %v695
    %v1975 = vunpack.c.l.b16 %v696
    %v1976 = vunpack.c.h.b16 %v696
    %v1977 = vunpack.c.l.b16 %v697
    %v1978 = vunpack.c.h.b16 %v697
    %v1979 = vunpack.c.l.b16 %v698
    %v1980 = vunpack.c.h.b16 %v698
    %v1981 = vunpack.c.l.b16 %v699
    %v1982 = vunpack.c.h.b16 %v699
    %v1983 = vunpack.c.l.b16 %v700
    %v1984 = vunpack.c.h.b16 %v700
    %v1985 = vunpack.c.l.b16 %v701
    %v1986 = vunpack.c.h.b16 %v701
    %v1987 = vunpack.c.l.b16 %v702
    %v1988 = vunpack.c.h.b16 %v702
    %v1989 = vunpack.c.l.b16 %v703
    %v1990 = vunpack.c.h.b16 %v703
    %v1991 = vunpack.c.l.b16 %v704
    %v1992 = vunpack.c.h.b16 %v704
    %v1993 = vunpack.c.l.b16 %v705
    %v1994 = vunpack.c.h.b16 %v705
    %v1995 = vunpack.c.l.b16 %v706
    %v1996 = vunpack.c.h.b16 %v706
    %v1997 = vunpack.c.l.b16 %v707
    %v1998 = vunpack.c.h.b16 %v707
    %v1999 = vunpack.c.l.b16 %v708
    %v2000 = vunpack.c.h.b16 %v708
    %v2001 = vunpack.c.l.b16 %v709
    %v2002 = vunpack.c.h.b16 %v709
    %v2003 = vunpack.c.l.b16 %v710
    %v2004 = vunpack.c.h.b16 %v710
    %v2005 = vunpack.c.l.b16 %v711
    %v2006 = vunpack.c.h.b16 %v711
    %v2007 = vunpack.c.l.b16 %v712
    %v2008 = vunpack.c.h.b16 %v712
    %v2009 = vunpack.c.l.b16 %v713
    %v2010 = vunpack.c.h.b16 %v713
    %v2011 = vunpack.c.l.b16 %v714
    %v2012 = vunpack.c.h.b16 %v714
    %v2013 = vunpack.c.l.b16 %v715
    %v2014 = vunpack.c.h.b16 %v715
    %v2015 = vunpack.c.l.b16 %v716
    %v2016 = vunpack.c.h.b16 %v716
    %v2017 = vunpack.c.l.b16 %v717
    %v2018 = vunpack.c.h.b16 %v717
    %v2019 = vunpack.c.l.b16 %v718
    %v2020 = vunpack.c.h.b16 %v718
    %v2021 = vunpack.c.l.b16 %v719
    %v2022 = vunpack.c.h.b16 %v719
    %v2023 = vunpack.c.l.b16 %v720
    %v2024 = vunpack.c.h.b16 %v720
    %v2025 = vunpack.c.l.b16 %v721
    %v2026 = vunpack.c.h.b16 %v721
    %v2027 = vunpack.c.l.b16 %v722
    %v2028 = vunpack.c.h.b16 %v722
    %v2029 = vunpack.c.l.b16 %v723
    %v2030 = vunpack.c.h.b16 %v723
    %v2031 = vunpack.c.l.b16 %v724
    %v2032 = vunpack.c.h.b16 %v724
    %v2033 = vunpack.c.l.b16 %v725
    %v2034 = vunpack.c.h.b16 %v725
    %v2035 = vunpack.c.l.b16 %v726
    %v2036 = vunpack.c.h.b16 %v726
    %v2037 = vunpack.c.l.b16 %v727
    %v2038 = vunpack.c.h.b16 %v727
    %v2039 = vunpack.c.l.b16 %v728
    %v2040 = vunpack.c.h.b16 %v728
    %v2041 = vunpack.c.l.b16 %v729
    %v2042 = vunpack.c.h.b16 %v729
    %v2043 = vunpack.c.l.b16 %v730
    %v2044 = vunpack.c.h.b16 %v730
    %v2045 = vunpack.c.l.b16 %v731
    %v2046 = vunpack.c.h.b16 %v731
    %v2047 = vunpack.c.l.b16 %v732
    %v2048 = vunpack.c.h.b16 %v732
    %v2049 = vunpack.c.l.b16 %v733
    %v2050 = vunpack.c.h.b16 %v733
    %v2051 = vunpack.c.l.b16 %v734
    %v2052 = vunpack.c.h.b16 %v734
    %v2053 = vunpack.c.l.b16 %v735
    %v2054 = vunpack.c.h.b16 %v735
    %v2055 = vunpack.c.l.b16 %v736
    %v2056 = vunpack.c.h.b16 %v736
    %v2057 = vunpack.c.l.b16 %v737
    %v2058 = vunpack.c.h.b16 %v737
    %v2059 = vunpack.c.l.b16 %v738
    %v2060 = vunpack.c.h.b16 %v738
    %v2061 = vunpack.c.l.b16 %v739
    %v2062 = vunpack.c.h.b16 %v739
    %v2063 = vunpack.c.l.b16 %v740
    %v2064 = vunpack.c.h.b16 %v740
    %v2065 = vunpack.c.l.b16 %v741
    %v2066 = vunpack.c.h.b16 %v741
    %v2067 = vunpack.c.l.b16 %v742
    %v2068 = vunpack.c.h.b16 %v742
    %v2069 = vunpack.c.l.b16 %v743
    %v2070 = vunpack.c.h.b16 %v743
    %v2071 = vunpack.c.l.b16 %v744
    %v2072 = vunpack.c.h.b16 %v744
    %v2073 = vunpack.c.l.b16 %v745
    %v2074 = vunpack.c.h.b16 %v745
    %v2075 = vunpack.c.l.b16 %v746
    %v2076 = vunpack.c.h.b16 %v746
    %v2077 = vunpack.c.l.b16 %v747
    %v2078 = vunpack.c.h.b16 %v747
    %v2079 = vunpack.c.l.b16 %v748
    %v2080 = vunpack.c.h.b16 %v748
    %v2081 = vunpack.c.l.b16 %v749
    %v2082 = vunpack.c.h.b16 %v749
    %v2083 = vunpack.c.l.b16 %v750
    %v2084 = vunpack.c.h.b16 %v750
    %v2085 = vunpack.c.l.b16 %v751
    %v2086 = vunpack.c.h.b16 %v751
    %v2087 = vunpack.c.l.b16 %v752
    %v2088 = vunpack.c.h.b16 %v752
    %v2089 = vunpack.c.l.b16 %v753
    %v2090 = vunpack.c.h.b16 %v753
    %v2091 = vunpack.c.l.b16 %v754
    %v2092 = vunpack.c.h.b16 %v754
    %v2093 = vunpack.c.l.b16 %v755
    %v2094 = vunpack.c.h.b16 %v755
    %v2095 = vunpack.c.l.b16 %v756
    %v2096 = vunpack.c.h.b16 %v756
    %v2097 = vunpack.c.l.b16 %v757
    %v2098 = vunpack.c.h.b16 %v757
    %v2099 = vunpack.c.l.b16 %v758
    %v2100 = vunpack.c.h.b16 %v758
    %v2101 = vunpack.c.l.b16 %v759
    %v2102 = vunpack.c.h.b16 %v759
    %v2103 = vunpack.c.l.b16 %v760
    %v2104 = vunpack.c.h.b16 %v760
    %v2105 = vunpack.c.l.b16 %v761
    %v2106 = vunpack.c.h.b16 %v761
    %v2107 = vunpack.c.l.b16 %v762
    %v2108 = vunpack.c.h.b16 %v762
    %v2109 = vunpack.c.l.b16 %v763
    %v2110 = vunpack.c.h.b16 %v763
    %v2111 = vunpack.c.l.b16 %v764
    %v2112 = vunpack.c.h.b16 %v764
    %v2113 = vunpack.c.l.b16 %v765
    %v2114 = vunpack.c.h.b16 %v765
    %v2115 = vunpack.c.l.b16 %v766
    %v2116 = vunpack.c.h.b16 %v766
    %v2117 = vunpack.c.l.b16 %v767
    %v2118 = vunpack.c.h.b16 %v767
    %v2119 = vunpack.c.l.b16 %v768
    %v2120 = vunpack.c.h.b16 %v768
    %v2121 = vunpack.c.l.b16 %v769
    %v2122 = vunpack.c.h.b16 %v769
    %v2123 = vunpack.c.l.b16 %v770
    %v2124 = vunpack.c.h.b16 %v770
    %v2125 = vunpack.c.l.b16 %v771
    %v2126 = vunpack.c.h.b16 %v771
    %v2127 = vunpack.c.l.b16 %v772
    %v2128 = vunpack.c.h.b16 %v772
    %v2129 = vunpack.c.l.b16 %v773
    %v2130 = vunpack.c.h.b16 %v773
    %v2131 = vunpack.c.l.b16 %v774
    %v2132 = vunpack.c.h.b16 %v774
    %v2133 = vunpack.c.l.b16 %v775
    %v2134 = vunpack.c.h.b16 %v775
    %v2135 = vunpack.c.l.b16 %v776
    %v2136 = vunpack.c.h.b16 %v776
    %v2137 = vunpack.c.l.b16 %v777
    %v2138 = vunpack.c.h.b16 %v777
    %v2139 = vunpack.c.l.b16 %v778
    %v2140 = vunpack.c.h.b16 %v778
    %v2141 = vunpack.c.l.b16 %v779
    %v2142 = vunpack.c.h.b16 %v779
    %v2143 = vunpack.c.l.b16 %v780
    %v2144 = vunpack.c.h.b16 %v780
    %v2145 = vunpack.c.l.b16 %v781
    %v2146 = vunpack.c.h.b16 %v781
    %v2147 = vunpack.c.l.b16 %v782
    %v2148 = vunpack.c.h.b16 %v782
    %v2149 = vunpack.c.l.b16 %v783
    %v2150 = vunpack.c.h.b16 %v783
    %v2151 = vunpack.c.l.b16 %v784
    %v2152 = vunpack.c.h.b16 %v784
    %v2153 = vunpack.c.l.b16 %v785
    %v2154 = vunpack.c.h.b16 %v785
    %v2155 = vunpack.c.l.b16 %v786
    %v2156 = vunpack.c.h.b16 %v786
    %v2157 = vunpack.c.l.b16 %v787
    %v2158 = vunpack.c.h.b16 %v787
    %v2159 = vunpack.c.l.b16 %v788
    %v2160 = vunpack.c.h.b16 %v788
    %v2161 = vunpack.c.l.b16 %v789
    %v2162 = vunpack.c.h.b16 %v789
    %v2163 = vunpack.c.l.b16 %v790
    %v2164 = vunpack.c.h.b16 %v790
    %v2165 = vunpack.c.l.b16 %v791
    %v2166 = vunpack.c.h.b16 %v791
    %v2167 = vunpack.c.l.b16 %v792
    %v2168 = vunpack.c.h.b16 %v792
    %v2169 = vunpack.c.l.b16 %v793
    %v2170 = vunpack.c.h.b16 %v793
    %v2171 = vunpack.c.l.b16 %v794
    %v2172 = vunpack.c.h.b16 %v794
    %v2173 = vunpack.c.l.b16 %v795
    %v2174 = vunpack.c.h.b16 %v795
    %v2175 = vunpack.c.l.b16 %v796
    %v2176 = vunpack.c.h.b16 %v796
    %v2177 = vunpack.c.l.b16 %v797
    %v2178 = vunpack.c.h.b16 %v797
    %v2179 = vunpack.c.l.b16 %v798
    %v2180 = vunpack.c.h.b16 %v798
    %v2181 = vunpack.c.l.b16 %v799
    %v2182 = vunpack.c.h.b16 %v799
    %v2183 = vunpack.c.l.b16 %v800
    %v2184 = vunpack.c.h.b16 %v800
    %v2185 = vunpack.c.l.b16 %v801
    %v2186 = vunpack.c.h.b16 %v801
    %v2187 = vunpack.c.l.b16 %v802
    %v2188 = vunpack.c.h.b16 %v802
    %v2189 = vunpack.c.l.b16 %v803
    %v2190 = vunpack.c.h.b16 %v803
    %v2191 = vunpack.c.l.b16 %v804
    %v2192 = vunpack.c.h.b16 %v804
    %v2193 = vunpack.c.l.b16 %v805
    %v2194 = vunpack.c.h.b16 %v805
    %v2195 = vunpack.c.l.b16 %v806
    %v2196 = vunpack.c.h.b16 %v806
    %v2197 = vunpack.c.l.b16 %v807
    %v2198 = vunpack.c.h.b16 %v807
    %v2199 = vunpack.c.l.b16 %v808
    %v2200 = vunpack.c.h.b16 %v808
    %v2201 = vunpack.c.l.b16 %v809
    %v2202 = vunpack.c.h.b16 %v809
    %v2203 = vunpack.c.l.b16 %v810
    %v2204 = vunpack.c.h.b16 %v810
    %v2205 = vunpack.c.l.b16 %v811
    %v2206 = vunpack.c.h.b16 %v811
    %v2207 = vunpack.c.l.b16 %v812
    %v2208 = vunpack.c.h.b16 %v812
    %v2209 = vunpack.c.l.b16 %v813
    %v2210 = vunpack.c.h.b16 %v813
    %v2211 = vunpack.c.l.b16 %v814
    %v2212 = vunpack.c.h.b16 %v814
    %v2213 = vunpack.c.l.b16 %v815
    %v2214 = vunpack.c.h.b16 %v815
    %v2215 = vunpack.c.l.b16 %v816
    %v2216 = vunpack.c.h.b16 %v816
    %v2217 = vunpack.c.l.b16 %v817
    %v2218 = vunpack.c.h.b16 %v817
    %v2219 = vunpack.c.l.b16 %v818
    %v2220 = vunpack.c.h.b16 %v818
    %v2221 = vunpack.c.l.b16 %v819
    %v2222 = vunpack.c.h.b16 %v819
    %v2223 = vunpack.c.l.b16 %v820
    %v2224 = vunpack.c.h.b16 %v820
    %v2225 = vunpack.c.l.b16 %v821
    %v2226 = vunpack.c.h.b16 %v821
    %v2227 = vunpack.c.l.b16 %v822
    %v2228 = vunpack.c.h.b16 %v822
    %v2229 = vunpack.c.l.b16 %v823
    %v2230 = vunpack.c.h.b16 %v823
    %v2231 = vunpack.c.l.b16 %v824
    %v2232 = vunpack.c.h.b16 %v824
    %v2233 = vunpack.c.l.b16 %v825
    %v2234 = vunpack.c.h.b16 %v825
    %v2235 = vunpack.c.l.b16 %v826
    %v2236 = vunpack.c.h.b16 %v826
    %v2237 = vunpack.c.l.b16 %v827
    %v2238 = vunpack.c.h.b16 %v827
    %v2239 = vunpack.c.l.b16 %v828
    %v2240 = vunpack.c.h.b16 %v828
    %v2241 = vunpack.c.l.b16 %v829
    %v2242 = vunpack.c.h.b16 %v829
    %v2243 = vunpack.c.l.b16 %v830
    %v2244 = vunpack.c.h.b16 %v830
    %v2245 = vunpack.c.l.b16 %v831
    %v2246 = vunpack.c.h.b16 %v831
    %v2247 = vunpack.c.l.b16 %v832
    %v2248 = vunpack.c.h.b16 %v832
    %v2249 = vunpack.c.l.b16 %v833
    %v2250 = vunpack.c.h.b16 %v833
    %v2251 = vunpack.c.l.b16 %v834
    %v2252 = vunpack.c.h.b16 %v834
    %v2253 = vunpack.c.l.b16 %v835
    %v2254 = vunpack.c.h.b16 %v835
    %v2255 = vunpack.c.l.b16 %v836
    %v2256 = vunpack.c.h.b16 %v836
    %v2257 = vunpack.c.l.b16 %v837
    %v2258 = vunpack.c.h.b16 %v837
    %v2259 = vunpack.c.l.b16 %v838
    %v2260 = vunpack.c.h.b16 %v838
    %v2261 = vunpack.c.l.b16 %v839
    %v2262 = vunpack.c.h.b16 %v839
    %v2263 = vunpack.c.l.b16 %v840
    %v2264 = vunpack.c.h.b16 %v840
    %v2265 = vunpack.c.l.b16 %v841
    %v2266 = vunpack.c.h.b16 %v841
    %v2267 = vunpack.c.l.b16 %v842
    %v2268 = vunpack.c.h.b16 %v842
    %v2269 = vunpack.c.l.b16 %v843
    %v2270 = vunpack.c.h.b16 %v843
    %v2271 = vunpack.c.l.b16 %v844
    %v2272 = vunpack.c.h.b16 %v844
    %v2273 = vunpack.c.l.b16 %v845
    %v2274 = vunpack.c.h.b16 %v845
    %v2275 = vunpack.c.l.b16 %v846
    %v2276 = vunpack.c.h.b16 %v846
    %v2277 = vunpack.c.l.b16 %v847
    %v2278 = vunpack.c.h.b16 %v847
    %v2279 = vunpack.c.l.b16 %v848
    %v2280 = vunpack.c.h.b16 %v848
    %v2281 = vunpack.c.l.b16 %v849
    %v2282 = vunpack.c.h.b16 %v849
    %v2283 = vunpack.c.l.b16 %v850
    %v2284 = vunpack.c.h.b16 %v850
    %v2285 = vunpack.c.l.b16 %v851
    %v2286 = vunpack.c.h.b16 %v851
    %v2287 = vunpack.c.l.b16 %v852
    %v2288 = vunpack.c.h.b16 %v852
    %v2289 = vunpack.c.l.b16 %v853
    %v2290 = vunpack.c.h.b16 %v853
    %v2291 = vunpack.c.l.b16 %v854
    %v2292 = vunpack.c.h.b16 %v854
    %v2293 = vunpack.c.l.b16 %v855
    %v2294 = vunpack.c.h.b16 %v855
    %v2295 = vunpack.c.l.b16 %v856
    %v2296 = vunpack.c.h.b16 %v856
    %v2297 = vunpack.c.l.b16 %v857
    %v2298 = vunpack.c.h.b16 %v857
    %v2299 = vunpack.c.l.b16 %v858
    %v2300 = vunpack.c.h.b16 %v858
    %v2301 = vunpack.c.l.b16 %v859
    %v2302 = vunpack.c.h.b16 %v859
    %v2303 = vunpack.c.l.b16 %v860
    %v2304 = vunpack.c.h.b16 %v860
    %v2305 = vunpack.c.l.b16 %v861
    %v2306 = vunpack.c.h.b16 %v861
    %v2307 = vunpack.c.l.b16 %v862
    %v2308 = vunpack.c.h.b16 %v862
    %v2309 = vunpack.c.l.b16 %v863
    %v2310 = vunpack.c.h.b16 %v863
    %v2311 = vunpack.c.l.b16 %v864
    %v2312 = vunpack.c.h.b16 %v864
    %v2313 = vunpack.c.l.b16 %v865
    %v2314 = vunpack.c.h.b16 %v865
    %v2315 = vunpack.c.l.b16 %v866
    %v2316 = vunpack.c.h.b16 %v866
    %v2317 = vunpack.c.l.b16 %v867
    %v2318 = vunpack.c.h.b16 %v867
    %v2319 = vunpack.c.l.b16 %v868
    %v2320 = vunpack.c.h.b16 %v868
    %v2321 = vunpack.c.l.b16 %v869
    %v2322 = vunpack.c.h.b16 %v869
    %v2323 = vunpack.c.l.b16 %v870
    %v2324 = vunpack.c.h.b16 %v870
    %v2325 = vunpack.c.l.b16 %v871
    %v2326 = vunpack.c.h.b16 %v871
    %v2327 = vunpack.c.l.b16 %v872
    %v2328 = vunpack.c.h.b16 %v872
    %v2329 = vunpack.c.l.b16 %v873
    %v2330 = vunpack.c.h.b16 %v873
    %v2331 = vunpack.c.l.b16 %v874
    %v2332 = vunpack.c.h.b16 %v874
    %v2333 = vunpack.c.l.b16 %v875
    %v2334 = vunpack.c.h.b16 %v875
    %v2335 = vunpack.c.l.b16 %v876
    %v2336 = vunpack.c.h.b16 %v876
    %v2337 = vunpack.c.l.b16 %v877
    %v2338 = vunpack.c.h.b16 %v877
    %v2339 = vunpack.c.l.b16 %v878
    %v2340 = vunpack.c.h.b16 %v878
    %v2341 = vunpack.c.l.b16 %v879
    %v2342 = vunpack.c.h.b16 %v879
    %v2343 = vunpack.c.l.b16 %v880
    %v2344 = vunpack.c.h.b16 %v880
    %v2345 = vunpack.c.l.b16 %v881
    %v2346 = vunpack.c.h.b16 %v881
    %v2347 = vunpack.c.l.b16 %v882
    %v2348 = vunpack.c.h.b16 %v882
    %v2349 = vunpack.c.l.b16 %v883
    %v2350 = vunpack.c.h.b16 %v883
    %v2351 = vunpack.c.l.b16 %v884
    %v2352 = vunpack.c.h.b16 %v884
    %v2353 = vunpack.c.l.b16 %v885
    %v2354 = vunpack.c.h.b16 %v885
    %v2355 = vunpack.c.l.b16 %v886
    %v2356 = vunpack.c.h.b16 %v886
    %v2357 = vunpack.c.l.b16 %v887
    %v2358 = vunpack.c.h.b16 %v887
    %v2359 = vunpack.c.l.b16 %v888
    %v2360 = vunpack.c.h.b16 %v888
    %v2361 = vunpack.c.l.b16 %v889
    %v2362 = vunpack.c.h.b16 %v889
    %v2363 = vunpack.c.l.b16 %v890
    %v2364 = vunpack.c.h.b16 %v890
    %v2365 = vunpack.c.l.b16 %v891
    %v2366 = vunpack.c.h.b16 %v891
    %v2367 = vunpack.c.l.b16 %v892
    %v2368 = vunpack.c.h.b16 %v892
    %v2369 = vunpack.c.l.b16 %v893
    %v2370 = vunpack.c.h.b16 %v893
    %v2371 = vunpack.c.l.b16 %v894
    %v2372 = vunpack.c.h.b16 %v894
    %v2373 = vunpack.c.l.b16 %v895
    %v2374 = vunpack.c.h.b16 %v895
    %v2375 = vunpack.c.l.b16 %v896
    %v2376 = vunpack.c.h.b16 %v896
    %v2377 = vunpack.c.l.b16 %v897
    %v2378 = vunpack.c.h.b16 %v897
    %v2379 = vunpack.c.l.b16 %v898
    %v2380 = vunpack.c.h.b16 %v898
    %v2381 = vunpack.c.l.b16 %v899
    %v2382 = vunpack.c.h.b16 %v899
    %v2383 = vunpack.c.l.b16 %v900
    %v2384 = vunpack.c.h.b16 %v900
    %v2385 = vunpack.c.l.b16 %v901
    %v2386 = vunpack.c.h.b16 %v901
    %v2387 = vunpack.c.l.b16 %v902
    %v2388 = vunpack.c.h.b16 %v902
    %v2389 = vunpack.c.l.b16 %v903
    %v2390 = vunpack.c.h.b16 %v903
    %v2391 = vunpack.c.l.b16 %v904
    %v2392 = vunpack.c.h.b16 %v904
    %v2393 = vunpack.c.l.b16 %v905
    %v2394 = vunpack.c.h.b16 %v905
    %v2395 = vunpack.c.l.b16 %v906
    %v2396 = vunpack.c.h.b16 %v906
    %v2397 = vunpack.c.l.b16 %v907
    %v2398 = vunpack.c.h.b16 %v907
    %v2399 = vunpack.c.l.b16 %v908
    %v2400 = vunpack.c.h.b16 %v908
    %v2401 = vunpack.c.l.b16 %v909
    %v2402 = vunpack.c.h.b16 %v909
    %v2403 = vunpack.c.l.b16 %v910
    %v2404 = vunpack.c.h.b16 %v910
    %v2405 = vunpack.c.l.b16 %v911
    %v2406 = vunpack.c.h.b16 %v911
    %v2407 = vunpack.c.l.b16 %v912
    %v2408 = vunpack.c.h.b16 %v912
    %v2409 = vunpack.c.l.b16 %v913
    %v2410 = vunpack.c.h.b16 %v913
    %v2411 = vunpack.c.l.b16 %v914
    %v2412 = vunpack.c.h.b16 %v914
    %v2413 = vunpack.c.l.b16 %v915
    %v2414 = vunpack.c.h.b16 %v915
    %v2415 = vunpack.c.l.b16 %v916
    %v2416 = vunpack.c.h.b16 %v916
    %v2417 = vunpack.c.l.b16 %v917
    %v2418 = vunpack.c.h.b16 %v917
    %v2419 = vunpack.c.l.b16 %v918
    %v2420 = vunpack.c.h.b16 %v918
    %v2421 = vunpack.c.l.b16 %v919
    %v2422 = vunpack.c.h.b16 %v919
    %v2423 = vunpack.c.l.b16 %v920
    %v2424 = vunpack.c.h.b16 %v920
    %v2425 = vunpack.c.l.b16 %v921
    %v2426 = vunpack.c.h.b16 %v921
    %v2427 = vunpack.c.l.b16 %v922
    %v2428 = vunpack.c.h.b16 %v922
    %v2429 = vunpack.c.l.b16 %v923
    %v2430 = vunpack.c.h.b16 %v923
    %v2431 = vunpack.c.l.b16 %v924
    %v2432 = vunpack.c.h.b16 %v924
    %v2433 = vunpack.c.l.b16 %v925
    %v2434 = vunpack.c.h.b16 %v925
    %v2435 = vunpack.c.l.b16 %v926
    %v2436 = vunpack.c.h.b16 %v926
    %v2437 = vunpack.c.l.b16 %v927
    %v2438 = vunpack.c.h.b16 %v927
    %v2439 = vunpack.c.l.b16 %v928
    %v2440 = vunpack.c.h.b16 %v928
    %v2441 = vunpack.c.l.b16 %v929
    %v2442 = vunpack.c.h.b16 %v929
    %v2443 = vunpack.c.l.b16 %v930
    %v2444 = vunpack.c.h.b16 %v930
    %v2445 = vunpack.c.l.b16 %v931
    %v2446 = vunpack.c.h.b16 %v931
    %v2447 = vunpack.c.l.b16 %v932
    %v2448 = vunpack.c.h.b16 %v932
    %v2449 = vunpack.c.l.b16 %v933
    %v2450 = vunpack.c.h.b16 %v933
    %v2451 = vunpack.c.l.b16 %v934
    %v2452 = vunpack.c.h.b16 %v934
    %v2453 = vunpack.c.l.b16 %v935
    %v2454 = vunpack.c.h.b16 %v935
    %v2455 = vunpack.c.l.b16 %v936
    %v2456 = vunpack.c.h.b16 %v936
    %v2457 = vunpack.c.l.b16 %v937
    %v2458 = vunpack.c.h.b16 %v937
    %v2459 = vunpack.c.l.b16 %v938
    %v2460 = vunpack.c.h.b16 %v938
    %v2461 = vunpack.c.l.b16 %v939
    %v2462 = vunpack.c.h.b16 %v939
    %v2463 = vunpack.c.l.b16 %v940
    %v2464 = vunpack.c.h.b16 %v940
    %v2465 = vunpack.c.l.b16 %v941
    %v2466 = vunpack.c.h.b16 %v941
    %v2467 = vunpack.c.l.b16 %v942
    %v2468 = vunpack.c.h.b16 %v942
    %v2469 = vunpack.c.l.b16 %v943
    %v2470 = vunpack.c.h.b16 %v943
    %v2471 = vunpack.c.l.b16 %v944
    %v2472 = vunpack.c.h.b16 %v944
    %v2473 = vunpack.c.l.b16 %v945
    %v2474 = vunpack.c.h.b16 %v945
    %v2475 = vunpack.c.l.b16 %v946
    %v2476 = vunpack.c.h.b16 %v946
    %v2477 = vunpack.c.l.b16 %v947
    %v2478 = vunpack.c.h.b16 %v947
    %v2479 = vunpack.c.l.b16 %v948
    %v2480 = vunpack.c.h.b16 %v948
    %v2481 = vunpack.c.l.b16 %v949
    %v2482 = vunpack.c.h.b16 %v949
    %v2483 = vunpack.c.l.b16 %v950
    %v2484 = vunpack.c.h.b16 %v950
    %v2485 = vunpack.c.l.b16 %v951
    %v2486 = vunpack.c.h.b16 %v951
    %v2487 = vunpack.c.l.b16 %v952
    %v2488 = vunpack.c.h.b16 %v952
    %v2489 = vunpack.c.l.b16 %v953
    %v2490 = vunpack.c.h.b16 %v953
    %v2491 = vunpack.c.l.b16 %v954
    %v2492 = vunpack.c.h.b16 %v954
    %v2493 = vunpack.c.l.b16 %v955
    %v2494 = vunpack.c.h.b16 %v955
    %v2495 = vunpack.c.l.b16 %v956
    %v2496 = vunpack.c.h.b16 %v956
    %v2497 = vunpack.c.l.b16 %v957
    %v2498 = vunpack.c.h.b16 %v957
    %v2499 = vunpack.c.l.b16 %v958
    %v2500 = vunpack.c.h.b16 %v958
    %v2501 = vunpack.c.l.b16 %v959
    %v2502 = vunpack.c.h.b16 %v959
    %v2503 = vunpack.c.l.b16 %v960
    %v2504 = vunpack.c.h.b16 %v960
    %v2505 = vunpack.c.l.b16 %v961
    %v2506 = vunpack.c.h.b16 %v961
    %v2507 = vunpack.c.l.b16 %v962
    %v2508 = vunpack.c.h.b16 %v962
    %v2509 = vunpack.c.l.b16 %v963
    %v2510 = vunpack.c.h.b16 %v963
    %v2511 = vunpack.c.l.b16 %v964
    %v2512 = vunpack.c.h.b16 %v964
    %v2513 = vunpack.c.l.b16 %v965
    %v2514 = vunpack.c.h.b16 %v965
    %v2515 = vunpack.c.l.b16 %v966
    %v2516 = vunpack.c.h.b16 %v966
    %v2517 = vunpack.c.l.b16 %v967
    %v2518 = vunpack.c.h.b16 %v967
    %v2519 = vunpack.c.l.b16 %v968
    %v2520 = vunpack.c.h.b16 %v968
    %v2521 = vunpack.c.l.b16 %v969
    %v2522 = vunpack.c.h.b16 %v969
    %v2523 = vunpack.c.l.b16 %v970
    %v2524 = vunpack.c.h.b16 %v970
    %v2525 = vunpack.c.l.b16 %v971
    %v2526 = vunpack.c.h.b16 %v971
    %v2527 = vunpack.c.l.b16 %v972
    %v2528 = vunpack.c.h.b16 %v972
    %v2529 = vunpack.c.l.b16 %v973
    %v2530 = vunpack.c.h.b16 %v973
    %v2531 = vunpack.c.l.b16 %v974
    %v2532 = vunpack.c.h.b16 %v974
    %v2533 = vunpack.c.l.b16 %v975
    %v2534 = vunpack.c.h.b16 %v975
    %v2535 = vunpack.c.l.b16 %v976
    %v2536 = vunpack.c.h.b16 %v976
    %v2537 = vunpack.c.l.b16 %v977
    %v2538 = vunpack.c.h.b16 %v977
    %v2539 = vunpack.c.l.b16 %v978
    %v2540 = vunpack.c.h.b16 %v978
    %v2541 = vunpack.c.l.b16 %v979
    %v2542 = vunpack.c.h.b16 %v979
    %v2543 = vunpack.c.l.b16 %v980
    %v2544 = vunpack.c.h.b16 %v980
    %v2545 = vunpack.c.l.b16 %v981
    %v2546 = vunpack.c.h.b16 %v981
    %v2547 = vunpack.c.l.b16 %v982
    %v2548 = vunpack.c.h.b16 %v982
    %v2549 = vunpack.c.l.b16 %v983
    %v2550 = vunpack.c.h.b16 %v983
    %v2551 = vunpack.c.l.b16 %v984
    %v2552 = vunpack.c.h.b16 %v984
    %v2553 = vunpack.c.l.b16 %v985
    %v2554 = vunpack.c.h.b16 %v985
    %v2555 = vunpack.c.l.b16 %v986
    %v2556 = vunpack.c.h.b16 %v986
    %v2557 = vunpack.c.l.b16 %v987
    %v2558 = vunpack.c.h.b16 %v987
    %v2559 = vunpack.c.l.b16 %v988
    %v2560 = vunpack.c.h.b16 %v988
    %v2561 = vunpack.c.l.b16 %v989
    %v2562 = vunpack.c.h.b16 %v989
    %v2563 = vunpack.c.l.b16 %v990
    %v2564 = vunpack.c.h.b16 %v990
    %v2565 = vunpack.c.l.b16 %v991
    %v2566 = vunpack.c.h.b16 %v991
    %v2567 = vunpack.c.l.b16 %v992
    %v2568 = vunpack.c.h.b16 %v992
    %v2569 = vunpack.c.l.b16 %v993
    %v2570 = vunpack.c.h.b16 %v993
    %v2571 = vunpack.c.l.b16 %v994
    %v2572 = vunpack.c.h.b16 %v994
    %v2573 = vpack.c.b16 %v1557, %v1549
    %v2574 = vpack.c.b16 %v1558, %v1550
    %v2575 = vpack.c.b16 %v1559, %v1551
    %v2576 = vpack.c.b16 %v1560, %v1552
    %v2577 = vpack.c.b16 %v1561, %v1553
    %v2578 = vpack.c.b16 %v1562, %v1554
    %v2579 = vpack.c.b16 %v1563, %v1555
    %v2580 = vpack.c.b16 %v1564, %v1556
    %v2581 = vpack.c.b16 %v1573, %v1565
    %v2582 = vpack.c.b16 %v1574, %v1566
    %v2583 = vpack.c.b16 %v1575, %v1567
    %v2584 = vpack.c.b16 %v1576, %v1568
    %v2585 = vpack.c.b16 %v1577, %v1569
    %v2586 = vpack.c.b16 %v1578, %v1570
    %v2587 = vpack.c.b16 %v1579, %v1571
    %v2588 = vpack.c.b16 %v1580, %v1572
    %v2589 = vpack.c.b16 %v1589, %v1581
    %v2590 = vpack.c.b16 %v1590, %v1582
    %v2591 = vpack.c.b16 %v1591, %v1583
    %v2592 = vpack.c.b16 %v1592, %v1584
    %v2593 = vpack.c.b16 %v1593, %v1585
    %v2594 = vpack.c.b16 %v1594, %v1586
    %v2595 = vpack.c.b16 %v1595, %v1587
    %v2596 = vpack.c.b16 %v1596, %v1588
    %v2597 = vpack.c.b16 %v1605, %v1597
    %v2598 = vpack.c.b16 %v1606, %v1598
    %v2599 = vpack.c.b16 %v1607, %v1599
    %v2600 = vpack.c.b16 %v1608, %v1600
    %v2601 = vpack.c.b16 %v1609, %v1601
    %v2602 = vpack.c.b16 %v1610, %v1602
    %v2603 = vpack.c.b16 %v1611, %v1603
    %v2604 = vpack.c.b16 %v1612, %v1604
    %v2605 = vpack.c.b16 %v1621, %v1613
    %v2606 = vpack.c.b16 %v1622, %v1614
    %v2607 = vpack.c.b16 %v1623, %v1615
    %v2608 = vpack.c.b16 %v1624, %v1616
    %v2609 = vpack.c.b16 %v1625, %v1617
    %v2610 = vpack.c.b16 %v1626, %v1618
    %v2611 = vpack.c.b16 %v1627, %v1619
    %v2612 = vpack.c.b16 %v1628, %v1620
    %v2613 = vpack.c.b16 %v1637, %v1629
    %v2614 = vpack.c.b16 %v1638, %v1630
    %v2615 = vpack.c.b16 %v1639, %v1631
    %v2616 = vpack.c.b16 %v1640, %v1632
    %v2617 = vpack.c.b16 %v1641, %v1633
    %v2618 = vpack.c.b16 %v1642, %v1634
    %v2619 = vpack.c.b16 %v1643, %v1635
    %v2620 = vpack.c.b16 %v1644, %v1636
    %v2621 = vpack.c.b16 %v1653, %v1645
    %v2622 = vpack.c.b16 %v1654, %v1646
    %v2623 = vpack.c.b16 %v1655, %v1647
    %v2624 = vpack.c.b16 %v1656, %v1648
    %v2625 = vpack.c.b16 %v1657, %v1649
    %v2626 = vpack.c.b16 %v1658, %v1650
    %v2627 = vpack.c.b16 %v1659, %v1651
    %v2628 = vpack.c.b16 %v1660, %v1652
    %v2629 = vpack.c.b16 %v1669, %v1661
    %v2630 = vpack.c.b16 %v1670, %v1662
    %v2631 = vpack.c.b16 %v1671, %v1663
    %v2632 = vpack.c.b16 %v1672, %v1664
    %v2633 = vpack.c.b16 %v1673, %v1665
    %v2634 = vpack.c.b16 %v1674, %v1666
    %v2635 = vpack.c.b16 %v1675, %v1667
    %v2636 = vpack.c.b16 %v1676, %v1668
    %v2637 = vpack.c.b16 %v1685, %v1677
    %v2638 = vpack.c.b16 %v1686, %v1678
    %v2639 = vpack.c.b16 %v1687, %v1679
    %v2640 = vpack.c.b16 %v1688, %v1680
    %v2641 = vpack.c.b16 %v1689, %v1681
    %v2642 = vpack.c.b16 %v1690, %v1682
    %v2643 = vpack.c.b16 %v1691, %v1683
    %v2644 = vpack.c.b16 %v1692, %v1684
    %v2645 = vpack.c.b16 %v1701, %v1693
    %v2646 = vpack.c.b16 %v1702, %v1694
    %v2647 = vpack.c.b16 %v1703, %v1695
    %v2648 = vpack.c.b16 %v1704, %v1696
    %v2649 = vpack.c.b16 %v1705, %v1697
    %v2650 = vpack.c.b16 %v1706, %v1698
    %v2651 = vpack.c.b16 %v1707, %v1699
    %v2652 = vpack.c.b16 %v1708, %v1700
    %v2653 = vpack.c.b16 %v1717, %v1709
    %v2654 = vpack.c.b16 %v1718, %v1710
    %v2655 = vpack.c.b16 %v1719, %v1711
    %v2656 = vpack.c.b16 %v1720, %v1712
    %v2657 = vpack.c.b16 %v1721, %v1713
    %v2658 = vpack.c.b16 %v1722, %v1714
    %v2659 = vpack.c.b16 %v1723, %v1715
    %v2660 = vpack.c.b16 %v1724, %v1716
    %v2661 = vpack.c.b16 %v1733, %v1725
    %v2662 = vpack.c.b16 %v1734, %v1726
    %v2663 = vpack.c.b16 %v1735, %v1727
    %v2664 = vpack.c.b16 %v1736, %v1728
    %v2665 = vpack.c.b16 %v1737, %v1729
    %v2666 = vpack.c.b16 %v1738, %v1730
    %v2667 = vpack.c.b16 %v1739, %v1731
    %v2668 = vpack.c.b16 %v1740, %v1732
    %v2669 = vpack.c.b16 %v1749, %v1741
    %v2670 = vpack.c.b16 %v1750, %v1742
    %v2671 = vpack.c.b16 %v1751, %v1743
    %v2672 = vpack.c.b16 %v1752, %v1744
    %v2673 = vpack.c.b16 %v1753, %v1745
    %v2674 = vpack.c.b16 %v1754, %v1746
    %v2675 = vpack.c.b16 %v1755, %v1747
    %v2676 = vpack.c.b16 %v1756, %v1748
    %v2677 = vpack.c.b16 %v1765, %v1757
    %v2678 = vpack.c.b16 %v1766, %v1758
    %v2679 = vpack.c.b16 %v1767, %v1759
    %v2680 = vpack.c.b16 %v1768, %v1760
    %v2681 = vpack.c.b16 %v1769, %v1761
    %v2682 = vpack.c.b16 %v1770, %v1762
    %v2683 = vpack.c.b16 %v1771, %v1763
    %v2684 = vpack.c.b16 %v1772, %v1764
    %v2685 = vpack.c.b16 %v1781, %v1773
    %v2686 = vpack.c.b16 %v1782, %v1774
    %v2687 = vpack.c.b16 %v1783, %v1775
    %v2688 = vpack.c.b16 %v1784, %v1776
    %v2689 = vpack.c.b16 %v1785, %v1777
    %v2690 = vpack.c.b16 %v1786, %v1778
    %v2691 = vpack.c.b16 %v1787, %v1779
    %v2692 = vpack.c.b16 %v1788, %v1780
    %v2693 = vpack.c.b16 %v1797, %v1789
    %v2694 = vpack.c.b16 %v1798, %v1790
    %v2695 = vpack.c.b16 %v1799, %v1791
    %v2696 = vpack.c.b16 %v1800, %v1792
    %v2697 = vpack.c.b16 %v1801, %v1793
    %v2698 = vpack.c.b16 %v1802, %v1794
    %v2699 = vpack.c.b16 %v1803, %v1795
    %v2700 = vpack.c.b16 %v1804, %v1796
    %v2701 = vpack.c.b16 %v1813, %v1805
    %v2702 = vpack.c.b16 %v1814, %v1806
    %v2703 = vpack.c.b16 %v1815, %v1807
    %v2704 = vpack.c.b16 %v1816, %v1808
    %v2705 = vpack.c.b16 %v1817, %v1809
    %v2706 = vpack.c.b16 %v1818, %v1810
    %v2707 = vpack.c.b16 %v1819, %v1811
    %v2708 = vpack.c.b16 %v1820, %v1812
    %v2709 = vpack.c.b16 %v1829, %v1821
    %v2710 = vpack.c.b16 %v1830, %v1822
    %v2711 = vpack.c.b16 %v1831, %v1823
    %v2712 = vpack.c.b16 %v1832, %v1824
    %v2713 = vpack.c.b16 %v1833, %v1825
    %v2714 = vpack.c.b16 %v1834, %v1826
    %v2715 = vpack.c.b16 %v1835, %v1827
    %v2716 = vpack.c.b16 %v1836, %v1828
    %v2717 = vpack.c.b16 %v1845, %v1837
    %v2718 = vpack.c.b16 %v1846, %v1838
    %v2719 = vpack.c.b16 %v1847, %v1839
    %v2720 = vpack.c.b16 %v1848, %v1840
    %v2721 = vpack.c.b16 %v1849, %v1841
    %v2722 = vpack.c.b16 %v1850, %v1842
    %v2723 = vpack.c.b16 %v1851, %v1843
    %v2724 = vpack.c.b16 %v1852, %v1844
    %v2725 = vpack.c.b16 %v1861, %v1853
    %v2726 = vpack.c.b16 %v1862, %v1854
    %v2727 = vpack.c.b16 %v1863, %v1855
    %v2728 = vpack.c.b16 %v1864, %v1856
    %v2729 = vpack.c.b16 %v1865, %v1857
    %v2730 = vpack.c.b16 %v1866, %v1858
    %v2731 = vpack.c.b16 %v1867, %v1859
    %v2732 = vpack.c.b16 %v1868, %v1860
    %v2733 = vpack.c.b16 %v1877, %v1869
    %v2734 = vpack.c.b16 %v1878, %v1870
    %v2735 = vpack.c.b16 %v1879, %v1871
    %v2736 = vpack.c.b16 %v1880, %v1872
    %v2737 = vpack.c.b16 %v1881, %v1873
    %v2738 = vpack.c.b16 %v1882, %v1874
    %v2739 = vpack.c.b16 %v1883, %v1875
    %v2740 = vpack.c.b16 %v1884, %v1876
    %v2741 = vpack.c.b16 %v1893, %v1885
    %v2742 = vpack.c.b16 %v1894, %v1886
    %v2743 = vpack.c.b16 %v1895, %v1887
    %v2744 = vpack.c.b16 %v1896, %v1888
    %v2745 = vpack.c.b16 %v1897, %v1889
    %v2746 = vpack.c.b16 %v1898, %v1890
    %v2747 = vpack.c.b16 %v1899, %v1891
    %v2748 = vpack.c.b16 %v1900, %v1892
    %v2749 = vpack.c.b16 %v1909, %v1901
    %v2750 = vpack.c.b16 %v1910, %v1902
    %v2751 = vpack.c.b16 %v1911, %v1903
    %v2752 = vpack.c.b16 %v1912, %v1904
    %v2753 = vpack.c.b16 %v1913, %v1905
    %v2754 = vpack.c.b16 %v1914, %v1906
    %v2755 = vpack.c.b16 %v1915, %v1907
    %v2756 = vpack.c.b16 %v1916, %v1908
    %v2757 = vpack.c.b16 %v1925, %v1917
    %v2758 = vpack.c.b16 %v1926, %v1918
    %v2759 = vpack.c.b16 %v1927, %v1919
    %v2760 = vpack.c.b16 %v1928, %v1920
    %v2761 = vpack.c.b16 %v1929, %v1921
    %v2762 = vpack.c.b16 %v1930, %v1922
    %v2763 = vpack.c.b16 %v1931, %v1923
    %v2764 = vpack.c.b16 %v1932, %v1924
    %v2765 = vpack.c.b16 %v1941, %v1933
    %v2766 = vpack.c.b16 %v1942, %v1934
    %v2767 = vpack.c.b16 %v1943, %v1935
    %v2768 = vpack.c.b16 %v1944, %v1936
    %v2769 = vpack.c.b16 %v1945, %v1937
    %v2770 = vpack.c.b16 %v1946, %v1938
    %v2771 = vpack.c.b16 %v1947, %v1939
    %v2772 = vpack.c.b16 %v1948, %v1940
    %v2773 = vpack.c.b16 %v1957, %v1949
    %v2774 = vpack.c.b16 %v1958, %v1950
    %v2775 = vpack.c.b16 %v1959, %v1951
    %v2776 = vpack.c.b16 %v1960, %v1952
    %v2777 = vpack.c.b16 %v1961, %v1953
    %v2778 = vpack.c.b16 %v1962, %v1954
    %v2779 = vpack.c.b16 %v1963, %v1955
    %v2780 = vpack.c.b16 %v1964, %v1956
    %v2781 = vpack.c.b16 %v1973, %v1965
    %v2782 = vpack.c.b16 %v1974, %v1966
    %v2783 = vpack.c.b16 %v1975, %v1967
    %v2784 = vpack.c.b16 %v1976, %v1968
    %v2785 = vpack.c.b16 %v1977, %v1969
    %v2786 = vpack.c.b16 %v1978, %v1970
    %v2787 = vpack.c.b16 %v1979, %v1971
    %v2788 = vpack.c.b16 %v1980, %v1972
    %v2789 = vpack.c.b16 %v1989, %v1981
    %v2790 = vpack.c.b16 %v1990, %v1982
    %v2791 = vpack.c.b16 %v1991, %v1983
    %v2792 = vpack.c.b16 %v1992, %v1984
    %v2793 = vpack.c.b16 %v1993, %v1985
    %v2794 = vpack.c.b16 %v1994, %v1986
    %v2795 = vpack.c.b16 %v1995, %v1987
    %v2796 = vpack.c.b16 %v1996, %v1988
    %v2797 = vpack.c.b16 %v2005, %v1997
    %v2798 = vpack.c.b16 %v2006, %v1998
    %v2799 = vpack.c.b16 %v2007, %v1999
    %v2800 = vpack.c.b16 %v2008, %v2000
    %v2801 = vpack.c.b16 %v2009, %v2001
    %v2802 = vpack.c.b16 %v2010, %v2002
    %v2803 = vpack.c.b16 %v2011, %v2003
    %v2804 = vpack.c.b16 %v2012, %v2004
    %v2805 = vpack.c.b16 %v2021, %v2013
    %v2806 = vpack.c.b16 %v2022, %v2014
    %v2807 = vpack.c.b16 %v2023, %v2015
    %v2808 = vpack.c.b16 %v2024, %v2016
    %v2809 = vpack.c.b16 %v2025, %v2017
    %v2810 = vpack.c.b16 %v2026, %v2018
    %v2811 = vpack.c.b16 %v2027, %v2019
    %v2812 = vpack.c.b16 %v2028, %v2020
    %v2813 = vpack.c.b16 %v2037, %v2029
    %v2814 = vpack.c.b16 %v2038, %v2030
    %v2815 = vpack.c.b16 %v2039, %v2031
    %v2816 = vpack.c.b16 %v2040, %v2032
    %v2817 = vpack.c.b16 %v2041, %v2033
    %v2818 = vpack.c.b16 %v2042, %v2034
    %v2819 = vpack.c.b16 %v2043, %v2035
    %v2820 = vpack.c.b16 %v2044, %v2036
    %v2821 = vpack.c.b16 %v2053, %v2045
    %v2822 = vpack.c.b16 %v2054, %v2046
    %v2823 = vpack.c.b16 %v2055, %v2047
    %v2824 = vpack.c.b16 %v2056, %v2048
    %v2825 = vpack.c.b16 %v2057, %v2049
    %v2826 = vpack.c.b16 %v2058, %v2050
    %v2827 = vpack.c.b16 %v2059, %v2051
    %v2828 = vpack.c.b16 %v2060, %v2052
    %v2829 = vpack.c.b16 %v2069, %v2061
    %v2830 = vpack.c.b16 %v2070, %v2062
    %v2831 = vpack.c.b16 %v2071, %v2063
    %v2832 = vpack.c.b16 %v2072, %v2064
    %v2833 = vpack.c.b16 %v2073, %v2065
    %v2834 = vpack.c.b16 %v2074, %v2066
    %v2835 = vpack.c.b16 %v2075, %v2067
    %v2836 = vpack.c.b16 %v2076, %v2068
    %v2837 = vpack.c.b16 %v2085, %v2077
    %v2838 = vpack.c.b16 %v2086, %v2078
    %v2839 = vpack.c.b16 %v2087, %v2079
    %v2840 = vpack.c.b16 %v2088, %v2080
    %v2841 = vpack.c.b16 %v2089, %v2081
    %v2842 = vpack.c.b16 %v2090, %v2082
    %v2843 = vpack.c.b16 %v2091, %v2083
    %v2844 = vpack.c.b16 %v2092, %v2084
    %v2845 = vpack.c.b16 %v2101, %v2093
    %v2846 = vpack.c.b16 %v2102, %v2094
    %v2847 = vpack.c.b16 %v2103, %v2095
    %v2848 = vpack.c.b16 %v2104, %v2096
    %v2849 = vpack.c.b16 %v2105, %v2097
    %v2850 = vpack.c.b16 %v2106, %v2098
    %v2851 = vpack.c.b16 %v2107, %v2099
    %v2852 = vpack.c.b16 %v2108, %v2100
    %v2853 = vpack.c.b16 %v2117, %v2109
    %v2854 = vpack.c.b16 %v2118, %v2110
    %v2855 = vpack.c.b16 %v2119, %v2111
    %v2856 = vpack.c.b16 %v2120, %v2112
    %v2857 = vpack.c.b16 %v2121, %v2113
    %v2858 = vpack.c.b16 %v2122, %v2114
    %v2859 = vpack.c.b16 %v2123, %v2115
    %v2860 = vpack.c.b16 %v2124, %v2116
    %v2861 = vpack.c.b16 %v2133, %v2125
    %v2862 = vpack.c.b16 %v2134, %v2126
    %v2863 = vpack.c.b16 %v2135, %v2127
    %v2864 = vpack.c.b16 %v2136, %v2128
    %v2865 = vpack.c.b16 %v2137, %v2129
    %v2866 = vpack.c.b16 %v2138, %v2130
    %v2867 = vpack.c.b16 %v2139, %v2131
    %v2868 = vpack.c.b16 %v2140, %v2132
    %v2869 = vpack.c.b16 %v2149, %v2141
    %v2870 = vpack.c.b16 %v2150, %v2142
    %v2871 = vpack.c.b16 %v2151, %v2143
    %v2872 = vpack.c.b16 %v2152, %v2144
    %v2873 = vpack.c.b16 %v2153, %v2145
    %v2874 = vpack.c.b16 %v2154, %v2146
    %v2875 = vpack.c.b16 %v2155, %v2147
    %v2876 = vpack.c.b16 %v2156, %v2148
    %v2877 = vpack.c.b16 %v2165, %v2157
    %v2878 = vpack.c.b16 %v2166, %v2158
    %v2879 = vpack.c.b16 %v2167, %v2159
    %v2880 = vpack.c.b16 %v2168, %v2160
    %v2881 = vpack.c.b16 %v2169, %v2161
    %v2882 = vpack.c.b16 %v2170, %v2162
    %v2883 = vpack.c.b16 %v2171, %v2163
    %v2884 = vpack.c.b16 %v2172, %v2164
    %v2885 = vpack.c.b16 %v2181, %v2173
    %v2886 = vpack.c.b16 %v2182, %v2174
    %v2887 = vpack.c.b16 %v2183, %v2175
    %v2888 = vpack.c.b16 %v2184, %v2176
    %v2889 = vpack.c.b16 %v2185, %v2177
    %v2890 = vpack.c.b16 %v2186, %v2178
    %v2891 = vpack.c.b16 %v2187, %v2179
    %v2892 = vpack.c.b16 %v2188, %v2180
    %v2893 = vpack.c.b16 %v2197, %v2189
    %v2894 = vpack.c.b16 %v2198, %v2190
    %v2895 = vpack.c.b16 %v2199, %v2191
    %v2896 = vpack.c.b16 %v2200, %v2192
    %v2897 = vpack.c.b16 %v2201, %v2193
    %v2898 = vpack.c.b16 %v2202, %v2194
    %v2899 = vpack.c.b16 %v2203, %v2195
    %v2900 = vpack.c.b16 %v2204, %v2196
    %v2901 = vpack.c.b16 %v2213, %v2205
    %v2902 = vpack.c.b16 %v2214, %v2206
    %v2903 = vpack.c.b16 %v2215, %v2207
    %v2904 = vpack.c.b16 %v2216, %v2208
    %v2905 = vpack.c.b16 %v2217, %v2209
    %v2906 = vpack.c.b16 %v2218, %v2210
    %v2907 = vpack.c.b16 %v2219, %v2211
    %v2908 = vpack.c.b16 %v2220, %v2212
    %v2909 = vpack.c.b16 %v2229, %v2221
    %v2910 = vpack.c.b16 %v2230, %v2222
    %v2911 = vpack.c.b16 %v2231, %v2223
    %v2912 = vpack.c.b16 %v2232, %v2224
    %v2913 = vpack.c.b16 %v2233, %v2225
    %v2914 = vpack.c.b16 %v2234, %v2226
    %v2915 = vpack.c.b16 %v2235, %v2227
    %v2916 = vpack.c.b16 %v2236, %v2228
    %v2917 = vpack.c.b16 %v2245, %v2237
    %v2918 = vpack.c.b16 %v2246, %v2238
    %v2919 = vpack.c.b16 %v2247, %v2239
    %v2920 = vpack.c.b16 %v2248, %v2240
    %v2921 = vpack.c.b16 %v2249, %v2241
    %v2922 = vpack.c.b16 %v2250, %v2242
    %v2923 = vpack.c.b16 %v2251, %v2243
    %v2924 = vpack.c.b16 %v2252, %v2244
    %v2925 = vpack.c.b16 %v2261, %v2253
    %v2926 = vpack.c.b16 %v2262, %v2254
    %v2927 = vpack.c.b16 %v2263, %v2255
    %v2928 = vpack.c.b16 %v2264, %v2256
    %v2929 = vpack.c.b16 %v2265, %v2257
    %v2930 = vpack.c.b16 %v2266, %v2258
    %v2931 = vpack.c.b16 %v2267, %v2259
    %v2932 = vpack.c.b16 %v2268, %v2260
    %v2933 = vpack.c.b16 %v2277, %v2269
    %v2934 = vpack.c.b16 %v2278, %v2270
    %v2935 = vpack.c.b16 %v2279, %v2271
    %v2936 = vpack.c.b16 %v2280, %v2272
    %v2937 = vpack.c.b16 %v2281, %v2273
    %v2938 = vpack.c.b16 %v2282, %v2274
    %v2939 = vpack.c.b16 %v2283, %v2275
    %v2940 = vpack.c.b16 %v2284, %v2276
    %v2941 = vpack.c.b16 %v2293, %v2285
    %v2942 = vpack.c.b16 %v2294, %v2286
    %v2943 = vpack.c.b16 %v2295, %v2287
    %v2944 = vpack.c.b16 %v2296, %v2288
    %v2945 = vpack.c.b16 %v2297, %v2289
    %v2946 = vpack.c.b16 %v2298, %v2290
    %v2947 = vpack.c.b16 %v2299, %v2291
    %v2948 = vpack.c.b16 %v2300, %v2292
    %v2949 = vpack.c.b16 %v2309, %v2301
    %v2950 = vpack.c.b16 %v2310, %v2302
    %v2951 = vpack.c.b16 %v2311, %v2303
    %v2952 = vpack.c.b16 %v2312, %v2304
    %v2953 = vpack.c.b16 %v2313, %v2305
    %v2954 = vpack.c.b16 %v2314, %v2306
    %v2955 = vpack.c.b16 %v2315, %v2307
    %v2956 = vpack.c.b16 %v2316, %v2308
    %v2957 = vpack.c.b16 %v2325, %v2317
    %v2958 = vpack.c.b16 %v2326, %v2318
    %v2959 = vpack.c.b16 %v2327, %v2319
    %v2960 = vpack.c.b16 %v2328, %v2320
    %v2961 = vpack.c.b16 %v2329, %v2321
    %v2962 = vpack.c.b16 %v2330, %v2322
    %v2963 = vpack.c.b16 %v2331, %v2323
    %v2964 = vpack.c.b16 %v2332, %v2324
    %v2965 = vpack.c.b16 %v2341, %v2333
    %v2966 = vpack.c.b16 %v2342, %v2334
    %v2967 = vpack.c.b16 %v2343, %v2335
    %v2968 = vpack.c.b16 %v2344, %v2336
    %v2969 = vpack.c.b16 %v2345, %v2337
    %v2970 = vpack.c.b16 %v2346, %v2338
    %v2971 = vpack.c.b16 %v2347, %v2339
    %v2972 = vpack.c.b16 %v2348, %v2340
    %v2973 = vpack.c.b16 %v2357, %v2349
    %v2974 = vpack.c.b16 %v2358, %v2350
    %v2975 = vpack.c.b16 %v2359, %v2351
    %v2976 = vpack.c.b16 %v2360, %v2352
    %v2977 = vpack.c.b16 %v2361, %v2353
    %v2978 = vpack.c.b16 %v2362, %v2354
    %v2979 = vpack.c.b16 %v2363, %v2355
    %v2980 = vpack.c.b16 %v2364, %v2356
    %v2981 = vpack.c.b16 %v2373, %v2365
    %v2982 = vpack.c.b16 %v2374, %v2366
    %v2983 = vpack.c.b16 %v2375, %v2367
    %v2984 = vpack.c.b16 %v2376, %v2368
    %v2985 = vpack.c.b16 %v2377, %v2369
    %v2986 = vpack.c.b16 %v2378, %v2370
    %v2987 = vpack.c.b16 %v2379, %v2371
    %v2988 = vpack.c.b16 %v2380, %v2372
    %v2989 = vpack.c.b16 %v2389, %v2381
    %v2990 = vpack.c.b16 %v2390, %v2382
    %v2991 = vpack.c.b16 %v2391, %v2383
    %v2992 = vpack.c.b16 %v2392, %v2384
    %v2993 = vpack.c.b16 %v2393, %v2385
    %v2994 = vpack.c.b16 %v2394, %v2386
    %v2995 = vpack.c.b16 %v2395, %v2387
    %v2996 = vpack.c.b16 %v2396, %v2388
    %v2997 = vpack.c.b16 %v2405, %v2397
    %v2998 = vpack.c.b16 %v2406, %v2398
    %v2999 = vpack.c.b16 %v2407, %v2399
    %v3000 = vpack.c.b16 %v2408, %v2400
    %v3001 = vpack.c.b16 %v2409, %v2401
    %v3002 = vpack.c.b16 %v2410, %v2402
    %v3003 = vpack.c.b16 %v2411, %v2403
    %v3004 = vpack.c.b16 %v2412, %v2404
    %v3005 = vpack.c.b16 %v2421, %v2413
    %v3006 = vpack.c.b16 %v2422, %v2414
    %v3007 = vpack.c.b16 %v2423, %v2415
    %v3008 = vpack.c.b16 %v2424, %v2416
    %v3009 = vpack.c.b16 %v2425, %v2417
    %v3010 = vpack.c.b16 %v2426, %v2418
    %v3011 = vpack.c.b16 %v2427, %v2419
    %v3012 = vpack.c.b16 %v2428, %v2420
    %v3013 = vpack.c.b16 %v2437, %v2429
    %v3014 = vpack.c.b16 %v2438, %v2430
    %v3015 = vpack.c.b16 %v2439, %v2431
    %v3016 = vpack.c.b16 %v2440, %v2432
    %v3017 = vpack.c.b16 %v2441, %v2433
    %v3018 = vpack.c.b16 %v2442, %v2434
    %v3019 = vpack.c.b16 %v2443, %v2435
    %v3020 = vpack.c.b16 %v2444, %v2436
    %v3021 = vpack.c.b16 %v2453, %v2445
    %v3022 = vpack.c.b16 %v2454, %v2446
    %v3023 = vpack.c.b16 %v2455, %v2447
    %v3024 = vpack.c.b16 %v2456, %v2448
    %v3025 = vpack.c.b16 %v2457, %v2449
    %v3026 = vpack.c.b16 %v2458, %v2450
    %v3027 = vpack.c.b16 %v2459, %v2451
    %v3028 = vpack.c.b16 %v2460, %v2452
    %v3029 = vpack.c.b16 %v2469, %v2461
    %v3030 = vpack.c.b16 %v2470, %v2462
    %v3031 = vpack.c.b16 %v2471, %v2463
    %v3032 = vpack.c.b16 %v2472, %v2464
    %v3033 = vpack.c.b16 %v2473, %v2465
    %v3034 = vpack.c.b16 %v2474, %v2466
    %v3035 = vpack.c.b16 %v2475, %v2467
    %v3036 = vpack.c.b16 %v2476, %v2468
    %v3037 = vpack.c.b16 %v2485, %v2477
    %v3038 = vpack.c.b16 %v2486, %v2478
    %v3039 = vpack.c.b16 %v2487, %v2479
    %v3040 = vpack.c.b16 %v2488, %v2480
    %v3041 = vpack.c.b16 %v2489, %v2481
    %v3042 = vpack.c.b16 %v2490, %v2482
    %v3043 = vpack.c.b16 %v2491, %v2483
    %v3044 = vpack.c.b16 %v2492, %v2484
    %v3045 = vpack.c.b16 %v2501, %v2493
    %v3046 = vpack.c.b16 %v2502, %v2494
    %v3047 = vpack.c.b16 %v2503, %v2495
    %v3048 = vpack.c.b16 %v2504, %v2496
    %v3049 = vpack.c.b16 %v2505, %v2497
    %v3050 = vpack.c.b16 %v2506, %v2498
    %v3051 = vpack.c.b16 %v2507, %v2499
    %v3052 = vpack.c.b16 %v2508, %v2500
    %v3053 = vpack.c.b16 %v2517, %v2509
    %v3054 = vpack.c.b16 %v2518, %v2510
    %v3055 = vpack.c.b16 %v2519, %v2511
    %v3056 = vpack.c.b16 %v2520, %v2512
    %v3057 = vpack.c.b16 %v2521, %v2513
    %v3058 = vpack.c.b16 %v2522, %v2514
    %v3059 = vpack.c.b16 %v2523, %v2515
    %v3060 = vpack.c.b16 %v2524, %v2516
    %v3061 = vpack.c.b16 %v2533, %v2525
    %v3062 = vpack.c.b16 %v2534, %v2526
    %v3063 = vpack.c.b16 %v2535, %v2527
    %v3064 = vpack.c.b16 %v2536, %v2528
    %v3065 = vpack.c.b16 %v2537, %v2529
    %v3066 = vpack.c.b16 %v2538, %v2530
    %v3067 = vpack.c.b16 %v2539, %v2531
    %v3068 = vpack.c.b16 %v2540, %v2532
    %v3069 = vpack.c.b16 %v2549, %v2541
    %v3070 = vpack.c.b16 %v2550, %v2542
    %v3071 = vpack.c.b16 %v2551, %v2543
    %v3072 = vpack.c.b16 %v2552, %v2544
    %v3073 = vpack.c.b16 %v2553, %v2545
    %v3074 = vpack.c.b16 %v2554, %v2546
    %v3075 = vpack.c.b16 %v2555, %v2547
    %v3076 = vpack.c.b16 %v2556, %v2548
    %v3077 = vpack.c.b16 %v2565, %v2557
    %v3078 = vpack.c.b16 %v2566, %v2558
    %v3079 = vpack.c.b16 %v2567, %v2559
    %v3080 = vpack.c.b16 %v2568, %v2560
    %v3081 = vpack.c.b16 %v2569, %v2561
    %v3082 = vpack.c.b16 %v2570, %v2562
    %v3083 = vpack.c.b16 %v2571, %v2563
    %v3084 = vpack.c.b16 %v2572, %v2564
    %3597 = vmatprep.subr.bf16.mxu0 %v2630
    %3598 = vmatpush1.bf16.msra.mxu0 %v2629
    %3599 = vmatprep.subr.bf16.mxu0 %v2622
    %3600 = vmatpush1.bf16.msra.mxu0 %v2621
    %3601 = vmatprep.subr.bf16.mxu0 %v2614
    %3602 = vmatpush1.bf16.msra.mxu0 %v2613
    %3603 = vmatprep.subr.bf16.mxu0 %v2606
    %3604 = vmatpush1.bf16.msra.mxu0 %v2605
    %3605 = vmatprep.subr.bf16.mxu0 %v2598
    %3606 = vmatpush1.bf16.msra.mxu0 %v2597
    %3607 = vmatprep.subr.bf16.mxu0 %v2590
    %3608 = vmatpush1.bf16.msra.mxu0 %v2589
    %3609 = vmatprep.subr.bf16.mxu0 %v2582
    %3610 = vmatpush1.bf16.msra.mxu0 %v2581
    %3611 = vmatprep.subr.bf16.mxu0 %v2574
    %3612 = vmatpush1.bf16.msra.mxu0 %v2573
    %3613 = vmatprep.subr.bf16.mxu0 %v2694
    %3614 = vmatpush2.bf16.msra.mxu0 %v2693
    %3615 = vmatprep.subr.bf16.mxu0 %v2686
    %3616 = vmatpush2.bf16.msra.mxu0 %v2685
    %3617 = vmatprep.subr.bf16.mxu0 %v2678
    %3618 = vmatpush2.bf16.msra.mxu0 %v2677
    %3619 = vmatprep.subr.bf16.mxu0 %v2670
    %3620 = vmatpush2.bf16.msra.mxu0 %v2669
    %3621 = vmatprep.subr.bf16.mxu0 %v2662
    %3622 = vmatpush2.bf16.msra.mxu0 %v2661
    %3623 = vmatprep.subr.bf16.mxu0 %v2654
    %3624 = vmatpush2.bf16.msra.mxu0 %v2653
    %3625 = vmatprep.subr.bf16.mxu0 %v2646
    %3626 = vmatpush2.bf16.msra.mxu0 %v2645
    %3627 = vmatprep.subr.bf16.mxu0 %v2638
    %3628 = vmatpush2.bf16.msra.mxu0 %v2637
    %3629 = vmatprep.mubr.bf16.mxu0 %v476
    %3630 = vmatmul.mubr.bf16.gmra.mxu0 %v475
    %v3631 = vpop.f32.mrf.mxu0
    %v3632 = vadd.f32 %v1000, %v3631
    %v3633 = vpop.f32.mrf.mxu0
    %v3634 = vadd.f32 %v1004, %v3633
    %v3635 = vpop.f32.mrf.mxu0
    %v3636 = vadd.f32 %v1000, %v3635
    %v3637 = vpop.f32.mrf.mxu0
    %v3638 = vadd.f32 %v1004, %v3637
    %3639 = vdwg.mxu0
    %3640 = vmatprep.subr.bf16.mxu0 %v2758
    %3641 = vmatpush1.bf16.msra.mxu0 %v2757
    %3642 = vmatprep.subr.bf16.mxu0 %v2750
    %3643 = vmatpush1.bf16.msra.mxu0 %v2749
    %3644 = vmatprep.subr.bf16.mxu0 %v2742
    %3645 = vmatpush1.bf16.msra.mxu0 %v2741
    %3646 = vmatprep.subr.bf16.mxu0 %v2734
    %3647 = vmatpush1.bf16.msra.mxu0 %v2733
    %3648 = vmatprep.subr.bf16.mxu0 %v2726
    %3649 = vmatpush1.bf16.msra.mxu0 %v2725
    %3650 = vmatprep.subr.bf16.mxu0 %v2718
    %3651 = vmatpush1.bf16.msra.mxu0 %v2717
    %3652 = vmatprep.subr.bf16.mxu0 %v2710
    %3653 = vmatpush1.bf16.msra.mxu0 %v2709
    %3654 = vmatprep.subr.bf16.mxu0 %v2702
    %3655 = vmatpush1.bf16.msra.mxu0 %v2701
    %3656 = vmatprep.subr.bf16.mxu0 %v2822
    %3657 = vmatpush2.bf16.msra.mxu0 %v2821
    %3658 = vmatprep.subr.bf16.mxu0 %v2814
    %3659 = vmatpush2.bf16.msra.mxu0 %v2813
    %3660 = vmatprep.subr.bf16.mxu0 %v2806
    %3661 = vmatpush2.bf16.msra.mxu0 %v2805
    %3662 = vmatprep.subr.bf16.mxu0 %v2798
    %3663 = vmatpush2.bf16.msra.mxu0 %v2797
    %3664 = vmatprep.subr.bf16.mxu0 %v2790
    %3665 = vmatpush2.bf16.msra.mxu0 %v2789
    %3666 = vmatprep.subr.bf16.mxu0 %v2782
    %3667 = vmatpush2.bf16.msra.mxu0 %v2781
    %3668 = vmatprep.subr.bf16.mxu0 %v2774
    %3669 = vmatpush2.bf16.msra.mxu0 %v2773
    %3670 = vmatprep.subr.bf16.mxu0 %v2766
    %3671 = vmatpush2.bf16.msra.mxu0 %v2765
    %3672 = vmatprep.mubr.bf16.mxu0 %v478
    %3673 = vmatmul.mubr.bf16.gmra.mxu0 %v477
    %v3674 = vpop.f32.mrf.mxu0
    %v3675 = vadd.f32 %v3632, %v3674
    %v3676 = vpop.f32.mrf.mxu0
    %v3677 = vadd.f32 %v3634, %v3676
    %v3678 = vpop.f32.mrf.mxu0
    %v3679 = vadd.f32 %v3636, %v3678
    %v3680 = vpop.f32.mrf.mxu0
    %v3681 = vadd.f32 %v3638, %v3680
    %3682 = vdwg.mxu0
    %3683 = vmatprep.subr.bf16.mxu0 %v2886
    %3684 = vmatpush1.bf16.msra.mxu0 %v2885
    %3685 = vmatprep.subr.bf16.mxu0 %v2878
    %3686 = vmatpush1.bf16.msra.mxu0 %v2877
    %3687 = vmatprep.subr.bf16.mxu0 %v2870
    %3688 = vmatpush1.bf16.msra.mxu0 %v2869
    %3689 = vmatprep.subr.bf16.mxu0 %v2862
    %3690 = vmatpush1.bf16.msra.mxu0 %v2861
    %3691 = vmatprep.subr.bf16.mxu0 %v2854
    %3692 = vmatpush1.bf16.msra.mxu0 %v2853
    %3693 = vmatprep.subr.bf16.mxu0 %v2846
    %3694 = vmatpush1.bf16.msra.mxu0 %v2845
    %3695 = vmatprep.subr.bf16.mxu0 %v2838
    %3696 = vmatpush1.bf16.msra.mxu0 %v2837
    %3697 = vmatprep.subr.bf16.mxu0 %v2830
    %3698 = vmatpush1.bf16.msra.mxu0 %v2829
    %3699 = vmatprep.subr.bf16.mxu0 %v2950
    %3700 = vmatpush2.bf16.msra.mxu0 %v2949
    %3701 = vmatprep.subr.bf16.mxu0 %v2942
    %3702 = vmatpush2.bf16.msra.mxu0 %v2941
    %3703 = vmatprep.subr.bf16.mxu0 %v2934
    %3704 = vmatpush2.bf16.msra.mxu0 %v2933
    %3705 = vmatprep.subr.bf16.mxu0 %v2926
    %3706 = vmatpush2.bf16.msra.mxu0 %v2925
    %3707 = vmatprep.subr.bf16.mxu0 %v2918
    %3708 = vmatpush2.bf16.msra.mxu0 %v2917
    %3709 = vmatprep.subr.bf16.mxu0 %v2910
    %3710 = vmatpush2.bf16.msra.mxu0 %v2909
    %3711 = vmatprep.subr.bf16.mxu0 %v2902
    %3712 = vmatpush2.bf16.msra.mxu0 %v2901
    %3713 = vmatprep.subr.bf16.mxu0 %v2894
    %3714 = vmatpush2.bf16.msra.mxu0 %v2893
    %3715 = vmatprep.mubr.bf16.mxu0 %v480
    %3716 = vmatmul.mubr.bf16.gmra.mxu0 %v479
    %v3717 = vpop.f32.mrf.mxu0
    %v3718 = vadd.f32 %v3675, %v3717
    %v3719 = vpop.f32.mrf.mxu0
    %v3720 = vadd.f32 %v3677, %v3719
    %v3721 = vpop.f32.mrf.mxu0
    %v3722 = vadd.f32 %v3679, %v3721
    %v3723 = vpop.f32.mrf.mxu0
    %v3724 = vadd.f32 %v3681, %v3723
    %3725 = vdwg.mxu0
    %3726 = vmatprep.subr.bf16.mxu0 %v3014
    %3727 = vmatpush1.bf16.msra.mxu0 %v3013
    %3728 = vmatprep.subr.bf16.mxu0 %v3006
    %3729 = vmatpush1.bf16.msra.mxu0 %v3005
    %3730 = vmatprep.subr.bf16.mxu0 %v2998
    %3731 = vmatpush1.bf16.msra.mxu0 %v2997
    %3732 = vmatprep.subr.bf16.mxu0 %v2990
    %3733 = vmatpush1.bf16.msra.mxu0 %v2989
    %3734 = vmatprep.subr.bf16.mxu0 %v2982
    %3735 = vmatpush1.bf16.msra.mxu0 %v2981
    %3736 = vmatprep.subr.bf16.mxu0 %v2974
    %3737 = vmatpush1.bf16.msra.mxu0 %v2973
    %3738 = vmatprep.subr.bf16.mxu0 %v2966
    %3739 = vmatpush1.bf16.msra.mxu0 %v2965
    %3740 = vmatprep.subr.bf16.mxu0 %v2958
    %3741 = vmatpush1.bf16.msra.mxu0 %v2957
    %3742 = vmatprep.subr.bf16.mxu0 %v3078
    %3743 = vmatpush2.bf16.msra.mxu0 %v3077
    %3744 = vmatprep.subr.bf16.mxu0 %v3070
    %3745 = vmatpush2.bf16.msra.mxu0 %v3069
    %3746 = vmatprep.subr.bf16.mxu0 %v3062
    %3747 = vmatpush2.bf16.msra.mxu0 %v3061
    %3748 = vmatprep.subr.bf16.mxu0 %v3054
    %3749 = vmatpush2.bf16.msra.mxu0 %v3053
    %3750 = vmatprep.subr.bf16.mxu0 %v3046
    %3751 = vmatpush2.bf16.msra.mxu0 %v3045
    %3752 = vmatprep.subr.bf16.mxu0 %v3038
    %3753 = vmatpush2.bf16.msra.mxu0 %v3037
    %3754 = vmatprep.subr.bf16.mxu0 %v3030
    %3755 = vmatpush2.bf16.msra.mxu0 %v3029
    %3756 = vmatprep.subr.bf16.mxu0 %v3022
    %3757 = vmatpush2.bf16.msra.mxu0 %v3021
    %3758 = vmatprep.mubr.bf16.mxu0 %v482
    %3759 = vmatmul.mubr.bf16.gmra.mxu0 %v481
    %v3760 = vpop.f32.mrf.mxu0
    %v3761 = vadd.f32 %v3718, %v3760
    %v3762 = vpop.f32.mrf.mxu0
    %v3763 = vadd.f32 %v3720, %v3762
    %v3764 = vpop.f32.mrf.mxu0
    %v3765 = vadd.f32 %v3722, %v3764
    %v3766 = vpop.f32.mrf.mxu0
    %v3767 = vadd.f32 %v3724, %v3766
    %3768 = vdwg.mxu0
    %3769 = vmatprep.subr.bf16.mxu0 %v2632
    %3770 = vmatpush1.bf16.msra.mxu0 %v2631
    %3771 = vmatprep.subr.bf16.mxu0 %v2624
    %3772 = vmatpush1.bf16.msra.mxu0 %v2623
    %3773 = vmatprep.subr.bf16.mxu0 %v2616
    %3774 = vmatpush1.bf16.msra.mxu0 %v2615
    %3775 = vmatprep.subr.bf16.mxu0 %v2608
    %3776 = vmatpush1.bf16.msra.mxu0 %v2607
    %3777 = vmatprep.subr.bf16.mxu0 %v2600
    %3778 = vmatpush1.bf16.msra.mxu0 %v2599
    %3779 = vmatprep.subr.bf16.mxu0 %v2592
    %3780 = vmatpush1.bf16.msra.mxu0 %v2591
    %3781 = vmatprep.subr.bf16.mxu0 %v2584
    %3782 = vmatpush1.bf16.msra.mxu0 %v2583
    %3783 = vmatprep.subr.bf16.mxu0 %v2576
    %3784 = vmatpush1.bf16.msra.mxu0 %v2575
    %3785 = vmatprep.subr.bf16.mxu0 %v2696
    %3786 = vmatpush2.bf16.msra.mxu0 %v2695
    %3787 = vmatprep.subr.bf16.mxu0 %v2688
    %3788 = vmatpush2.bf16.msra.mxu0 %v2687
    %3789 = vmatprep.subr.bf16.mxu0 %v2680
    %3790 = vmatpush2.bf16.msra.mxu0 %v2679
    %3791 = vmatprep.subr.bf16.mxu0 %v2672
    %3792 = vmatpush2.bf16.msra.mxu0 %v2671
    %3793 = vmatprep.subr.bf16.mxu0 %v2664
    %3794 = vmatpush2.bf16.msra.mxu0 %v2663
    %3795 = vmatprep.subr.bf16.mxu0 %v2656
    %3796 = vmatpush2.bf16.msra.mxu0 %v2655
    %3797 = vmatprep.subr.bf16.mxu0 %v2648
    %3798 = vmatpush2.bf16.msra.mxu0 %v2647
    %3799 = vmatprep.subr.bf16.mxu0 %v2640
    %3800 = vmatpush2.bf16.msra.mxu0 %v2639
    %3801 = vmatprep.mubr.bf16.mxu0 %v476
    %3802 = vmatmul.mubr.bf16.gmra.mxu0 %v475
    %v3803 = vpop.f32.mrf.mxu0
    %v3804 = vadd.f32 %v1008, %v3803
    %v3805 = vpop.f32.mrf.mxu0
    %v3806 = vadd.f32 %v1012, %v3805
    %v3807 = vpop.f32.mrf.mxu0
    %v3808 = vadd.f32 %v1008, %v3807
    %v3809 = vpop.f32.mrf.mxu0
    %v3810 = vadd.f32 %v1012, %v3809
    %3811 = vdwg.mxu0
    %3812 = vmatprep.subr.bf16.mxu0 %v2760
    %3813 = vmatpush1.bf16.msra.mxu0 %v2759
    %3814 = vmatprep.subr.bf16.mxu0 %v2752
    %3815 = vmatpush1.bf16.msra.mxu0 %v2751
    %3816 = vmatprep.subr.bf16.mxu0 %v2744
    %3817 = vmatpush1.bf16.msra.mxu0 %v2743
    %3818 = vmatprep.subr.bf16.mxu0 %v2736
    %3819 = vmatpush1.bf16.msra.mxu0 %v2735
    %3820 = vmatprep.subr.bf16.mxu0 %v2728
    %3821 = vmatpush1.bf16.msra.mxu0 %v2727
    %3822 = vmatprep.subr.bf16.mxu0 %v2720
    %3823 = vmatpush1.bf16.msra.mxu0 %v2719
    %3824 = vmatprep.subr.bf16.mxu0 %v2712
    %3825 = vmatpush1.bf16.msra.mxu0 %v2711
    %3826 = vmatprep.subr.bf16.mxu0 %v2704
    %3827 = vmatpush1.bf16.msra.mxu0 %v2703
    %3828 = vmatprep.subr.bf16.mxu0 %v2824
    %3829 = vmatpush2.bf16.msra.mxu0 %v2823
    %3830 = vmatprep.subr.bf16.mxu0 %v2816
    %3831 = vmatpush2.bf16.msra.mxu0 %v2815
    %3832 = vmatprep.subr.bf16.mxu0 %v2808
    %3833 = vmatpush2.bf16.msra.mxu0 %v2807
    %3834 = vmatprep.subr.bf16.mxu0 %v2800
    %3835 = vmatpush2.bf16.msra.mxu0 %v2799
    %3836 = vmatprep.subr.bf16.mxu0 %v2792
    %3837 = vmatpush2.bf16.msra.mxu0 %v2791
    %3838 = vmatprep.subr.bf16.mxu0 %v2784
    %3839 = vmatpush2.bf16.msra.mxu0 %v2783
    %3840 = vmatprep.subr.bf16.mxu0 %v2776
    %3841 = vmatpush2.bf16.msra.mxu0 %v2775
    %3842 = vmatprep.subr.bf16.mxu0 %v2768
    %3843 = vmatpush2.bf16.msra.mxu0 %v2767
    %3844 = vmatprep.mubr.bf16.mxu0 %v478
    %3845 = vmatmul.mubr.bf16.gmra.mxu0 %v477
    %v3846 = vpop.f32.mrf.mxu0
    %v3847 = vadd.f32 %v3804, %v3846
    %v3848 = vpop.f32.mrf.mxu0
    %v3849 = vadd.f32 %v3806, %v3848
    %v3850 = vpop.f32.mrf.mxu0
    %v3851 = vadd.f32 %v3808, %v3850
    %v3852 = vpop.f32.mrf.mxu0
    %v3853 = vadd.f32 %v3810, %v3852
    %3854 = vdwg.mxu0
    %3855 = vmatprep.subr.bf16.mxu0 %v2888
    %3856 = vmatpush1.bf16.msra.mxu0 %v2887
    %3857 = vmatprep.subr.bf16.mxu0 %v2880
    %3858 = vmatpush1.bf16.msra.mxu0 %v2879
    %3859 = vmatprep.subr.bf16.mxu0 %v2872
    %3860 = vmatpush1.bf16.msra.mxu0 %v2871
    %3861 = vmatprep.subr.bf16.mxu0 %v2864
    %3862 = vmatpush1.bf16.msra.mxu0 %v2863
    %3863 = vmatprep.subr.bf16.mxu0 %v2856
    %3864 = vmatpush1.bf16.msra.mxu0 %v2855
    %3865 = vmatprep.subr.bf16.mxu0 %v2848
    %3866 = vmatpush1.bf16.msra.mxu0 %v2847
    %3867 = vmatprep.subr.bf16.mxu0 %v2840
    %3868 = vmatpush1.bf16.msra.mxu0 %v2839
    %3869 = vmatprep.subr.bf16.mxu0 %v2832
    %3870 = vmatpush1.bf16.msra.mxu0 %v2831
    %3871 = vmatprep.subr.bf16.mxu0 %v2952
    %3872 = vmatpush2.bf16.msra.mxu0 %v2951
    %3873 = vmatprep.subr.bf16.mxu0 %v2944
    %3874 = vmatpush2.bf16.msra.mxu0 %v2943
    %3875 = vmatprep.subr.bf16.mxu0 %v2936
    %3876 = vmatpush2.bf16.msra.mxu0 %v2935
    %3877 = vmatprep.subr.bf16.mxu0 %v2928
    %3878 = vmatpush2.bf16.msra.mxu0 %v2927
    %3879 = vmatprep.subr.bf16.mxu0 %v2920
    %3880 = vmatpush2.bf16.msra.mxu0 %v2919
    %3881 = vmatprep.subr.bf16.mxu0 %v2912
    %3882 = vmatpush2.bf16.msra.mxu0 %v2911
    %3883 = vmatprep.subr.bf16.mxu0 %v2904
    %3884 = vmatpush2.bf16.msra.mxu0 %v2903
    %3885 = vmatprep.subr.bf16.mxu0 %v2896
    %3886 = vmatpush2.bf16.msra.mxu0 %v2895
    %3887 = vmatprep.mubr.bf16.mxu0 %v480
    %3888 = vmatmul.mubr.bf16.gmra.mxu0 %v479
    %v3889 = vpop.f32.mrf.mxu0
    %v3890 = vadd.f32 %v3847, %v3889
    %v3891 = vpop.f32.mrf.mxu0
    %v3892 = vadd.f32 %v3849, %v3891
    %v3893 = vpop.f32.mrf.mxu0
    %v3894 = vadd.f32 %v3851, %v3893
    %v3895 = vpop.f32.mrf.mxu0
    %v3896 = vadd.f32 %v3853, %v3895
    %3897 = vdwg.mxu0
    %3898 = vmatprep.subr.bf16.mxu0 %v3016
    %3899 = vmatpush1.bf16.msra.mxu0 %v3015
    %3900 = vmatprep.subr.bf16.mxu0 %v3008
    %3901 = vmatpush1.bf16.msra.mxu0 %v3007
    %3902 = vmatprep.subr.bf16.mxu0 %v3000
    %3903 = vmatpush1.bf16.msra.mxu0 %v2999
    %3904 = vmatprep.subr.bf16.mxu0 %v2992
    %3905 = vmatpush1.bf16.msra.mxu0 %v2991
    %3906 = vmatprep.subr.bf16.mxu0 %v2984
    %3907 = vmatpush1.bf16.msra.mxu0 %v2983
    %3908 = vmatprep.subr.bf16.mxu0 %v2976
    %3909 = vmatpush1.bf16.msra.mxu0 %v2975
    %3910 = vmatprep.subr.bf16.mxu0 %v2968
    %3911 = vmatpush1.bf16.msra.mxu0 %v2967
    %3912 = vmatprep.subr.bf16.mxu0 %v2960
    %3913 = vmatpush1.bf16.msra.mxu0 %v2959
    %3914 = vmatprep.subr.bf16.mxu0 %v3080
    %3915 = vmatpush2.bf16.msra.mxu0 %v3079
    %3916 = vmatprep.subr.bf16.mxu0 %v3072
    %3917 = vmatpush2.bf16.msra.mxu0 %v3071
    %3918 = vmatprep.subr.bf16.mxu0 %v3064
    %3919 = vmatpush2.bf16.msra.mxu0 %v3063
    %3920 = vmatprep.subr.bf16.mxu0 %v3056
    %3921 = vmatpush2.bf16.msra.mxu0 %v3055
    %3922 = vmatprep.subr.bf16.mxu0 %v3048
    %3923 = vmatpush2.bf16.msra.mxu0 %v3047
    %3924 = vmatprep.subr.bf16.mxu0 %v3040
    %3925 = vmatpush2.bf16.msra.mxu0 %v3039
    %3926 = vmatprep.subr.bf16.mxu0 %v3032
    %3927 = vmatpush2.bf16.msra.mxu0 %v3031
    %3928 = vmatprep.subr.bf16.mxu0 %v3024
    %3929 = vmatpush2.bf16.msra.mxu0 %v3023
    %3930 = vmatprep.mubr.bf16.mxu0 %v482
    %3931 = vmatmul.mubr.bf16.gmra.mxu0 %v481
    %v3932 = vpop.f32.mrf.mxu0
    %v3933 = vadd.f32 %v3890, %v3932
    %v3934 = vpop.f32.mrf.mxu0
    %v3935 = vadd.f32 %v3892, %v3934
    %v3936 = vpop.f32.mrf.mxu0
    %v3937 = vadd.f32 %v3894, %v3936
    %v3938 = vpop.f32.mrf.mxu0
    %v3939 = vadd.f32 %v3896, %v3938
    %3940 = vdwg.mxu0
    %3941 = vmatprep.subr.bf16.mxu0 %v2634
    %3942 = vmatpush1.bf16.msra.mxu0 %v2633
    %3943 = vmatprep.subr.bf16.mxu0 %v2626
    %3944 = vmatpush1.bf16.msra.mxu0 %v2625
    %3945 = vmatprep.subr.bf16.mxu0 %v2618
    %3946 = vmatpush1.bf16.msra.mxu0 %v2617
    %3947 = vmatprep.subr.bf16.mxu0 %v2610
    %3948 = vmatpush1.bf16.msra.mxu0 %v2609
    %3949 = vmatprep.subr.bf16.mxu0 %v2602
    %3950 = vmatpush1.bf16.msra.mxu0 %v2601
    %3951 = vmatprep.subr.bf16.mxu0 %v2594
    %3952 = vmatpush1.bf16.msra.mxu0 %v2593
    %3953 = vmatprep.subr.bf16.mxu0 %v2586
    %3954 = vmatpush1.bf16.msra.mxu0 %v2585
    %3955 = vmatprep.subr.bf16.mxu0 %v2578
    %3956 = vmatpush1.bf16.msra.mxu0 %v2577
    %3957 = vmatprep.subr.bf16.mxu0 %v2698
    %3958 = vmatpush2.bf16.msra.mxu0 %v2697
    %3959 = vmatprep.subr.bf16.mxu0 %v2690
    %3960 = vmatpush2.bf16.msra.mxu0 %v2689
    %3961 = vmatprep.subr.bf16.mxu0 %v2682
    %3962 = vmatpush2.bf16.msra.mxu0 %v2681
    %3963 = vmatprep.subr.bf16.mxu0 %v2674
    %3964 = vmatpush2.bf16.msra.mxu0 %v2673
    %3965 = vmatprep.subr.bf16.mxu0 %v2666
    %3966 = vmatpush2.bf16.msra.mxu0 %v2665
    %3967 = vmatprep.subr.bf16.mxu0 %v2658
    %3968 = vmatpush2.bf16.msra.mxu0 %v2657
    %3969 = vmatprep.subr.bf16.mxu0 %v2650
    %3970 = vmatpush2.bf16.msra.mxu0 %v2649
    %3971 = vmatprep.subr.bf16.mxu0 %v2642
    %3972 = vmatpush2.bf16.msra.mxu0 %v2641
    %3973 = vmatprep.mubr.bf16.mxu0 %v476
    %3974 = vmatmul.mubr.bf16.gmra.mxu0 %v475
    %v3975 = vpop.f32.mrf.mxu0
    %v3976 = vadd.f32 %v1016, %v3975
    %v3977 = vpop.f32.mrf.mxu0
    %v3978 = vadd.f32 %v1020, %v3977
    %v3979 = vpop.f32.mrf.mxu0
    %v3980 = vadd.f32 %v1016, %v3979
    %v3981 = vpop.f32.mrf.mxu0
    %v3982 = vadd.f32 %v1020, %v3981
    %3983 = vdwg.mxu0
    %3984 = vmatprep.subr.bf16.mxu0 %v2762
    %3985 = vmatpush1.bf16.msra.mxu0 %v2761
    %3986 = vmatprep.subr.bf16.mxu0 %v2754
    %3987 = vmatpush1.bf16.msra.mxu0 %v2753
    %3988 = vmatprep.subr.bf16.mxu0 %v2746
    %3989 = vmatpush1.bf16.msra.mxu0 %v2745
    %3990 = vmatprep.subr.bf16.mxu0 %v2738
    %3991 = vmatpush1.bf16.msra.mxu0 %v2737
    %3992 = vmatprep.subr.bf16.mxu0 %v2730
    %3993 = vmatpush1.bf16.msra.mxu0 %v2729
    %3994 = vmatprep.subr.bf16.mxu0 %v2722
    %3995 = vmatpush1.bf16.msra.mxu0 %v2721
    %3996 = vmatprep.subr.bf16.mxu0 %v2714
    %3997 = vmatpush1.bf16.msra.mxu0 %v2713
    %3998 = vmatprep.subr.bf16.mxu0 %v2706
    %3999 = vmatpush1.bf16.msra.mxu0 %v2705
    %4000 = vmatprep.subr.bf16.mxu0 %v2826
    %4001 = vmatpush2.bf16.msra.mxu0 %v2825
    %4002 = vmatprep.subr.bf16.mxu0 %v2818
    %4003 = vmatpush2.bf16.msra.mxu0 %v2817
    %4004 = vmatprep.subr.bf16.mxu0 %v2810
    %4005 = vmatpush2.bf16.msra.mxu0 %v2809
    %4006 = vmatprep.subr.bf16.mxu0 %v2802
    %4007 = vmatpush2.bf16.msra.mxu0 %v2801
    %4008 = vmatprep.subr.bf16.mxu0 %v2794
    %4009 = vmatpush2.bf16.msra.mxu0 %v2793
    %4010 = vmatprep.subr.bf16.mxu0 %v2786
    %4011 = vmatpush2.bf16.msra.mxu0 %v2785
    %4012 = vmatprep.subr.bf16.mxu0 %v2778
    %4013 = vmatpush2.bf16.msra.mxu0 %v2777
    %4014 = vmatprep.subr.bf16.mxu0 %v2770
    %4015 = vmatpush2.bf16.msra.mxu0 %v2769
    %4016 = vmatprep.mubr.bf16.mxu0 %v478
    %4017 = vmatmul.mubr.bf16.gmra.mxu0 %v477
    %v4018 = vpop.f32.mrf.mxu0
    %v4019 = vadd.f32 %v3976, %v4018
    %v4020 = vpop.f32.mrf.mxu0
    %v4021 = vadd.f32 %v3978, %v4020
    %v4022 = vpop.f32.mrf.mxu0
    %v4023 = vadd.f32 %v3980, %v4022
    %v4024 = vpop.f32.mrf.mxu0
    %v4025 = vadd.f32 %v3982, %v4024
    %4026 = vdwg.mxu0
    %4027 = vmatprep.subr.bf16.mxu0 %v2890
    %4028 = vmatpush1.bf16.msra.mxu0 %v2889
    %4029 = vmatprep.subr.bf16.mxu0 %v2882
    %4030 = vmatpush1.bf16.msra.mxu0 %v2881
    %4031 = vmatprep.subr.bf16.mxu0 %v2874
    %4032 = vmatpush1.bf16.msra.mxu0 %v2873
    %4033 = vmatprep.subr.bf16.mxu0 %v2866
    %4034 = vmatpush1.bf16.msra.mxu0 %v2865
    %4035 = vmatprep.subr.bf16.mxu0 %v2858
    %4036 = vmatpush1.bf16.msra.mxu0 %v2857
    %4037 = vmatprep.subr.bf16.mxu0 %v2850
    %4038 = vmatpush1.bf16.msra.mxu0 %v2849
    %4039 = vmatprep.subr.bf16.mxu0 %v2842
    %4040 = vmatpush1.bf16.msra.mxu0 %v2841
    %4041 = vmatprep.subr.bf16.mxu0 %v2834
    %4042 = vmatpush1.bf16.msra.mxu0 %v2833
    %4043 = vmatprep.subr.bf16.mxu0 %v2954
    %4044 = vmatpush2.bf16.msra.mxu0 %v2953
    %4045 = vmatprep.subr.bf16.mxu0 %v2946
    %4046 = vmatpush2.bf16.msra.mxu0 %v2945
    %4047 = vmatprep.subr.bf16.mxu0 %v2938
    %4048 = vmatpush2.bf16.msra.mxu0 %v2937
    %4049 = vmatprep.subr.bf16.mxu0 %v2930
    %4050 = vmatpush2.bf16.msra.mxu0 %v2929
    %4051 = vmatprep.subr.bf16.mxu0 %v2922
    %4052 = vmatpush2.bf16.msra.mxu0 %v2921
    %4053 = vmatprep.subr.bf16.mxu0 %v2914
    %4054 = vmatpush2.bf16.msra.mxu0 %v2913
    %4055 = vmatprep.subr.bf16.mxu0 %v2906
    %4056 = vmatpush2.bf16.msra.mxu0 %v2905
    %4057 = vmatprep.subr.bf16.mxu0 %v2898
    %4058 = vmatpush2.bf16.msra.mxu0 %v2897
    %4059 = vmatprep.mubr.bf16.mxu0 %v480
    %4060 = vmatmul.mubr.bf16.gmra.mxu0 %v479
    %v4061 = vpop.f32.mrf.mxu0
    %v4062 = vadd.f32 %v4019, %v4061
    %v4063 = vpop.f32.mrf.mxu0
    %v4064 = vadd.f32 %v4021, %v4063
    %v4065 = vpop.f32.mrf.mxu0
    %v4066 = vadd.f32 %v4023, %v4065
    %v4067 = vpop.f32.mrf.mxu0
    %v4068 = vadd.f32 %v4025, %v4067
    %4069 = vdwg.mxu0
    %4070 = vmatprep.subr.bf16.mxu0 %v3018
    %4071 = vmatpush1.bf16.msra.mxu0 %v3017
    %4072 = vmatprep.subr.bf16.mxu0 %v3010
    %4073 = vmatpush1.bf16.msra.mxu0 %v3009
    %4074 = vmatprep.subr.bf16.mxu0 %v3002
    %4075 = vmatpush1.bf16.msra.mxu0 %v3001
    %4076 = vmatprep.subr.bf16.mxu0 %v2994
    %4077 = vmatpush1.bf16.msra.mxu0 %v2993
    %4078 = vmatprep.subr.bf16.mxu0 %v2986
    %4079 = vmatpush1.bf16.msra.mxu0 %v2985
    %4080 = vmatprep.subr.bf16.mxu0 %v2978
    %4081 = vmatpush1.bf16.msra.mxu0 %v2977
    %4082 = vmatprep.subr.bf16.mxu0 %v2970
    %4083 = vmatpush1.bf16.msra.mxu0 %v2969
    %4084 = vmatprep.subr.bf16.mxu0 %v2962
    %4085 = vmatpush1.bf16.msra.mxu0 %v2961
    %4086 = vmatprep.subr.bf16.mxu0 %v3082
    %4087 = vmatpush2.bf16.msra.mxu0 %v3081
    %4088 = vmatprep.subr.bf16.mxu0 %v3074
    %4089 = vmatpush2.bf16.msra.mxu0 %v3073
    %4090 = vmatprep.subr.bf16.mxu0 %v3066
    %4091 = vmatpush2.bf16.msra.mxu0 %v3065
    %4092 = vmatprep.subr.bf16.mxu0 %v3058
    %4093 = vmatpush2.bf16.msra.mxu0 %v3057
    %4094 = vmatprep.subr.bf16.mxu0 %v3050
    %4095 = vmatpush2.bf16.msra.mxu0 %v3049
    %4096 = vmatprep.subr.bf16.mxu0 %v3042
    %4097 = vmatpush2.bf16.msra.mxu0 %v3041
    %4098 = vmatprep.subr.bf16.mxu0 %v3034
    %4099 = vmatpush2.bf16.msra.mxu0 %v3033
    %4100 = vmatprep.subr.bf16.mxu0 %v3026
    %4101 = vmatpush2.bf16.msra.mxu0 %v3025
    %4102 = vmatprep.mubr.bf16.mxu0 %v482
    %4103 = vmatmul.mubr.bf16.gmra.mxu0 %v481
    %v4104 = vpop.f32.mrf.mxu0
    %v4105 = vadd.f32 %v4062, %v4104
    %v4106 = vpop.f32.mrf.mxu0
    %v4107 = vadd.f32 %v4064, %v4106
    %v4108 = vpop.f32.mrf.mxu0
    %v4109 = vadd.f32 %v4066, %v4108
    %v4110 = vpop.f32.mrf.mxu0
    %v4111 = vadd.f32 %v4068, %v4110
    %4112 = vdwg.mxu0
    %4113 = vmatprep.subr.bf16.mxu0 %v2636
    %4114 = vmatpush1.bf16.msra.mxu0 %v2635
    %4115 = vmatprep.subr.bf16.mxu0 %v2628
    %4116 = vmatpush1.bf16.msra.mxu0 %v2627
    %4117 = vmatprep.subr.bf16.mxu0 %v2620
    %4118 = vmatpush1.bf16.msra.mxu0 %v2619
    %4119 = vmatprep.subr.bf16.mxu0 %v2612
    %4120 = vmatpush1.bf16.msra.mxu0 %v2611
    %4121 = vmatprep.subr.bf16.mxu0 %v2604
    %4122 = vmatpush1.bf16.msra.mxu0 %v2603
    %4123 = vmatprep.subr.bf16.mxu0 %v2596
    %4124 = vmatpush1.bf16.msra.mxu0 %v2595
    %4125 = vmatprep.subr.bf16.mxu0 %v2588
    %4126 = vmatpush1.bf16.msra.mxu0 %v2587
    %4127 = vmatprep.subr.bf16.mxu0 %v2580
    %4128 = vmatpush1.bf16.msra.mxu0 %v2579
    %4129 = vmatprep.subr.bf16.mxu0 %v2700
    %4130 = vmatpush2.bf16.msra.mxu0 %v2699
    %4131 = vmatprep.subr.bf16.mxu0 %v2692
    %4132 = vmatpush2.bf16.msra.mxu0 %v2691
    %4133 = vmatprep.subr.bf16.mxu0 %v2684
    %4134 = vmatpush2.bf16.msra.mxu0 %v2683
    %4135 = vmatprep.subr.bf16.mxu0 %v2676
    %4136 = vmatpush2.bf16.msra.mxu0 %v2675
    %4137 = vmatprep.subr.bf16.mxu0 %v2668
    %4138 = vmatpush2.bf16.msra.mxu0 %v2667
    %4139 = vmatprep.subr.bf16.mxu0 %v2660
    %4140 = vmatpush2.bf16.msra.mxu0 %v2659
    %4141 = vmatprep.subr.bf16.mxu0 %v2652
    %4142 = vmatpush2.bf16.msra.mxu0 %v2651
    %4143 = vmatprep.subr.bf16.mxu0 %v2644
    %4144 = vmatpush2.bf16.msra.mxu0 %v2643
    %4145 = vmatprep.mubr.bf16.mxu0 %v476
    %4146 = vmatmul.mubr.bf16.gmra.mxu0 %v475
    %v4147 = vpop.f32.mrf.mxu0
    %v4148 = vadd.f32 %v1024, %v4147
    %v4149 = vpop.f32.mrf.mxu0
    %v4150 = vadd.f32 %v1028, %v4149
    %v4151 = vpop.f32.mrf.mxu0
    %v4152 = vadd.f32 %v1024, %v4151
    %v4153 = vpop.f32.mrf.mxu0
    %v4154 = vadd.f32 %v1028, %v4153
    %4155 = vdwg.mxu0
    %4156 = vmatprep.subr.bf16.mxu0 %v2764
    %4157 = vmatpush1.bf16.msra.mxu0 %v2763
    %4158 = vmatprep.subr.bf16.mxu0 %v2756
    %4159 = vmatpush1.bf16.msra.mxu0 %v2755
    %4160 = vmatprep.subr.bf16.mxu0 %v2748
    %4161 = vmatpush1.bf16.msra.mxu0 %v2747
    %4162 = vmatprep.subr.bf16.mxu0 %v2740
    %4163 = vmatpush1.bf16.msra.mxu0 %v2739
    %4164 = vmatprep.subr.bf16.mxu0 %v2732
    %4165 = vmatpush1.bf16.msra.mxu0 %v2731
    %4166 = vmatprep.subr.bf16.mxu0 %v2724
    %4167 = vmatpush1.bf16.msra.mxu0 %v2723
    %4168 = vmatprep.subr.bf16.mxu0 %v2716
    %4169 = vmatpush1.bf16.msra.mxu0 %v2715
    %4170 = vmatprep.subr.bf16.mxu0 %v2708
    %4171 = vmatpush1.bf16.msra.mxu0 %v2707
    %4172 = vmatprep.subr.bf16.mxu0 %v2828
    %4173 = vmatpush2.bf16.msra.mxu0 %v2827
    %4174 = vmatprep.subr.bf16.mxu0 %v2820
    %4175 = vmatpush2.bf16.msra.mxu0 %v2819
    %4176 = vmatprep.subr.bf16.mxu0 %v2812
    %4177 = vmatpush2.bf16.msra.mxu0 %v2811
    %4178 = vmatprep.subr.bf16.mxu0 %v2804
    %4179 = vmatpush2.bf16.msra.mxu0 %v2803
    %4180 = vmatprep.subr.bf16.mxu0 %v2796
    %4181 = vmatpush2.bf16.msra.mxu0 %v2795
    %4182 = vmatprep.subr.bf16.mxu0 %v2788
    %4183 = vmatpush2.bf16.msra.mxu0 %v2787
    %4184 = vmatprep.subr.bf16.mxu0 %v2780
    %4185 = vmatpush2.bf16.msra.mxu0 %v2779
    %4186 = vmatprep.subr.bf16.mxu0 %v2772
    %4187 = vmatpush2.bf16.msra.mxu0 %v2771
    %4188 = vmatprep.mubr.bf16.mxu0 %v478
    %4189 = vmatmul.mubr.bf16.gmra.mxu0 %v477
    %v4190 = vpop.f32.mrf.mxu0
    %v4191 = vadd.f32 %v4148, %v4190
    %v4192 = vpop.f32.mrf.mxu0
    %v4193 = vadd.f32 %v4150, %v4192
    %v4194 = vpop.f32.mrf.mxu0
    %v4195 = vadd.f32 %v4152, %v4194
    %v4196 = vpop.f32.mrf.mxu0
    %v4197 = vadd.f32 %v4154, %v4196
    %4198 = vdwg.mxu0
    %4199 = vmatprep.subr.bf16.mxu0 %v2892
    %4200 = vmatpush1.bf16.msra.mxu0 %v2891
    %4201 = vmatprep.subr.bf16.mxu0 %v2884
    %4202 = vmatpush1.bf16.msra.mxu0 %v2883
    %4203 = vmatprep.subr.bf16.mxu0 %v2876
    %4204 = vmatpush1.bf16.msra.mxu0 %v2875
    %4205 = vmatprep.subr.bf16.mxu0 %v2868
    %4206 = vmatpush1.bf16.msra.mxu0 %v2867
    %4207 = vmatprep.subr.bf16.mxu0 %v2860
    %4208 = vmatpush1.bf16.msra.mxu0 %v2859
    %4209 = vmatprep.subr.bf16.mxu0 %v2852
    %4210 = vmatpush1.bf16.msra.mxu0 %v2851
    %4211 = vmatprep.subr.bf16.mxu0 %v2844
    %4212 = vmatpush1.bf16.msra.mxu0 %v2843
    %4213 = vmatprep.subr.bf16.mxu0 %v2836
    %4214 = vmatpush1.bf16.msra.mxu0 %v2835
    %4215 = vmatprep.subr.bf16.mxu0 %v2956
    %4216 = vmatpush2.bf16.msra.mxu0 %v2955
    %4217 = vmatprep.subr.bf16.mxu0 %v2948
    %4218 = vmatpush2.bf16.msra.mxu0 %v2947
    %4219 = vmatprep.subr.bf16.mxu0 %v2940
    %4220 = vmatpush2.bf16.msra.mxu0 %v2939
    %4221 = vmatprep.subr.bf16.mxu0 %v2932
    %4222 = vmatpush2.bf16.msra.mxu0 %v2931
    %4223 = vmatprep.subr.bf16.mxu0 %v2924
    %4224 = vmatpush2.bf16.msra.mxu0 %v2923
    %4225 = vmatprep.subr.bf16.mxu0 %v2916
    %4226 = vmatpush2.bf16.msra.mxu0 %v2915
    %4227 = vmatprep.subr.bf16.mxu0 %v2908
    %4228 = vmatpush2.bf16.msra.mxu0 %v2907
    %4229 = vmatprep.subr.bf16.mxu0 %v2900
    %4230 = vmatpush2.bf16.msra.mxu0 %v2899
    %4231 = vmatprep.mubr.bf16.mxu0 %v480
    %4232 = vmatmul.mubr.bf16.gmra.mxu0 %v479
    %v4233 = vpop.f32.mrf.mxu0
    %v4234 = vadd.f32 %v4191, %v4233
    %v4235 = vpop.f32.mrf.mxu0
    %v4236 = vadd.f32 %v4193, %v4235
    %v4237 = vpop.f32.mrf.mxu0
    %v4238 = vadd.f32 %v4195, %v4237
    %v4239 = vpop.f32.mrf.mxu0
    %v4240 = vadd.f32 %v4197, %v4239
    %4241 = vdwg.mxu0
    %4242 = vmatprep.subr.bf16.mxu0 %v3020
    %4243 = vmatpush1.bf16.msra.mxu0 %v3019
    %4244 = vmatprep.subr.bf16.mxu0 %v3012
    %4245 = vmatpush1.bf16.msra.mxu0 %v3011
    %4246 = vmatprep.subr.bf16.mxu0 %v3004
    %4247 = vmatpush1.bf16.msra.mxu0 %v3003
    %4248 = vmatprep.subr.bf16.mxu0 %v2996
    %4249 = vmatpush1.bf16.msra.mxu0 %v2995
    %4250 = vmatprep.subr.bf16.mxu0 %v2988
    %4251 = vmatpush1.bf16.msra.mxu0 %v2987
    %4252 = vmatprep.subr.bf16.mxu0 %v2980
    %4253 = vmatpush1.bf16.msra.mxu0 %v2979
    %4254 = vmatprep.subr.bf16.mxu0 %v2972
    %4255 = vmatpush1.bf16.msra.mxu0 %v2971
    %4256 = vmatprep.subr.bf16.mxu0 %v2964
    %4257 = vmatpush1.bf16.msra.mxu0 %v2963
    %4258 = vmatprep.subr.bf16.mxu0 %v3084
    %4259 = vmatpush2.bf16.msra.mxu0 %v3083
    %4260 = vmatprep.subr.bf16.mxu0 %v3076
    %4261 = vmatpush2.bf16.msra.mxu0 %v3075
    %4262 = vmatprep.subr.bf16.mxu0 %v3068
    %4263 = vmatpush2.bf16.msra.mxu0 %v3067
    %4264 = vmatprep.subr.bf16.mxu0 %v3060
    %4265 = vmatpush2.bf16.msra.mxu0 %v3059
    %4266 = vmatprep.subr.bf16.mxu0 %v3052
    %4267 = vmatpush2.bf16.msra.mxu0 %v3051
    %4268 = vmatprep.subr.bf16.mxu0 %v3044
    %4269 = vmatpush2.bf16.msra.mxu0 %v3043
    %4270 = vmatprep.subr.bf16.mxu0 %v3036
    %4271 = vmatpush2.bf16.msra.mxu0 %v3035
    %4272 = vmatprep.subr.bf16.mxu0 %v3028
    %4273 = vmatpush2.bf16.msra.mxu0 %v3027
    %4274 = vmatprep.mubr.bf16.mxu0 %v482
    %4275 = vmatmul.mubr.bf16.gmra.mxu0 %v481
    %v4276 = vpop.f32.mrf.mxu0
    %v4277 = vadd.f32 %v4234, %v4276
    %v4278 = vpop.f32.mrf.mxu0
    %v4279 = vadd.f32 %v4236, %v4278
    %v4280 = vpop.f32.mrf.mxu0
    %v4281 = vadd.f32 %v4238, %v4280
    %v4282 = vpop.f32.mrf.mxu0
    %v4283 = vadd.f32 %v4240, %v4282
    %4284 = vdwg.mxu0
    %v4285 = vmax.f32 %v3761, 0.0
    %v4286 = vmax.f32 %v3763, 0.0
    %v4287 = vmax.f32 %v3933, 0.0
    %v4288 = vmax.f32 %v3935, 0.0
    %v4289 = vmax.f32 %v4105, 0.0
    %v4290 = vmax.f32 %v4107, 0.0
    %v4291 = vmax.f32 %v4277, 0.0
    %v4292 = vmax.f32 %v4279, 0.0
    %v4293 = vmax.f32 %v3765, 0.0
    %v4294 = vmax.f32 %v3767, 0.0
    %v4295 = vmax.f32 %v3937, 0.0
    %v4296 = vmax.f32 %v3939, 0.0
    %v4297 = vmax.f32 %v4109, 0.0
    %v4298 = vmax.f32 %v4111, 0.0
    %v4299 = vmax.f32 %v4281, 0.0
    %v4300 = vmax.f32 %v4283, 0.0
    %v4301 = vpack.c.bf16 %v4293, %v4285
    %v4302 = vpack.c.bf16 %v4294, %v4286
    %v4303 = vpack.c.bf16 %v4295, %v4287
    %v4304 = vpack.c.bf16 %v4296, %v4288
    %v4305 = vpack.c.bf16 %v4297, %v4289
    %v4306 = vpack.c.bf16 %v4298, %v4290
    %v4307 = vpack.c.bf16 %v4299, %v4291
    %v4308 = vpack.c.bf16 %v4300, %v4292
    %v4309 = vld [vmem:[#allocation8] sm:$0xff]
    %v4310 = vld [vmem:[#allocation8 + $0x8] sm:$0xff]
    %v4311 = vld [vmem:[#allocation8 + $0x10] sm:$0xff]
    %v4312 = vld [vmem:[#allocation8 + $0x18] sm:$0xff]
    %v4313 = vld [vmem:[#allocation8 + $0x20] sm:$0xff]
    %v4314 = vld [vmem:[#allocation8 + $0x28] sm:$0xff]
    %v4315 = vld [vmem:[#allocation8 + $0x30] sm:$0xff]
    %v4316 = vld [vmem:[#allocation8 + $0x38] sm:$0xff]
    %v4317 = vld [vmem:[#allocation8 + $0x40] sm:$0xff]
    %v4318 = vld [vmem:[#allocation8 + $0x48] sm:$0xff]
    %v4319 = vld [vmem:[#allocation8 + $0x50] sm:$0xff]
    %v4320 = vld [vmem:[#allocation8 + $0x58] sm:$0xff]
    %v4321 = vld [vmem:[#allocation8 + $0x60] sm:$0xff]
    %v4322 = vld [vmem:[#allocation8 + $0x68] sm:$0xff]
    %v4323 = vld [vmem:[#allocation8 + $0x70] sm:$0xff]
    %v4324 = vld [vmem:[#allocation8 + $0x78] sm:$0xff]
    %v4325 = vld [vmem:[#allocation8 + $0x80] sm:$0xff]
    %v4326 = vld [vmem:[#allocation8 + $0x88] sm:$0xff]
    %v4327 = vld [vmem:[#allocation8 + $0x90] sm:$0xff]
    %v4328 = vld [vmem:[#allocation8 + $0x98] sm:$0xff]
    %v4329 = vld [vmem:[#allocation8 + $0xa0] sm:$0xff]
    %v4330 = vld [vmem:[#allocation8 + $0xa8] sm:$0xff]
    %v4331 = vld [vmem:[#allocation8 + $0xb0] sm:$0xff]
    %v4332 = vld [vmem:[#allocation8 + $0xb8] sm:$0xff]
    %v4333 = vld [vmem:[#allocation8 + $0xc0] sm:$0xff]
    %v4334 = vld [vmem:[#allocation8 + $0xc8] sm:$0xff]
    %v4335 = vld [vmem:[#allocation8 + $0xd0] sm:$0xff]
    %v4336 = vld [vmem:[#allocation8 + $0xd8] sm:$0xff]
    %v4337 = vld [vmem:[#allocation8 + $0xe0] sm:$0xff]
    %v4338 = vld [vmem:[#allocation8 + $0xe8] sm:$0xff]
    %v4339 = vld [vmem:[#allocation8 + $0xf0] sm:$0xff]
    %v4340 = vld [vmem:[#allocation8 + $0xf8] sm:$0xff]
    %v4341 = vld [vmem:[#allocation8 + $0x100] sm:$0xff]
    %v4342 = vld [vmem:[#allocation8 + $0x108] sm:$0xff]
    %v4343 = vld [vmem:[#allocation8 + $0x110] sm:$0xff]
    %v4344 = vld [vmem:[#allocation8 + $0x118] sm:$0xff]
    %v4345 = vld [vmem:[#allocation8 + $0x120] sm:$0xff]
    %v4346 = vld [vmem:[#allocation8 + $0x128] sm:$0xff]
    %v4347 = vld [vmem:[#allocation8 + $0x130] sm:$0xff]
    %v4348 = vld [vmem:[#allocation8 + $0x138] sm:$0xff]
    %v4349 = vld [vmem:[#allocation8 + $0x140] sm:$0xff]
    %v4350 = vld [vmem:[#allocation8 + $0x148] sm:$0xff]
    %v4351 = vld [vmem:[#allocation8 + $0x150] sm:$0xff]
    %v4352 = vld [vmem:[#allocation8 + $0x158] sm:$0xff]
    %v4353 = vld [vmem:[#allocation8 + $0x160] sm:$0xff]
    %v4354 = vld [vmem:[#allocation8 + $0x168] sm:$0xff]
    %v4355 = vld [vmem:[#allocation8 + $0x170] sm:$0xff]
    %v4356 = vld [vmem:[#allocation8 + $0x178] sm:$0xff]
    %v4357 = vld [vmem:[#allocation8 + $0x180] sm:$0xff]
    %v4358 = vld [vmem:[#allocation8 + $0x188] sm:$0xff]
    %v4359 = vld [vmem:[#allocation8 + $0x190] sm:$0xff]
    %v4360 = vld [vmem:[#allocation8 + $0x198] sm:$0xff]
    %v4361 = vld [vmem:[#allocation8 + $0x1a0] sm:$0xff]
    %v4362 = vld [vmem:[#allocation8 + $0x1a8] sm:$0xff]
    %v4363 = vld [vmem:[#allocation8 + $0x1b0] sm:$0xff]
    %v4364 = vld [vmem:[#allocation8 + $0x1b8] sm:$0xff]
    %v4365 = vld [vmem:[#allocation8 + $0x1c0] sm:$0xff]
    %v4366 = vld [vmem:[#allocation8 + $0x1c8] sm:$0xff]
    %v4367 = vld [vmem:[#allocation8 + $0x1d0] sm:$0xff]
    %v4368 = vld [vmem:[#allocation8 + $0x1d8] sm:$0xff]
    %v4369 = vld [vmem:[#allocation8 + $0x1e0] sm:$0xff]
    %v4370 = vld [vmem:[#allocation8 + $0x1e8] sm:$0xff]
    %v4371 = vld [vmem:[#allocation8 + $0x1f0] sm:$0xff]
    %v4372 = vld [vmem:[#allocation8 + $0x1f8] sm:$0xff]
    %v4373 = vld [vmem:[#allocation8 + $0x200] sm:$0xff]
    %v4374 = vld [vmem:[#allocation8 + $0x208] sm:$0xff]
    %v4375 = vld [vmem:[#allocation8 + $0x210] sm:$0xff]
    %v4376 = vld [vmem:[#allocation8 + $0x218] sm:$0xff]
    %v4377 = vld [vmem:[#allocation8 + $0x220] sm:$0xff]
    %v4378 = vld [vmem:[#allocation8 + $0x228] sm:$0xff]
    %v4379 = vld [vmem:[#allocation8 + $0x230] sm:$0xff]
    %v4380 = vld [vmem:[#allocation8 + $0x238] sm:$0xff]
    %v4381 = vld [vmem:[#allocation8 + $0x240] sm:$0xff]
    %v4382 = vld [vmem:[#allocation8 + $0x248] sm:$0xff]
    %v4383 = vld [vmem:[#allocation8 + $0x250] sm:$0xff]
    %v4384 = vld [vmem:[#allocation8 + $0x258] sm:$0xff]
    %v4385 = vld [vmem:[#allocation8 + $0x260] sm:$0xff]
    %v4386 = vld [vmem:[#allocation8 + $0x268] sm:$0xff]
    %v4387 = vld [vmem:[#allocation8 + $0x270] sm:$0xff]
    %v4388 = vld [vmem:[#allocation8 + $0x278] sm:$0xff]
    %v4389 = vld [vmem:[#allocation8 + $0x280] sm:$0xff]
    %v4390 = vld [vmem:[#allocation8 + $0x288] sm:$0xff]
    %v4391 = vld [vmem:[#allocation8 + $0x290] sm:$0xff]
    %v4392 = vld [vmem:[#allocation8 + $0x298] sm:$0xff]
    %v4393 = vld [vmem:[#allocation8 + $0x2a0] sm:$0xff]
    %v4394 = vld [vmem:[#allocation8 + $0x2a8] sm:$0xff]
    %v4395 = vld [vmem:[#allocation8 + $0x2b0] sm:$0xff]
    %v4396 = vld [vmem:[#allocation8 + $0x2b8] sm:$0xff]
    %v4397 = vld [vmem:[#allocation8 + $0x2c0] sm:$0xff]
    %v4398 = vld [vmem:[#allocation8 + $0x2c8] sm:$0xff]
    %v4399 = vld [vmem:[#allocation8 + $0x2d0] sm:$0xff]
    %v4400 = vld [vmem:[#allocation8 + $0x2d8] sm:$0xff]
    %v4401 = vld [vmem:[#allocation8 + $0x2e0] sm:$0xff]
    %v4402 = vld [vmem:[#allocation8 + $0x2e8] sm:$0xff]
    %v4403 = vld [vmem:[#allocation8 + $0x2f0] sm:$0xff]
    %v4404 = vld [vmem:[#allocation8 + $0x2f8] sm:$0xff]
    %v4405 = vld [vmem:[#allocation8 + $0x300] sm:$0xff]
    %v4406 = vld [vmem:[#allocation8 + $0x308] sm:$0xff]
    %v4407 = vld [vmem:[#allocation8 + $0x310] sm:$0xff]
    %v4408 = vld [vmem:[#allocation8 + $0x318] sm:$0xff]
    %v4409 = vld [vmem:[#allocation8 + $0x320] sm:$0xff]
    %v4410 = vld [vmem:[#allocation8 + $0x328] sm:$0xff]
    %v4411 = vld [vmem:[#allocation8 + $0x330] sm:$0xff]
    %v4412 = vld [vmem:[#allocation8 + $0x338] sm:$0xff]
    %v4413 = vld [vmem:[#allocation8 + $0x340] sm:$0xff]
    %v4414 = vld [vmem:[#allocation8 + $0x348] sm:$0xff]
    %v4415 = vld [vmem:[#allocation8 + $0x350] sm:$0xff]
    %v4416 = vld [vmem:[#allocation8 + $0x358] sm:$0xff]
    %v4417 = vld [vmem:[#allocation8 + $0x360] sm:$0xff]
    %v4418 = vld [vmem:[#allocation8 + $0x368] sm:$0xff]
    %v4419 = vld [vmem:[#allocation8 + $0x370] sm:$0xff]
    %v4420 = vld [vmem:[#allocation8 + $0x378] sm:$0xff]
    %v4421 = vld [vmem:[#allocation8 + $0x380] sm:$0xff]
    %v4422 = vld [vmem:[#allocation8 + $0x388] sm:$0xff]
    %v4423 = vld [vmem:[#allocation8 + $0x390] sm:$0xff]
    %v4424 = vld [vmem:[#allocation8 + $0x398] sm:$0xff]
    %v4425 = vld [vmem:[#allocation8 + $0x3a0] sm:$0xff]
    %v4426 = vld [vmem:[#allocation8 + $0x3a8] sm:$0xff]
    %v4427 = vld [vmem:[#allocation8 + $0x3b0] sm:$0xff]
    %v4428 = vld [vmem:[#allocation8 + $0x3b8] sm:$0xff]
    %v4429 = vld [vmem:[#allocation8 + $0x3c0] sm:$0xff]
    %v4430 = vld [vmem:[#allocation8 + $0x3c8] sm:$0xff]
    %v4431 = vld [vmem:[#allocation8 + $0x3d0] sm:$0xff]
    %v4432 = vld [vmem:[#allocation8 + $0x3d8] sm:$0xff]
    %v4433 = vld [vmem:[#allocation8 + $0x3e0] sm:$0xff]
    %v4434 = vld [vmem:[#allocation8 + $0x3e8] sm:$0xff]
    %v4435 = vld [vmem:[#allocation8 + $0x3f0] sm:$0xff]
    %v4436 = vld [vmem:[#allocation8 + $0x3f8] sm:$0xff]
    %v4437 = vld [vmem:[#allocation8 + $0x400] sm:$0xff]
    %v4438 = vld [vmem:[#allocation8 + $0x408] sm:$0xff]
    %v4439 = vld [vmem:[#allocation8 + $0x410] sm:$0xff]
    %v4440 = vld [vmem:[#allocation8 + $0x418] sm:$0xff]
    %v4441 = vld [vmem:[#allocation8 + $0x420] sm:$0xff]
    %v4442 = vld [vmem:[#allocation8 + $0x428] sm:$0xff]
    %v4443 = vld [vmem:[#allocation8 + $0x430] sm:$0xff]
    %v4444 = vld [vmem:[#allocation8 + $0x438] sm:$0xff]
    %v4445 = vld [vmem:[#allocation8 + $0x440] sm:$0xff]
    %v4446 = vld [vmem:[#allocation8 + $0x448] sm:$0xff]
    %v4447 = vld [vmem:[#allocation8 + $0x450] sm:$0xff]
    %v4448 = vld [vmem:[#allocation8 + $0x458] sm:$0xff]
    %v4449 = vld [vmem:[#allocation8 + $0x460] sm:$0xff]
    %v4450 = vld [vmem:[#allocation8 + $0x468] sm:$0xff]
    %v4451 = vld [vmem:[#allocation8 + $0x470] sm:$0xff]
    %v4452 = vld [vmem:[#allocation8 + $0x478] sm:$0xff]
    %v4453 = vld [vmem:[#allocation8 + $0x480] sm:$0xff]
    %v4454 = vld [vmem:[#allocation8 + $0x488] sm:$0xff]
    %v4455 = vld [vmem:[#allocation8 + $0x490] sm:$0xff]
    %v4456 = vld [vmem:[#allocation8 + $0x498] sm:$0xff]
    %v4457 = vld [vmem:[#allocation8 + $0x4a0] sm:$0xff]
    %v4458 = vld [vmem:[#allocation8 + $0x4a8] sm:$0xff]
    %v4459 = vld [vmem:[#allocation8 + $0x4b0] sm:$0xff]
    %v4460 = vld [vmem:[#allocation8 + $0x4b8] sm:$0xff]
    %v4461 = vld [vmem:[#allocation8 + $0x4c0] sm:$0xff]
    %v4462 = vld [vmem:[#allocation8 + $0x4c8] sm:$0xff]
    %v4463 = vld [vmem:[#allocation8 + $0x4d0] sm:$0xff]
    %v4464 = vld [vmem:[#allocation8 + $0x4d8] sm:$0xff]
    %v4465 = vld [vmem:[#allocation8 + $0x4e0] sm:$0xff]
    %v4466 = vld [vmem:[#allocation8 + $0x4e8] sm:$0xff]
    %v4467 = vld [vmem:[#allocation8 + $0x4f0] sm:$0xff]
    %v4468 = vld [vmem:[#allocation8 + $0x4f8] sm:$0xff]
    %v4469 = vld [vmem:[#allocation8 + $0x500] sm:$0xff]
    %v4470 = vld [vmem:[#allocation8 + $0x508] sm:$0xff]
    %v4471 = vld [vmem:[#allocation8 + $0x510] sm:$0xff]
    %v4472 = vld [vmem:[#allocation8 + $0x518] sm:$0xff]
    %v4473 = vld [vmem:[#allocation8 + $0x520] sm:$0xff]
    %v4474 = vld [vmem:[#allocation8 + $0x528] sm:$0xff]
    %v4475 = vld [vmem:[#allocation8 + $0x530] sm:$0xff]
    %v4476 = vld [vmem:[#allocation8 + $0x538] sm:$0xff]
    %v4477 = vld [vmem:[#allocation8 + $0x540] sm:$0xff]
    %v4478 = vld [vmem:[#allocation8 + $0x548] sm:$0xff]
    %v4479 = vld [vmem:[#allocation8 + $0x550] sm:$0xff]
    %v4480 = vld [vmem:[#allocation8 + $0x558] sm:$0xff]
    %v4481 = vld [vmem:[#allocation8 + $0x560] sm:$0xff]
    %v4482 = vld [vmem:[#allocation8 + $0x568] sm:$0xff]
    %v4483 = vld [vmem:[#allocation8 + $0x570] sm:$0xff]
    %v4484 = vld [vmem:[#allocation8 + $0x578] sm:$0xff]
    %v4485 = vld [vmem:[#allocation8 + $0x580] sm:$0xff]
    %v4486 = vld [vmem:[#allocation8 + $0x588] sm:$0xff]
    %v4487 = vld [vmem:[#allocation8 + $0x590] sm:$0xff]
    %v4488 = vld [vmem:[#allocation8 + $0x598] sm:$0xff]
    %v4489 = vld [vmem:[#allocation8 + $0x5a0] sm:$0xff]
    %v4490 = vld [vmem:[#allocation8 + $0x5a8] sm:$0xff]
    %v4491 = vld [vmem:[#allocation8 + $0x5b0] sm:$0xff]
    %v4492 = vld [vmem:[#allocation8 + $0x5b8] sm:$0xff]
    %v4493 = vld [vmem:[#allocation8 + $0x5c0] sm:$0xff]
    %v4494 = vld [vmem:[#allocation8 + $0x5c8] sm:$0xff]
    %v4495 = vld [vmem:[#allocation8 + $0x5d0] sm:$0xff]
    %v4496 = vld [vmem:[#allocation8 + $0x5d8] sm:$0xff]
    %v4497 = vld [vmem:[#allocation8 + $0x5e0] sm:$0xff]
    %v4498 = vld [vmem:[#allocation8 + $0x5e8] sm:$0xff]
    %v4499 = vld [vmem:[#allocation8 + $0x5f0] sm:$0xff]
    %v4500 = vld [vmem:[#allocation8 + $0x5f8] sm:$0xff]
    %v4501 = vld [vmem:[#allocation8 + $0x600] sm:$0xff]
    %v4502 = vld [vmem:[#allocation8 + $0x608] sm:$0xff]
    %v4503 = vld [vmem:[#allocation8 + $0x610] sm:$0xff]
    %v4504 = vld [vmem:[#allocation8 + $0x618] sm:$0xff]
    %v4505 = vld [vmem:[#allocation8 + $0x620] sm:$0xff]
    %v4506 = vld [vmem:[#allocation8 + $0x628] sm:$0xff]
    %v4507 = vld [vmem:[#allocation8 + $0x630] sm:$0xff]
    %v4508 = vld [vmem:[#allocation8 + $0x638] sm:$0xff]
    %v4509 = vld [vmem:[#allocation8 + $0x640] sm:$0xff]
    %v4510 = vld [vmem:[#allocation8 + $0x648] sm:$0xff]
    %v4511 = vld [vmem:[#allocation8 + $0x650] sm:$0xff]
    %v4512 = vld [vmem:[#allocation8 + $0x658] sm:$0xff]
    %v4513 = vld [vmem:[#allocation8 + $0x660] sm:$0xff]
    %v4514 = vld [vmem:[#allocation8 + $0x668] sm:$0xff]
    %v4515 = vld [vmem:[#allocation8 + $0x670] sm:$0xff]
    %v4516 = vld [vmem:[#allocation8 + $0x678] sm:$0xff]
    %v4517 = vld [vmem:[#allocation8 + $0x680] sm:$0xff]
    %v4518 = vld [vmem:[#allocation8 + $0x688] sm:$0xff]
    %v4519 = vld [vmem:[#allocation8 + $0x690] sm:$0xff]
    %v4520 = vld [vmem:[#allocation8 + $0x698] sm:$0xff]
    %v4521 = vld [vmem:[#allocation8 + $0x6a0] sm:$0xff]
    %v4522 = vld [vmem:[#allocation8 + $0x6a8] sm:$0xff]
    %v4523 = vld [vmem:[#allocation8 + $0x6b0] sm:$0xff]
    %v4524 = vld [vmem:[#allocation8 + $0x6b8] sm:$0xff]
    %v4525 = vld [vmem:[#allocation8 + $0x6c0] sm:$0xff]
    %v4526 = vld [vmem:[#allocation8 + $0x6c8] sm:$0xff]
    %v4527 = vld [vmem:[#allocation8 + $0x6d0] sm:$0xff]
    %v4528 = vld [vmem:[#allocation8 + $0x6d8] sm:$0xff]
    %v4529 = vld [vmem:[#allocation8 + $0x6e0] sm:$0xff]
    %v4530 = vld [vmem:[#allocation8 + $0x6e8] sm:$0xff]
    %v4531 = vld [vmem:[#allocation8 + $0x6f0] sm:$0xff]
    %v4532 = vld [vmem:[#allocation8 + $0x6f8] sm:$0xff]
    %v4533 = vld [vmem:[#allocation8 + $0x700] sm:$0xff]
    %v4534 = vld [vmem:[#allocation8 + $0x708] sm:$0xff]
    %v4535 = vld [vmem:[#allocation8 + $0x710] sm:$0xff]
    %v4536 = vld [vmem:[#allocation8 + $0x718] sm:$0xff]
    %v4537 = vld [vmem:[#allocation8 + $0x720] sm:$0xff]
    %v4538 = vld [vmem:[#allocation8 + $0x728] sm:$0xff]
    %v4539 = vld [vmem:[#allocation8 + $0x730] sm:$0xff]
    %v4540 = vld [vmem:[#allocation8 + $0x738] sm:$0xff]
    %v4541 = vld [vmem:[#allocation8 + $0x740] sm:$0xff]
    %v4542 = vld [vmem:[#allocation8 + $0x748] sm:$0xff]
    %v4543 = vld [vmem:[#allocation8 + $0x750] sm:$0xff]
    %v4544 = vld [vmem:[#allocation8 + $0x758] sm:$0xff]
    %v4545 = vld [vmem:[#allocation8 + $0x760] sm:$0xff]
    %v4546 = vld [vmem:[#allocation8 + $0x768] sm:$0xff]
    %v4547 = vld [vmem:[#allocation8 + $0x770] sm:$0xff]
    %v4548 = vld [vmem:[#allocation8 + $0x778] sm:$0xff]
    %v4549 = vld [vmem:[#allocation8 + $0x780] sm:$0xff]
    %v4550 = vld [vmem:[#allocation8 + $0x788] sm:$0xff]
    %v4551 = vld [vmem:[#allocation8 + $0x790] sm:$0xff]
    %v4552 = vld [vmem:[#allocation8 + $0x798] sm:$0xff]
    %v4553 = vld [vmem:[#allocation8 + $0x7a0] sm:$0xff]
    %v4554 = vld [vmem:[#allocation8 + $0x7a8] sm:$0xff]
    %v4555 = vld [vmem:[#allocation8 + $0x7b0] sm:$0xff]
    %v4556 = vld [vmem:[#allocation8 + $0x7b8] sm:$0xff]
    %v4557 = vld [vmem:[#allocation8 + $0x7c0] sm:$0xff]
    %v4558 = vld [vmem:[#allocation8 + $0x7c8] sm:$0xff]
    %v4559 = vld [vmem:[#allocation8 + $0x7d0] sm:$0xff]
    %v4560 = vld [vmem:[#allocation8 + $0x7d8] sm:$0xff]
    %v4561 = vld [vmem:[#allocation8 + $0x7e0] sm:$0xff]
    %v4562 = vld [vmem:[#allocation8 + $0x7e8] sm:$0xff]
    %v4563 = vld [vmem:[#allocation8 + $0x7f0] sm:$0xff]
    %v4564 = vld [vmem:[#allocation8 + $0x7f8] sm:$0xff]
    %v4565 = vld [vmem:[#allocation14 + $0x10] sm:$0xf]
    %v4567 = vlaneseq
    %v4568 = vshrl.u32 %v4567, 7
    %v4569 = vsub.s32 0, %v4568
    %v4570 = vrot.slane %v4565, %v4569
    %v4571 = vlaneseq
    %v4572 = vshrl.u32 %v4571, 7
    %v4573 = vsub.s32 1, %v4572
    %v4574 = vrot.slane %v4565, %v4573
    %v4575 = vlaneseq
    %v4576 = vshrl.u32 %v4575, 7
    %v4577 = vsub.s32 2, %v4576
    %v4578 = vrot.slane %v4565, %v4577
    %v4579 = vlaneseq
    %v4580 = vshrl.u32 %v4579, 7
    %v4581 = vsub.s32 3, %v4580
    %v4582 = vrot.slane %v4565, %v4581
    %v4843 = vunpack.c.l.b16 %v4309
    %v4844 = vunpack.c.h.b16 %v4309
    %v4845 = vunpack.c.l.b16 %v4310
    %v4846 = vunpack.c.h.b16 %v4310
    %v4847 = vunpack.c.l.b16 %v4311
    %v4848 = vunpack.c.h.b16 %v4311
    %v4849 = vunpack.c.l.b16 %v4312
    %v4850 = vunpack.c.h.b16 %v4312
    %v4851 = vunpack.c.l.b16 %v4313
    %v4852 = vunpack.c.h.b16 %v4313
    %v4853 = vunpack.c.l.b16 %v4314
    %v4854 = vunpack.c.h.b16 %v4314
    %v4855 = vunpack.c.l.b16 %v4315
    %v4856 = vunpack.c.h.b16 %v4315
    %v4857 = vunpack.c.l.b16 %v4316
    %v4858 = vunpack.c.h.b16 %v4316
    %v4859 = vunpack.c.l.b16 %v4317
    %v4860 = vunpack.c.h.b16 %v4317
    %v4861 = vunpack.c.l.b16 %v4318
    %v4862 = vunpack.c.h.b16 %v4318
    %v4863 = vunpack.c.l.b16 %v4319
    %v4864 = vunpack.c.h.b16 %v4319
    %v4865 = vunpack.c.l.b16 %v4320
    %v4866 = vunpack.c.h.b16 %v4320
    %v4867 = vunpack.c.l.b16 %v4321
    %v4868 = vunpack.c.h.b16 %v4321
    %v4869 = vunpack.c.l.b16 %v4322
    %v4870 = vunpack.c.h.b16 %v4322
    %v4871 = vunpack.c.l.b16 %v4323
    %v4872 = vunpack.c.h.b16 %v4323
    %v4873 = vunpack.c.l.b16 %v4324
    %v4874 = vunpack.c.h.b16 %v4324
    %v4875 = vunpack.c.l.b16 %v4325
    %v4876 = vunpack.c.h.b16 %v4325
    %v4877 = vunpack.c.l.b16 %v4326
    %v4878 = vunpack.c.h.b16 %v4326
    %v4879 = vunpack.c.l.b16 %v4327
    %v4880 = vunpack.c.h.b16 %v4327
    %v4881 = vunpack.c.l.b16 %v4328
    %v4882 = vunpack.c.h.b16 %v4328
    %v4883 = vunpack.c.l.b16 %v4329
    %v4884 = vunpack.c.h.b16 %v4329
    %v4885 = vunpack.c.l.b16 %v4330
    %v4886 = vunpack.c.h.b16 %v4330
    %v4887 = vunpack.c.l.b16 %v4331
    %v4888 = vunpack.c.h.b16 %v4331
    %v4889 = vunpack.c.l.b16 %v4332
    %v4890 = vunpack.c.h.b16 %v4332
    %v4891 = vunpack.c.l.b16 %v4333
    %v4892 = vunpack.c.h.b16 %v4333
    %v4893 = vunpack.c.l.b16 %v4334
    %v4894 = vunpack.c.h.b16 %v4334
    %v4895 = vunpack.c.l.b16 %v4335
    %v4896 = vunpack.c.h.b16 %v4335
    %v4897 = vunpack.c.l.b16 %v4336
    %v4898 = vunpack.c.h.b16 %v4336
    %v4899 = vunpack.c.l.b16 %v4337
    %v4900 = vunpack.c.h.b16 %v4337
    %v4901 = vunpack.c.l.b16 %v4338
    %v4902 = vunpack.c.h.b16 %v4338
    %v4903 = vunpack.c.l.b16 %v4339
    %v4904 = vunpack.c.h.b16 %v4339
    %v4905 = vunpack.c.l.b16 %v4340
    %v4906 = vunpack.c.h.b16 %v4340
    %v4907 = vunpack.c.l.b16 %v4341
    %v4908 = vunpack.c.h.b16 %v4341
    %v4909 = vunpack.c.l.b16 %v4342
    %v4910 = vunpack.c.h.b16 %v4342
    %v4911 = vunpack.c.l.b16 %v4343
    %v4912 = vunpack.c.h.b16 %v4343
    %v4913 = vunpack.c.l.b16 %v4344
    %v4914 = vunpack.c.h.b16 %v4344
    %v4915 = vunpack.c.l.b16 %v4345
    %v4916 = vunpack.c.h.b16 %v4345
    %v4917 = vunpack.c.l.b16 %v4346
    %v4918 = vunpack.c.h.b16 %v4346
    %v4919 = vunpack.c.l.b16 %v4347
    %v4920 = vunpack.c.h.b16 %v4347
    %v4921 = vunpack.c.l.b16 %v4348
    %v4922 = vunpack.c.h.b16 %v4348
    %v4923 = vunpack.c.l.b16 %v4349
    %v4924 = vunpack.c.h.b16 %v4349
    %v4925 = vunpack.c.l.b16 %v4350
    %v4926 = vunpack.c.h.b16 %v4350
    %v4927 = vunpack.c.l.b16 %v4351
    %v4928 = vunpack.c.h.b16 %v4351
    %v4929 = vunpack.c.l.b16 %v4352
    %v4930 = vunpack.c.h.b16 %v4352
    %v4931 = vunpack.c.l.b16 %v4353
    %v4932 = vunpack.c.h.b16 %v4353
    %v4933 = vunpack.c.l.b16 %v4354
    %v4934 = vunpack.c.h.b16 %v4354
    %v4935 = vunpack.c.l.b16 %v4355
    %v4936 = vunpack.c.h.b16 %v4355
    %v4937 = vunpack.c.l.b16 %v4356
    %v4938 = vunpack.c.h.b16 %v4356
    %v4939 = vunpack.c.l.b16 %v4357
    %v4940 = vunpack.c.h.b16 %v4357
    %v4941 = vunpack.c.l.b16 %v4358
    %v4942 = vunpack.c.h.b16 %v4358
    %v4943 = vunpack.c.l.b16 %v4359
    %v4944 = vunpack.c.h.b16 %v4359
    %v4945 = vunpack.c.l.b16 %v4360
    %v4946 = vunpack.c.h.b16 %v4360
    %v4947 = vunpack.c.l.b16 %v4361
    %v4948 = vunpack.c.h.b16 %v4361
    %v4949 = vunpack.c.l.b16 %v4362
    %v4950 = vunpack.c.h.b16 %v4362
    %v4951 = vunpack.c.l.b16 %v4363
    %v4952 = vunpack.c.h.b16 %v4363
    %v4953 = vunpack.c.l.b16 %v4364
    %v4954 = vunpack.c.h.b16 %v4364
    %v4955 = vunpack.c.l.b16 %v4365
    %v4956 = vunpack.c.h.b16 %v4365
    %v4957 = vunpack.c.l.b16 %v4366
    %v4958 = vunpack.c.h.b16 %v4366
    %v4959 = vunpack.c.l.b16 %v4367
    %v4960 = vunpack.c.h.b16 %v4367
    %v4961 = vunpack.c.l.b16 %v4368
    %v4962 = vunpack.c.h.b16 %v4368
    %v4963 = vunpack.c.l.b16 %v4369
    %v4964 = vunpack.c.h.b16 %v4369
    %v4965 = vunpack.c.l.b16 %v4370
    %v4966 = vunpack.c.h.b16 %v4370
    %v4967 = vunpack.c.l.b16 %v4371
    %v4968 = vunpack.c.h.b16 %v4371
    %v4969 = vunpack.c.l.b16 %v4372
    %v4970 = vunpack.c.h.b16 %v4372
    %v4971 = vunpack.c.l.b16 %v4373
    %v4972 = vunpack.c.h.b16 %v4373
    %v4973 = vunpack.c.l.b16 %v4374
    %v4974 = vunpack.c.h.b16 %v4374
    %v4975 = vunpack.c.l.b16 %v4375
    %v4976 = vunpack.c.h.b16 %v4375
    %v4977 = vunpack.c.l.b16 %v4376
    %v4978 = vunpack.c.h.b16 %v4376
    %v4979 = vunpack.c.l.b16 %v4377
    %v4980 = vunpack.c.h.b16 %v4377
    %v4981 = vunpack.c.l.b16 %v4378
    %v4982 = vunpack.c.h.b16 %v4378
    %v4983 = vunpack.c.l.b16 %v4379
    %v4984 = vunpack.c.h.b16 %v4379
    %v4985 = vunpack.c.l.b16 %v4380
    %v4986 = vunpack.c.h.b16 %v4380
    %v4987 = vunpack.c.l.b16 %v4381
    %v4988 = vunpack.c.h.b16 %v4381
    %v4989 = vunpack.c.l.b16 %v4382
    %v4990 = vunpack.c.h.b16 %v4382
    %v4991 = vunpack.c.l.b16 %v4383
    %v4992 = vunpack.c.h.b16 %v4383
    %v4993 = vunpack.c.l.b16 %v4384
    %v4994 = vunpack.c.h.b16 %v4384
    %v4995 = vunpack.c.l.b16 %v4385
    %v4996 = vunpack.c.h.b16 %v4385
    %v4997 = vunpack.c.l.b16 %v4386
    %v4998 = vunpack.c.h.b16 %v4386
    %v4999 = vunpack.c.l.b16 %v4387
    %v5000 = vunpack.c.h.b16 %v4387
    %v5001 = vunpack.c.l.b16 %v4388
    %v5002 = vunpack.c.h.b16 %v4388
    %v5003 = vunpack.c.l.b16 %v4389
    %v5004 = vunpack.c.h.b16 %v4389
    %v5005 = vunpack.c.l.b16 %v4390
    %v5006 = vunpack.c.h.b16 %v4390
    %v5007 = vunpack.c.l.b16 %v4391
    %v5008 = vunpack.c.h.b16 %v4391
    %v5009 = vunpack.c.l.b16 %v4392
    %v5010 = vunpack.c.h.b16 %v4392
    %v5011 = vunpack.c.l.b16 %v4393
    %v5012 = vunpack.c.h.b16 %v4393
    %v5013 = vunpack.c.l.b16 %v4394
    %v5014 = vunpack.c.h.b16 %v4394
    %v5015 = vunpack.c.l.b16 %v4395
    %v5016 = vunpack.c.h.b16 %v4395
    %v5017 = vunpack.c.l.b16 %v4396
    %v5018 = vunpack.c.h.b16 %v4396
    %v5019 = vunpack.c.l.b16 %v4397
    %v5020 = vunpack.c.h.b16 %v4397
    %v5021 = vunpack.c.l.b16 %v4398
    %v5022 = vunpack.c.h.b16 %v4398
    %v5023 = vunpack.c.l.b16 %v4399
    %v5024 = vunpack.c.h.b16 %v4399
    %v5025 = vunpack.c.l.b16 %v4400
    %v5026 = vunpack.c.h.b16 %v4400
    %v5027 = vunpack.c.l.b16 %v4401
    %v5028 = vunpack.c.h.b16 %v4401
    %v5029 = vunpack.c.l.b16 %v4402
    %v5030 = vunpack.c.h.b16 %v4402
    %v5031 = vunpack.c.l.b16 %v4403
    %v5032 = vunpack.c.h.b16 %v4403
    %v5033 = vunpack.c.l.b16 %v4404
    %v5034 = vunpack.c.h.b16 %v4404
    %v5035 = vunpack.c.l.b16 %v4405
    %v5036 = vunpack.c.h.b16 %v4405
    %v5037 = vunpack.c.l.b16 %v4406
    %v5038 = vunpack.c.h.b16 %v4406
    %v5039 = vunpack.c.l.b16 %v4407
    %v5040 = vunpack.c.h.b16 %v4407
    %v5041 = vunpack.c.l.b16 %v4408
    %v5042 = vunpack.c.h.b16 %v4408
    %v5043 = vunpack.c.l.b16 %v4409
    %v5044 = vunpack.c.h.b16 %v4409
    %v5045 = vunpack.c.l.b16 %v4410
    %v5046 = vunpack.c.h.b16 %v4410
    %v5047 = vunpack.c.l.b16 %v4411
    %v5048 = vunpack.c.h.b16 %v4411
    %v5049 = vunpack.c.l.b16 %v4412
    %v5050 = vunpack.c.h.b16 %v4412
    %v5051 = vunpack.c.l.b16 %v4413
    %v5052 = vunpack.c.h.b16 %v4413
    %v5053 = vunpack.c.l.b16 %v4414
    %v5054 = vunpack.c.h.b16 %v4414
    %v5055 = vunpack.c.l.b16 %v4415
    %v5056 = vunpack.c.h.b16 %v4415
    %v5057 = vunpack.c.l.b16 %v4416
    %v5058 = vunpack.c.h.b16 %v4416
    %v5059 = vunpack.c.l.b16 %v4417
    %v5060 = vunpack.c.h.b16 %v4417
    %v5061 = vunpack.c.l.b16 %v4418
    %v5062 = vunpack.c.h.b16 %v4418
    %v5063 = vunpack.c.l.b16 %v4419
    %v5064 = vunpack.c.h.b16 %v4419
    %v5065 = vunpack.c.l.b16 %v4420
    %v5066 = vunpack.c.h.b16 %v4420
    %v5067 = vunpack.c.l.b16 %v4421
    %v5068 = vunpack.c.h.b16 %v4421
    %v5069 = vunpack.c.l.b16 %v4422
    %v5070 = vunpack.c.h.b16 %v4422
    %v5071 = vunpack.c.l.b16 %v4423
    %v5072 = vunpack.c.h.b16 %v4423
    %v5073 = vunpack.c.l.b16 %v4424
    %v5074 = vunpack.c.h.b16 %v4424
    %v5075 = vunpack.c.l.b16 %v4425
    %v5076 = vunpack.c.h.b16 %v4425
    %v5077 = vunpack.c.l.b16 %v4426
    %v5078 = vunpack.c.h.b16 %v4426
    %v5079 = vunpack.c.l.b16 %v4427
    %v5080 = vunpack.c.h.b16 %v4427
    %v5081 = vunpack.c.l.b16 %v4428
    %v5082 = vunpack.c.h.b16 %v4428
    %v5083 = vunpack.c.l.b16 %v4429
    %v5084 = vunpack.c.h.b16 %v4429
    %v5085 = vunpack.c.l.b16 %v4430
    %v5086 = vunpack.c.h.b16 %v4430
    %v5087 = vunpack.c.l.b16 %v4431
    %v5088 = vunpack.c.h.b16 %v4431
    %v5089 = vunpack.c.l.b16 %v4432
    %v5090 = vunpack.c.h.b16 %v4432
    %v5091 = vunpack.c.l.b16 %v4433
    %v5092 = vunpack.c.h.b16 %v4433
    %v5093 = vunpack.c.l.b16 %v4434
    %v5094 = vunpack.c.h.b16 %v4434
    %v5095 = vunpack.c.l.b16 %v4435
    %v5096 = vunpack.c.h.b16 %v4435
    %v5097 = vunpack.c.l.b16 %v4436
    %v5098 = vunpack.c.h.b16 %v4436
    %v5099 = vunpack.c.l.b16 %v4437
    %v5100 = vunpack.c.h.b16 %v4437
    %v5101 = vunpack.c.l.b16 %v4438
    %v5102 = vunpack.c.h.b16 %v4438
    %v5103 = vunpack.c.l.b16 %v4439
    %v5104 = vunpack.c.h.b16 %v4439
    %v5105 = vunpack.c.l.b16 %v4440
    %v5106 = vunpack.c.h.b16 %v4440
    %v5107 = vunpack.c.l.b16 %v4441
    %v5108 = vunpack.c.h.b16 %v4441
    %v5109 = vunpack.c.l.b16 %v4442
    %v5110 = vunpack.c.h.b16 %v4442
    %v5111 = vunpack.c.l.b16 %v4443
    %v5112 = vunpack.c.h.b16 %v4443
    %v5113 = vunpack.c.l.b16 %v4444
    %v5114 = vunpack.c.h.b16 %v4444
    %v5115 = vunpack.c.l.b16 %v4445
    %v5116 = vunpack.c.h.b16 %v4445
    %v5117 = vunpack.c.l.b16 %v4446
    %v5118 = vunpack.c.h.b16 %v4446
    %v5119 = vunpack.c.l.b16 %v4447
    %v5120 = vunpack.c.h.b16 %v4447
    %v5121 = vunpack.c.l.b16 %v4448
    %v5122 = vunpack.c.h.b16 %v4448
    %v5123 = vunpack.c.l.b16 %v4449
    %v5124 = vunpack.c.h.b16 %v4449
    %v5125 = vunpack.c.l.b16 %v4450
    %v5126 = vunpack.c.h.b16 %v4450
    %v5127 = vunpack.c.l.b16 %v4451
    %v5128 = vunpack.c.h.b16 %v4451
    %v5129 = vunpack.c.l.b16 %v4452
    %v5130 = vunpack.c.h.b16 %v4452
    %v5131 = vunpack.c.l.b16 %v4453
    %v5132 = vunpack.c.h.b16 %v4453
    %v5133 = vunpack.c.l.b16 %v4454
    %v5134 = vunpack.c.h.b16 %v4454
    %v5135 = vunpack.c.l.b16 %v4455
    %v5136 = vunpack.c.h.b16 %v4455
    %v5137 = vunpack.c.l.b16 %v4456
    %v5138 = vunpack.c.h.b16 %v4456
    %v5139 = vunpack.c.l.b16 %v4457
    %v5140 = vunpack.c.h.b16 %v4457
    %v5141 = vunpack.c.l.b16 %v4458
    %v5142 = vunpack.c.h.b16 %v4458
    %v5143 = vunpack.c.l.b16 %v4459
    %v5144 = vunpack.c.h.b16 %v4459
    %v5145 = vunpack.c.l.b16 %v4460
    %v5146 = vunpack.c.h.b16 %v4460
    %v5147 = vunpack.c.l.b16 %v4461
    %v5148 = vunpack.c.h.b16 %v4461
    %v5149 = vunpack.c.l.b16 %v4462
    %v5150 = vunpack.c.h.b16 %v4462
    %v5151 = vunpack.c.l.b16 %v4463
    %v5152 = vunpack.c.h.b16 %v4463
    %v5153 = vunpack.c.l.b16 %v4464
    %v5154 = vunpack.c.h.b16 %v4464
    %v5155 = vunpack.c.l.b16 %v4465
    %v5156 = vunpack.c.h.b16 %v4465
    %v5157 = vunpack.c.l.b16 %v4466
    %v5158 = vunpack.c.h.b16 %v4466
    %v5159 = vunpack.c.l.b16 %v4467
    %v5160 = vunpack.c.h.b16 %v4467
    %v5161 = vunpack.c.l.b16 %v4468
    %v5162 = vunpack.c.h.b16 %v4468
    %v5163 = vunpack.c.l.b16 %v4469
    %v5164 = vunpack.c.h.b16 %v4469
    %v5165 = vunpack.c.l.b16 %v4470
    %v5166 = vunpack.c.h.b16 %v4470
    %v5167 = vunpack.c.l.b16 %v4471
    %v5168 = vunpack.c.h.b16 %v4471
    %v5169 = vunpack.c.l.b16 %v4472
    %v5170 = vunpack.c.h.b16 %v4472
    %v5171 = vunpack.c.l.b16 %v4473
    %v5172 = vunpack.c.h.b16 %v4473
    %v5173 = vunpack.c.l.b16 %v4474
    %v5174 = vunpack.c.h.b16 %v4474
    %v5175 = vunpack.c.l.b16 %v4475
    %v5176 = vunpack.c.h.b16 %v4475
    %v5177 = vunpack.c.l.b16 %v4476
    %v5178 = vunpack.c.h.b16 %v4476
    %v5179 = vunpack.c.l.b16 %v4477
    %v5180 = vunpack.c.h.b16 %v4477
    %v5181 = vunpack.c.l.b16 %v4478
    %v5182 = vunpack.c.h.b16 %v4478
    %v5183 = vunpack.c.l.b16 %v4479
    %v5184 = vunpack.c.h.b16 %v4479
    %v5185 = vunpack.c.l.b16 %v4480
    %v5186 = vunpack.c.h.b16 %v4480
    %v5187 = vunpack.c.l.b16 %v4481
    %v5188 = vunpack.c.h.b16 %v4481
    %v5189 = vunpack.c.l.b16 %v4482
    %v5190 = vunpack.c.h.b16 %v4482
    %v5191 = vunpack.c.l.b16 %v4483
    %v5192 = vunpack.c.h.b16 %v4483
    %v5193 = vunpack.c.l.b16 %v4484
    %v5194 = vunpack.c.h.b16 %v4484
    %v5195 = vunpack.c.l.b16 %v4485
    %v5196 = vunpack.c.h.b16 %v4485
    %v5197 = vunpack.c.l.b16 %v4486
    %v5198 = vunpack.c.h.b16 %v4486
    %v5199 = vunpack.c.l.b16 %v4487
    %v5200 = vunpack.c.h.b16 %v4487
    %v5201 = vunpack.c.l.b16 %v4488
    %v5202 = vunpack.c.h.b16 %v4488
    %v5203 = vunpack.c.l.b16 %v4489
    %v5204 = vunpack.c.h.b16 %v4489
    %v5205 = vunpack.c.l.b16 %v4490
    %v5206 = vunpack.c.h.b16 %v4490
    %v5207 = vunpack.c.l.b16 %v4491
    %v5208 = vunpack.c.h.b16 %v4491
    %v5209 = vunpack.c.l.b16 %v4492
    %v5210 = vunpack.c.h.b16 %v4492
    %v5211 = vunpack.c.l.b16 %v4493
    %v5212 = vunpack.c.h.b16 %v4493
    %v5213 = vunpack.c.l.b16 %v4494
    %v5214 = vunpack.c.h.b16 %v4494
    %v5215 = vunpack.c.l.b16 %v4495
    %v5216 = vunpack.c.h.b16 %v4495
    %v5217 = vunpack.c.l.b16 %v4496
    %v5218 = vunpack.c.h.b16 %v4496
    %v5219 = vunpack.c.l.b16 %v4497
    %v5220 = vunpack.c.h.b16 %v4497
    %v5221 = vunpack.c.l.b16 %v4498
    %v5222 = vunpack.c.h.b16 %v4498
    %v5223 = vunpack.c.l.b16 %v4499
    %v5224 = vunpack.c.h.b16 %v4499
    %v5225 = vunpack.c.l.b16 %v4500
    %v5226 = vunpack.c.h.b16 %v4500
    %v5227 = vunpack.c.l.b16 %v4501
    %v5228 = vunpack.c.h.b16 %v4501
    %v5229 = vunpack.c.l.b16 %v4502
    %v5230 = vunpack.c.h.b16 %v4502
    %v5231 = vunpack.c.l.b16 %v4503
    %v5232 = vunpack.c.h.b16 %v4503
    %v5233 = vunpack.c.l.b16 %v4504
    %v5234 = vunpack.c.h.b16 %v4504
    %v5235 = vunpack.c.l.b16 %v4505
    %v5236 = vunpack.c.h.b16 %v4505
    %v5237 = vunpack.c.l.b16 %v4506
    %v5238 = vunpack.c.h.b16 %v4506
    %v5239 = vunpack.c.l.b16 %v4507
    %v5240 = vunpack.c.h.b16 %v4507
    %v5241 = vunpack.c.l.b16 %v4508
    %v5242 = vunpack.c.h.b16 %v4508
    %v5243 = vunpack.c.l.b16 %v4509
    %v5244 = vunpack.c.h.b16 %v4509
    %v5245 = vunpack.c.l.b16 %v4510
    %v5246 = vunpack.c.h.b16 %v4510
    %v5247 = vunpack.c.l.b16 %v4511
    %v5248 = vunpack.c.h.b16 %v4511
    %v5249 = vunpack.c.l.b16 %v4512
    %v5250 = vunpack.c.h.b16 %v4512
    %v5251 = vunpack.c.l.b16 %v4513
    %v5252 = vunpack.c.h.b16 %v4513
    %v5253 = vunpack.c.l.b16 %v4514
    %v5254 = vunpack.c.h.b16 %v4514
    %v5255 = vunpack.c.l.b16 %v4515
    %v5256 = vunpack.c.h.b16 %v4515
    %v5257 = vunpack.c.l.b16 %v4516
    %v5258 = vunpack.c.h.b16 %v4516
    %v5259 = vunpack.c.l.b16 %v4517
    %v5260 = vunpack.c.h.b16 %v4517
    %v5261 = vunpack.c.l.b16 %v4518
    %v5262 = vunpack.c.h.b16 %v4518
    %v5263 = vunpack.c.l.b16 %v4519
    %v5264 = vunpack.c.h.b16 %v4519
    %v5265 = vunpack.c.l.b16 %v4520
    %v5266 = vunpack.c.h.b16 %v4520
    %v5267 = vunpack.c.l.b16 %v4521
    %v5268 = vunpack.c.h.b16 %v4521
    %v5269 = vunpack.c.l.b16 %v4522
    %v5270 = vunpack.c.h.b16 %v4522
    %v5271 = vunpack.c.l.b16 %v4523
    %v5272 = vunpack.c.h.b16 %v4523
    %v5273 = vunpack.c.l.b16 %v4524
    %v5274 = vunpack.c.h.b16 %v4524
    %v5275 = vunpack.c.l.b16 %v4525
    %v5276 = vunpack.c.h.b16 %v4525
    %v5277 = vunpack.c.l.b16 %v4526
    %v5278 = vunpack.c.h.b16 %v4526
    %v5279 = vunpack.c.l.b16 %v4527
    %v5280 = vunpack.c.h.b16 %v4527
    %v5281 = vunpack.c.l.b16 %v4528
    %v5282 = vunpack.c.h.b16 %v4528
    %v5283 = vunpack.c.l.b16 %v4529
    %v5284 = vunpack.c.h.b16 %v4529
    %v5285 = vunpack.c.l.b16 %v4530
    %v5286 = vunpack.c.h.b16 %v4530
    %v5287 = vunpack.c.l.b16 %v4531
    %v5288 = vunpack.c.h.b16 %v4531
    %v5289 = vunpack.c.l.b16 %v4532
    %v5290 = vunpack.c.h.b16 %v4532
    %v5291 = vunpack.c.l.b16 %v4533
    %v5292 = vunpack.c.h.b16 %v4533
    %v5293 = vunpack.c.l.b16 %v4534
    %v5294 = vunpack.c.h.b16 %v4534
    %v5295 = vunpack.c.l.b16 %v4535
    %v5296 = vunpack.c.h.b16 %v4535
    %v5297 = vunpack.c.l.b16 %v4536
    %v5298 = vunpack.c.h.b16 %v4536
    %v5299 = vunpack.c.l.b16 %v4537
    %v5300 = vunpack.c.h.b16 %v4537
    %v5301 = vunpack.c.l.b16 %v4538
    %v5302 = vunpack.c.h.b16 %v4538
    %v5303 = vunpack.c.l.b16 %v4539
    %v5304 = vunpack.c.h.b16 %v4539
    %v5305 = vunpack.c.l.b16 %v4540
    %v5306 = vunpack.c.h.b16 %v4540
    %v5307 = vunpack.c.l.b16 %v4541
    %v5308 = vunpack.c.h.b16 %v4541
    %v5309 = vunpack.c.l.b16 %v4542
    %v5310 = vunpack.c.h.b16 %v4542
    %v5311 = vunpack.c.l.b16 %v4543
    %v5312 = vunpack.c.h.b16 %v4543
    %v5313 = vunpack.c.l.b16 %v4544
    %v5314 = vunpack.c.h.b16 %v4544
    %v5315 = vunpack.c.l.b16 %v4545
    %v5316 = vunpack.c.h.b16 %v4545
    %v5317 = vunpack.c.l.b16 %v4546
    %v5318 = vunpack.c.h.b16 %v4546
    %v5319 = vunpack.c.l.b16 %v4547
    %v5320 = vunpack.c.h.b16 %v4547
    %v5321 = vunpack.c.l.b16 %v4548
    %v5322 = vunpack.c.h.b16 %v4548
    %v5323 = vunpack.c.l.b16 %v4549
    %v5324 = vunpack.c.h.b16 %v4549
    %v5325 = vunpack.c.l.b16 %v4550
    %v5326 = vunpack.c.h.b16 %v4550
    %v5327 = vunpack.c.l.b16 %v4551
    %v5328 = vunpack.c.h.b16 %v4551
    %v5329 = vunpack.c.l.b16 %v4552
    %v5330 = vunpack.c.h.b16 %v4552
    %v5331 = vunpack.c.l.b16 %v4553
    %v5332 = vunpack.c.h.b16 %v4553
    %v5333 = vunpack.c.l.b16 %v4554
    %v5334 = vunpack.c.h.b16 %v4554
    %v5335 = vunpack.c.l.b16 %v4555
    %v5336 = vunpack.c.h.b16 %v4555
    %v5337 = vunpack.c.l.b16 %v4556
    %v5338 = vunpack.c.h.b16 %v4556
    %v5339 = vunpack.c.l.b16 %v4557
    %v5340 = vunpack.c.h.b16 %v4557
    %v5341 = vunpack.c.l.b16 %v4558
    %v5342 = vunpack.c.h.b16 %v4558
    %v5343 = vunpack.c.l.b16 %v4559
    %v5344 = vunpack.c.h.b16 %v4559
    %v5345 = vunpack.c.l.b16 %v4560
    %v5346 = vunpack.c.h.b16 %v4560
    %v5347 = vunpack.c.l.b16 %v4561
    %v5348 = vunpack.c.h.b16 %v4561
    %v5349 = vunpack.c.l.b16 %v4562
    %v5350 = vunpack.c.h.b16 %v4562
    %v5351 = vunpack.c.l.b16 %v4563
    %v5352 = vunpack.c.h.b16 %v4563
    %v5353 = vunpack.c.l.b16 %v4564
    %v5354 = vunpack.c.h.b16 %v4564
    %v5355 = vpack.c.b16 %v4847, %v4843
    %v5356 = vpack.c.b16 %v4848, %v4844
    %v5357 = vpack.c.b16 %v4849, %v4845
    %v5358 = vpack.c.b16 %v4850, %v4846
    %v5359 = vpack.c.b16 %v4855, %v4851
    %v5360 = vpack.c.b16 %v4856, %v4852
    %v5361 = vpack.c.b16 %v4857, %v4853
    %v5362 = vpack.c.b16 %v4858, %v4854
    %v5363 = vpack.c.b16 %v4863, %v4859
    %v5364 = vpack.c.b16 %v4864, %v4860
    %v5365 = vpack.c.b16 %v4865, %v4861
    %v5366 = vpack.c.b16 %v4866, %v4862
    %v5367 = vpack.c.b16 %v4871, %v4867
    %v5368 = vpack.c.b16 %v4872, %v4868
    %v5369 = vpack.c.b16 %v4873, %v4869
    %v5370 = vpack.c.b16 %v4874, %v4870
    %v5371 = vpack.c.b16 %v4879, %v4875
    %v5372 = vpack.c.b16 %v4880, %v4876
    %v5373 = vpack.c.b16 %v4881, %v4877
    %v5374 = vpack.c.b16 %v4882, %v4878
    %v5375 = vpack.c.b16 %v4887, %v4883
    %v5376 = vpack.c.b16 %v4888, %v4884
    %v5377 = vpack.c.b16 %v4889, %v4885
    %v5378 = vpack.c.b16 %v4890, %v4886
    %v5379 = vpack.c.b16 %v4895, %v4891
    %v5380 = vpack.c.b16 %v4896, %v4892
    %v5381 = vpack.c.b16 %v4897, %v4893
    %v5382 = vpack.c.b16 %v4898, %v4894
    %v5383 = vpack.c.b16 %v4903, %v4899
    %v5384 = vpack.c.b16 %v4904, %v4900
    %v5385 = vpack.c.b16 %v4905, %v4901
    %v5386 = vpack.c.b16 %v4906, %v4902
    %v5387 = vpack.c.b16 %v4911, %v4907
    %v5388 = vpack.c.b16 %v4912, %v4908
    %v5389 = vpack.c.b16 %v4913, %v4909
    %v5390 = vpack.c.b16 %v4914, %v4910
    %v5391 = vpack.c.b16 %v4919, %v4915
    %v5392 = vpack.c.b16 %v4920, %v4916
    %v5393 = vpack.c.b16 %v4921, %v4917
    %v5394 = vpack.c.b16 %v4922, %v4918
    %v5395 = vpack.c.b16 %v4927, %v4923
    %v5396 = vpack.c.b16 %v4928, %v4924
    %v5397 = vpack.c.b16 %v4929, %v4925
    %v5398 = vpack.c.b16 %v4930, %v4926
    %v5399 = vpack.c.b16 %v4935, %v4931
    %v5400 = vpack.c.b16 %v4936, %v4932
    %v5401 = vpack.c.b16 %v4937, %v4933
    %v5402 = vpack.c.b16 %v4938, %v4934
    %v5403 = vpack.c.b16 %v4943, %v4939
    %v5404 = vpack.c.b16 %v4944, %v4940
    %v5405 = vpack.c.b16 %v4945, %v4941
    %v5406 = vpack.c.b16 %v4946, %v4942
    %v5407 = vpack.c.b16 %v4951, %v4947
    %v5408 = vpack.c.b16 %v4952, %v4948
    %v5409 = vpack.c.b16 %v4953, %v4949
    %v5410 = vpack.c.b16 %v4954, %v4950
    %v5411 = vpack.c.b16 %v4959, %v4955
    %v5412 = vpack.c.b16 %v4960, %v4956
    %v5413 = vpack.c.b16 %v4961, %v4957
    %v5414 = vpack.c.b16 %v4962, %v4958
    %v5415 = vpack.c.b16 %v4967, %v4963
    %v5416 = vpack.c.b16 %v4968, %v4964
    %v5417 = vpack.c.b16 %v4969, %v4965
    %v5418 = vpack.c.b16 %v4970, %v4966
    %v5419 = vpack.c.b16 %v4975, %v4971
    %v5420 = vpack.c.b16 %v4976, %v4972
    %v5421 = vpack.c.b16 %v4977, %v4973
    %v5422 = vpack.c.b16 %v4978, %v4974
    %v5423 = vpack.c.b16 %v4983, %v4979
    %v5424 = vpack.c.b16 %v4984, %v4980
    %v5425 = vpack.c.b16 %v4985, %v4981
    %v5426 = vpack.c.b16 %v4986, %v4982
    %v5427 = vpack.c.b16 %v4991, %v4987
    %v5428 = vpack.c.b16 %v4992, %v4988
    %v5429 = vpack.c.b16 %v4993, %v4989
    %v5430 = vpack.c.b16 %v4994, %v4990
    %v5431 = vpack.c.b16 %v4999, %v4995
    %v5432 = vpack.c.b16 %v5000, %v4996
    %v5433 = vpack.c.b16 %v5001, %v4997
    %v5434 = vpack.c.b16 %v5002, %v4998
    %v5435 = vpack.c.b16 %v5007, %v5003
    %v5436 = vpack.c.b16 %v5008, %v5004
    %v5437 = vpack.c.b16 %v5009, %v5005
    %v5438 = vpack.c.b16 %v5010, %v5006
    %v5439 = vpack.c.b16 %v5015, %v5011
    %v5440 = vpack.c.b16 %v5016, %v5012
    %v5441 = vpack.c.b16 %v5017, %v5013
    %v5442 = vpack.c.b16 %v5018, %v5014
    %v5443 = vpack.c.b16 %v5023, %v5019
    %v5444 = vpack.c.b16 %v5024, %v5020
    %v5445 = vpack.c.b16 %v5025, %v5021
    %v5446 = vpack.c.b16 %v5026, %v5022
    %v5447 = vpack.c.b16 %v5031, %v5027
    %v5448 = vpack.c.b16 %v5032, %v5028
    %v5449 = vpack.c.b16 %v5033, %v5029
    %v5450 = vpack.c.b16 %v5034, %v5030
    %v5451 = vpack.c.b16 %v5039, %v5035
    %v5452 = vpack.c.b16 %v5040, %v5036
    %v5453 = vpack.c.b16 %v5041, %v5037
    %v5454 = vpack.c.b16 %v5042, %v5038
    %v5455 = vpack.c.b16 %v5047, %v5043
    %v5456 = vpack.c.b16 %v5048, %v5044
    %v5457 = vpack.c.b16 %v5049, %v5045
    %v5458 = vpack.c.b16 %v5050, %v5046
    %v5459 = vpack.c.b16 %v5055, %v5051
    %v5460 = vpack.c.b16 %v5056, %v5052
    %v5461 = vpack.c.b16 %v5057, %v5053
    %v5462 = vpack.c.b16 %v5058, %v5054
    %v5463 = vpack.c.b16 %v5063, %v5059
    %v5464 = vpack.c.b16 %v5064, %v5060
    %v5465 = vpack.c.b16 %v5065, %v5061
    %v5466 = vpack.c.b16 %v5066, %v5062
    %v5467 = vpack.c.b16 %v5071, %v5067
    %v5468 = vpack.c.b16 %v5072, %v5068
    %v5469 = vpack.c.b16 %v5073, %v5069
    %v5470 = vpack.c.b16 %v5074, %v5070
    %v5471 = vpack.c.b16 %v5079, %v5075
    %v5472 = vpack.c.b16 %v5080, %v5076
    %v5473 = vpack.c.b16 %v5081, %v5077
    %v5474 = vpack.c.b16 %v5082, %v5078
    %v5475 = vpack.c.b16 %v5087, %v5083
    %v5476 = vpack.c.b16 %v5088, %v5084
    %v5477 = vpack.c.b16 %v5089, %v5085
    %v5478 = vpack.c.b16 %v5090, %v5086
    %v5479 = vpack.c.b16 %v5095, %v5091
    %v5480 = vpack.c.b16 %v5096, %v5092
    %v5481 = vpack.c.b16 %v5097, %v5093
    %v5482 = vpack.c.b16 %v5098, %v5094
    %v5483 = vpack.c.b16 %v5103, %v5099
    %v5484 = vpack.c.b16 %v5104, %v5100
    %v5485 = vpack.c.b16 %v5105, %v5101
    %v5486 = vpack.c.b16 %v5106, %v5102
    %v5487 = vpack.c.b16 %v5111, %v5107
    %v5488 = vpack.c.b16 %v5112, %v5108
    %v5489 = vpack.c.b16 %v5113, %v5109
    %v5490 = vpack.c.b16 %v5114, %v5110
    %v5491 = vpack.c.b16 %v5119, %v5115
    %v5492 = vpack.c.b16 %v5120, %v5116
    %v5493 = vpack.c.b16 %v5121, %v5117
    %v5494 = vpack.c.b16 %v5122, %v5118
    %v5495 = vpack.c.b16 %v5127, %v5123
    %v5496 = vpack.c.b16 %v5128, %v5124
    %v5497 = vpack.c.b16 %v5129, %v5125
    %v5498 = vpack.c.b16 %v5130, %v5126
    %v5499 = vpack.c.b16 %v5135, %v5131
    %v5500 = vpack.c.b16 %v5136, %v5132
    %v5501 = vpack.c.b16 %v5137, %v5133
    %v5502 = vpack.c.b16 %v5138, %v5134
    %v5503 = vpack.c.b16 %v5143, %v5139
    %v5504 = vpack.c.b16 %v5144, %v5140
    %v5505 = vpack.c.b16 %v5145, %v5141
    %v5506 = vpack.c.b16 %v5146, %v5142
    %v5507 = vpack.c.b16 %v5151, %v5147
    %v5508 = vpack.c.b16 %v5152, %v5148
    %v5509 = vpack.c.b16 %v5153, %v5149
    %v5510 = vpack.c.b16 %v5154, %v5150
    %v5511 = vpack.c.b16 %v5159, %v5155
    %v5512 = vpack.c.b16 %v5160, %v5156
    %v5513 = vpack.c.b16 %v5161, %v5157
    %v5514 = vpack.c.b16 %v5162, %v5158
    %v5515 = vpack.c.b16 %v5167, %v5163
    %v5516 = vpack.c.b16 %v5168, %v5164
    %v5517 = vpack.c.b16 %v5169, %v5165
    %v5518 = vpack.c.b16 %v5170, %v5166
    %v5519 = vpack.c.b16 %v5175, %v5171
    %v5520 = vpack.c.b16 %v5176, %v5172
    %v5521 = vpack.c.b16 %v5177, %v5173
    %v5522 = vpack.c.b16 %v5178, %v5174
    %v5523 = vpack.c.b16 %v5183, %v5179
    %v5524 = vpack.c.b16 %v5184, %v5180
    %v5525 = vpack.c.b16 %v5185, %v5181
    %v5526 = vpack.c.b16 %v5186, %v5182
    %v5527 = vpack.c.b16 %v5191, %v5187
    %v5528 = vpack.c.b16 %v5192, %v5188
    %v5529 = vpack.c.b16 %v5193, %v5189
    %v5530 = vpack.c.b16 %v5194, %v5190
    %v5531 = vpack.c.b16 %v5199, %v5195
    %v5532 = vpack.c.b16 %v5200, %v5196
    %v5533 = vpack.c.b16 %v5201, %v5197
    %v5534 = vpack.c.b16 %v5202, %v5198
    %v5535 = vpack.c.b16 %v5207, %v5203
    %v5536 = vpack.c.b16 %v5208, %v5204
    %v5537 = vpack.c.b16 %v5209, %v5205
    %v5538 = vpack.c.b16 %v5210, %v5206
    %v5539 = vpack.c.b16 %v5215, %v5211
    %v5540 = vpack.c.b16 %v5216, %v5212
    %v5541 = vpack.c.b16 %v5217, %v5213
    %v5542 = vpack.c.b16 %v5218, %v5214
    %v5543 = vpack.c.b16 %v5223, %v5219
    %v5544 = vpack.c.b16 %v5224, %v5220
    %v5545 = vpack.c.b16 %v5225, %v5221
    %v5546 = vpack.c.b16 %v5226, %v5222
    %v5547 = vpack.c.b16 %v5231, %v5227
    %v5548 = vpack.c.b16 %v5232, %v5228
    %v5549 = vpack.c.b16 %v5233, %v5229
    %v5550 = vpack.c.b16 %v5234, %v5230
    %v5551 = vpack.c.b16 %v5239, %v5235
    %v5552 = vpack.c.b16 %v5240, %v5236
    %v5553 = vpack.c.b16 %v5241, %v5237
    %v5554 = vpack.c.b16 %v5242, %v5238
    %v5555 = vpack.c.b16 %v5247, %v5243
    %v5556 = vpack.c.b16 %v5248, %v5244
    %v5557 = vpack.c.b16 %v5249, %v5245
    %v5558 = vpack.c.b16 %v5250, %v5246
    %v5559 = vpack.c.b16 %v5255, %v5251
    %v5560 = vpack.c.b16 %v5256, %v5252
    %v5561 = vpack.c.b16 %v5257, %v5253
    %v5562 = vpack.c.b16 %v5258, %v5254
    %v5563 = vpack.c.b16 %v5263, %v5259
    %v5564 = vpack.c.b16 %v5264, %v5260
    %v5565 = vpack.c.b16 %v5265, %v5261
    %v5566 = vpack.c.b16 %v5266, %v5262
    %v5567 = vpack.c.b16 %v5271, %v5267
    %v5568 = vpack.c.b16 %v5272, %v5268
    %v5569 = vpack.c.b16 %v5273, %v5269
    %v5570 = vpack.c.b16 %v5274, %v5270
    %v5571 = vpack.c.b16 %v5279, %v5275
    %v5572 = vpack.c.b16 %v5280, %v5276
    %v5573 = vpack.c.b16 %v5281, %v5277
    %v5574 = vpack.c.b16 %v5282, %v5278
    %v5575 = vpack.c.b16 %v5287, %v5283
    %v5576 = vpack.c.b16 %v5288, %v5284
    %v5577 = vpack.c.b16 %v5289, %v5285
    %v5578 = vpack.c.b16 %v5290, %v5286
    %v5579 = vpack.c.b16 %v5295, %v5291
    %v5580 = vpack.c.b16 %v5296, %v5292
    %v5581 = vpack.c.b16 %v5297, %v5293
    %v5582 = vpack.c.b16 %v5298, %v5294
    %v5583 = vpack.c.b16 %v5303, %v5299
    %v5584 = vpack.c.b16 %v5304, %v5300
    %v5585 = vpack.c.b16 %v5305, %v5301
    %v5586 = vpack.c.b16 %v5306, %v5302
    %v5587 = vpack.c.b16 %v5311, %v5307
    %v5588 = vpack.c.b16 %v5312, %v5308
    %v5589 = vpack.c.b16 %v5313, %v5309
    %v5590 = vpack.c.b16 %v5314, %v5310
    %v5591 = vpack.c.b16 %v5319, %v5315
    %v5592 = vpack.c.b16 %v5320, %v5316
    %v5593 = vpack.c.b16 %v5321, %v5317
    %v5594 = vpack.c.b16 %v5322, %v5318
    %v5595 = vpack.c.b16 %v5327, %v5323
    %v5596 = vpack.c.b16 %v5328, %v5324
    %v5597 = vpack.c.b16 %v5329, %v5325
    %v5598 = vpack.c.b16 %v5330, %v5326
    %v5599 = vpack.c.b16 %v5335, %v5331
    %v5600 = vpack.c.b16 %v5336, %v5332
    %v5601 = vpack.c.b16 %v5337, %v5333
    %v5602 = vpack.c.b16 %v5338, %v5334
    %v5603 = vpack.c.b16 %v5343, %v5339
    %v5604 = vpack.c.b16 %v5344, %v5340
    %v5605 = vpack.c.b16 %v5345, %v5341
    %v5606 = vpack.c.b16 %v5346, %v5342
    %v5607 = vpack.c.b16 %v5351, %v5347
    %v5608 = vpack.c.b16 %v5352, %v5348
    %v5609 = vpack.c.b16 %v5353, %v5349
    %v5610 = vpack.c.b16 %v5354, %v5350
    %5867 = vmatprep.subr.bf16.mxu0 %v5384
    %5868 = vmatpush1.bf16.msra.mxu0 %v5383
    %5869 = vmatprep.subr.bf16.mxu0 %v5380
    %5870 = vmatpush1.bf16.msra.mxu0 %v5379
    %5871 = vmatprep.subr.bf16.mxu0 %v5376
    %5872 = vmatpush1.bf16.msra.mxu0 %v5375
    %5873 = vmatprep.subr.bf16.mxu0 %v5372
    %5874 = vmatpush1.bf16.msra.mxu0 %v5371
    %5875 = vmatprep.subr.bf16.mxu0 %v5368
    %5876 = vmatpush1.bf16.msra.mxu0 %v5367
    %5877 = vmatprep.subr.bf16.mxu0 %v5364
    %5878 = vmatpush1.bf16.msra.mxu0 %v5363
    %5879 = vmatprep.subr.bf16.mxu0 %v5360
    %5880 = vmatpush1.bf16.msra.mxu0 %v5359
    %5881 = vmatprep.subr.bf16.mxu0 %v5356
    %5882 = vmatpush1.bf16.msra.mxu0 %v5355
    %5883 = vmatprep.subr.bf16.mxu0 %v5416
    %5884 = vmatpush2.bf16.msra.mxu0 %v5415
    %5885 = vmatprep.subr.bf16.mxu0 %v5412
    %5886 = vmatpush2.bf16.msra.mxu0 %v5411
    %5887 = vmatprep.subr.bf16.mxu0 %v5408
    %5888 = vmatpush2.bf16.msra.mxu0 %v5407
    %5889 = vmatprep.subr.bf16.mxu0 %v5404
    %5890 = vmatpush2.bf16.msra.mxu0 %v5403
    %5891 = vmatprep.subr.bf16.mxu0 %v5400
    %5892 = vmatpush2.bf16.msra.mxu0 %v5399
    %5893 = vmatprep.subr.bf16.mxu0 %v5396
    %5894 = vmatpush2.bf16.msra.mxu0 %v5395
    %5895 = vmatprep.subr.bf16.mxu0 %v5392
    %5896 = vmatpush2.bf16.msra.mxu0 %v5391
    %5897 = vmatprep.subr.bf16.mxu0 %v5388
    %5898 = vmatpush2.bf16.msra.mxu0 %v5387
    %5899 = vmatprep.mubr.bf16.mxu0 %v4302
    %5900 = vmatmul.mubr.bf16.gmra.mxu0 %v4301
    %v5901 = vpop.f32.mrf.mxu0
    %v5902 = vadd.f32 %v4570, %v5901
    %v5903 = vpop.f32.mrf.mxu0
    %v5904 = vadd.f32 %v4574, %v5903
    %v5905 = vpop.f32.mrf.mxu0
    %v5906 = vadd.f32 %v4570, %v5905
    %v5907 = vpop.f32.mrf.mxu0
    %v5908 = vadd.f32 %v4574, %v5907
    %5909 = vdwg.mxu0
    %5910 = vmatprep.subr.bf16.mxu0 %v5448
    %5911 = vmatpush1.bf16.msra.mxu0 %v5447
    %5912 = vmatprep.subr.bf16.mxu0 %v5444
    %5913 = vmatpush1.bf16.msra.mxu0 %v5443
    %5914 = vmatprep.subr.bf16.mxu0 %v5440
    %5915 = vmatpush1.bf16.msra.mxu0 %v5439
    %5916 = vmatprep.subr.bf16.mxu0 %v5436
    %5917 = vmatpush1.bf16.msra.mxu0 %v5435
    %5918 = vmatprep.subr.bf16.mxu0 %v5432
    %5919 = vmatpush1.bf16.msra.mxu0 %v5431
    %5920 = vmatprep.subr.bf16.mxu0 %v5428
    %5921 = vmatpush1.bf16.msra.mxu0 %v5427
    %5922 = vmatprep.subr.bf16.mxu0 %v5424
    %5923 = vmatpush1.bf16.msra.mxu0 %v5423
    %5924 = vmatprep.subr.bf16.mxu0 %v5420
    %5925 = vmatpush1.bf16.msra.mxu0 %v5419
    %5926 = vmatprep.subr.bf16.mxu0 %v5480
    %5927 = vmatpush2.bf16.msra.mxu0 %v5479
    %5928 = vmatprep.subr.bf16.mxu0 %v5476
    %5929 = vmatpush2.bf16.msra.mxu0 %v5475
    %5930 = vmatprep.subr.bf16.mxu0 %v5472
    %5931 = vmatpush2.bf16.msra.mxu0 %v5471
    %5932 = vmatprep.subr.bf16.mxu0 %v5468
    %5933 = vmatpush2.bf16.msra.mxu0 %v5467
    %5934 = vmatprep.subr.bf16.mxu0 %v5464
    %5935 = vmatpush2.bf16.msra.mxu0 %v5463
    %5936 = vmatprep.subr.bf16.mxu0 %v5460
    %5937 = vmatpush2.bf16.msra.mxu0 %v5459
    %5938 = vmatprep.subr.bf16.mxu0 %v5456
    %5939 = vmatpush2.bf16.msra.mxu0 %v5455
    %5940 = vmatprep.subr.bf16.mxu0 %v5452
    %5941 = vmatpush2.bf16.msra.mxu0 %v5451
    %5942 = vmatprep.mubr.bf16.mxu0 %v4304
    %5943 = vmatmul.mubr.bf16.gmra.mxu0 %v4303
    %v5944 = vpop.f32.mrf.mxu0
    %v5945 = vadd.f32 %v5902, %v5944
    %v5946 = vpop.f32.mrf.mxu0
    %v5947 = vadd.f32 %v5904, %v5946
    %v5948 = vpop.f32.mrf.mxu0
    %v5949 = vadd.f32 %v5906, %v5948
    %v5950 = vpop.f32.mrf.mxu0
    %v5951 = vadd.f32 %v5908, %v5950
    %5952 = vdwg.mxu0
    %5953 = vmatprep.subr.bf16.mxu0 %v5512
    %5954 = vmatpush1.bf16.msra.mxu0 %v5511
    %5955 = vmatprep.subr.bf16.mxu0 %v5508
    %5956 = vmatpush1.bf16.msra.mxu0 %v5507
    %5957 = vmatprep.subr.bf16.mxu0 %v5504
    %5958 = vmatpush1.bf16.msra.mxu0 %v5503
    %5959 = vmatprep.subr.bf16.mxu0 %v5500
    %5960 = vmatpush1.bf16.msra.mxu0 %v5499
    %5961 = vmatprep.subr.bf16.mxu0 %v5496
    %5962 = vmatpush1.bf16.msra.mxu0 %v5495
    %5963 = vmatprep.subr.bf16.mxu0 %v5492
    %5964 = vmatpush1.bf16.msra.mxu0 %v5491
    %5965 = vmatprep.subr.bf16.mxu0 %v5488
    %5966 = vmatpush1.bf16.msra.mxu0 %v5487
    %5967 = vmatprep.subr.bf16.mxu0 %v5484
    %5968 = vmatpush1.bf16.msra.mxu0 %v5483
    %5969 = vmatprep.subr.bf16.mxu0 %v5544
    %5970 = vmatpush2.bf16.msra.mxu0 %v5543
    %5971 = vmatprep.subr.bf16.mxu0 %v5540
    %5972 = vmatpush2.bf16.msra.mxu0 %v5539
    %5973 = vmatprep.subr.bf16.mxu0 %v5536
    %5974 = vmatpush2.bf16.msra.mxu0 %v5535
    %5975 = vmatprep.subr.bf16.mxu0 %v5532
    %5976 = vmatpush2.bf16.msra.mxu0 %v5531
    %5977 = vmatprep.subr.bf16.mxu0 %v5528
    %5978 = vmatpush2.bf16.msra.mxu0 %v5527
    %5979 = vmatprep.subr.bf16.mxu0 %v5524
    %5980 = vmatpush2.bf16.msra.mxu0 %v5523
    %5981 = vmatprep.subr.bf16.mxu0 %v5520
    %5982 = vmatpush2.bf16.msra.mxu0 %v5519
    %5983 = vmatprep.subr.bf16.mxu0 %v5516
    %5984 = vmatpush2.bf16.msra.mxu0 %v5515
    %5985 = vmatprep.mubr.bf16.mxu0 %v4306
    %5986 = vmatmul.mubr.bf16.gmra.mxu0 %v4305
    %v5987 = vpop.f32.mrf.mxu0
    %v5988 = vadd.f32 %v5945, %v5987
    %v5989 = vpop.f32.mrf.mxu0
    %v5990 = vadd.f32 %v5947, %v5989
    %v5991 = vpop.f32.mrf.mxu0
    %v5992 = vadd.f32 %v5949, %v5991
    %v5993 = vpop.f32.mrf.mxu0
    %v5994 = vadd.f32 %v5951, %v5993
    %5995 = vdwg.mxu0
    %5996 = vmatprep.subr.bf16.mxu0 %v5576
    %5997 = vmatpush1.bf16.msra.mxu0 %v5575
    %5998 = vmatprep.subr.bf16.mxu0 %v5572
    %5999 = vmatpush1.bf16.msra.mxu0 %v5571
    %6000 = vmatprep.subr.bf16.mxu0 %v5568
    %6001 = vmatpush1.bf16.msra.mxu0 %v5567
    %6002 = vmatprep.subr.bf16.mxu0 %v5564
    %6003 = vmatpush1.bf16.msra.mxu0 %v5563
    %6004 = vmatprep.subr.bf16.mxu0 %v5560
    %6005 = vmatpush1.bf16.msra.mxu0 %v5559
    %6006 = vmatprep.subr.bf16.mxu0 %v5556
    %6007 = vmatpush1.bf16.msra.mxu0 %v5555
    %6008 = vmatprep.subr.bf16.mxu0 %v5552
    %6009 = vmatpush1.bf16.msra.mxu0 %v5551
    %6010 = vmatprep.subr.bf16.mxu0 %v5548
    %6011 = vmatpush1.bf16.msra.mxu0 %v5547
    %6012 = vmatprep.subr.bf16.mxu0 %v5608
    %6013 = vmatpush2.bf16.msra.mxu0 %v5607
    %6014 = vmatprep.subr.bf16.mxu0 %v5604
    %6015 = vmatpush2.bf16.msra.mxu0 %v5603
    %6016 = vmatprep.subr.bf16.mxu0 %v5600
    %6017 = vmatpush2.bf16.msra.mxu0 %v5599
    %6018 = vmatprep.subr.bf16.mxu0 %v5596
    %6019 = vmatpush2.bf16.msra.mxu0 %v5595
    %6020 = vmatprep.subr.bf16.mxu0 %v5592
    %6021 = vmatpush2.bf16.msra.mxu0 %v5591
    %6022 = vmatprep.subr.bf16.mxu0 %v5588
    %6023 = vmatpush2.bf16.msra.mxu0 %v5587
    %6024 = vmatprep.subr.bf16.mxu0 %v5584
    %6025 = vmatpush2.bf16.msra.mxu0 %v5583
    %6026 = vmatprep.subr.bf16.mxu0 %v5580
    %6027 = vmatpush2.bf16.msra.mxu0 %v5579
    %6028 = vmatprep.mubr.bf16.mxu0 %v4308
    %6029 = vmatmul.mubr.bf16.gmra.mxu0 %v4307
    %v6030 = vpop.f32.mrf.mxu0
    %v6031 = vadd.f32 %v5988, %v6030
    %v6032 = vpop.f32.mrf.mxu0
    %v6033 = vadd.f32 %v5990, %v6032
    %v6034 = vpop.f32.mrf.mxu0
    %v6035 = vadd.f32 %v5992, %v6034
    %v6036 = vpop.f32.mrf.mxu0
    %v6037 = vadd.f32 %v5994, %v6036
    %6038 = vdwg.mxu0
    %6039 = vmatprep.subr.bf16.mxu0 %v5386
    %6040 = vmatpush1.bf16.msra.mxu0 %v5385
    %6041 = vmatprep.subr.bf16.mxu0 %v5382
    %6042 = vmatpush1.bf16.msra.mxu0 %v5381
    %6043 = vmatprep.subr.bf16.mxu0 %v5378
    %6044 = vmatpush1.bf16.msra.mxu0 %v5377
    %6045 = vmatprep.subr.bf16.mxu0 %v5374
    %6046 = vmatpush1.bf16.msra.mxu0 %v5373
    %6047 = vmatprep.subr.bf16.mxu0 %v5370
    %6048 = vmatpush1.bf16.msra.mxu0 %v5369
    %6049 = vmatprep.subr.bf16.mxu0 %v5366
    %6050 = vmatpush1.bf16.msra.mxu0 %v5365
    %6051 = vmatprep.subr.bf16.mxu0 %v5362
    %6052 = vmatpush1.bf16.msra.mxu0 %v5361
    %6053 = vmatprep.subr.bf16.mxu0 %v5358
    %6054 = vmatpush1.bf16.msra.mxu0 %v5357
    %6055 = vmatprep.subr.bf16.mxu0 %v5418
    %6056 = vmatpush2.bf16.msra.mxu0 %v5417
    %6057 = vmatprep.subr.bf16.mxu0 %v5414
    %6058 = vmatpush2.bf16.msra.mxu0 %v5413
    %6059 = vmatprep.subr.bf16.mxu0 %v5410
    %6060 = vmatpush2.bf16.msra.mxu0 %v5409
    %6061 = vmatprep.subr.bf16.mxu0 %v5406
    %6062 = vmatpush2.bf16.msra.mxu0 %v5405
    %6063 = vmatprep.subr.bf16.mxu0 %v5402
    %6064 = vmatpush2.bf16.msra.mxu0 %v5401
    %6065 = vmatprep.subr.bf16.mxu0 %v5398
    %6066 = vmatpush2.bf16.msra.mxu0 %v5397
    %6067 = vmatprep.subr.bf16.mxu0 %v5394
    %6068 = vmatpush2.bf16.msra.mxu0 %v5393
    %6069 = vmatprep.subr.bf16.mxu0 %v5390
    %6070 = vmatpush2.bf16.msra.mxu0 %v5389
    %6071 = vmatprep.mubr.bf16.mxu0 %v4302
    %6072 = vmatmul.mubr.bf16.gmra.mxu0 %v4301
    %v6073 = vpop.f32.mrf.mxu0
    %v6074 = vadd.f32 %v4578, %v6073
    %v6075 = vpop.f32.mrf.mxu0
    %v6076 = vadd.f32 %v4582, %v6075
    %v6077 = vpop.f32.mrf.mxu0
    %v6078 = vadd.f32 %v4578, %v6077
    %v6079 = vpop.f32.mrf.mxu0
    %v6080 = vadd.f32 %v4582, %v6079
    %6081 = vdwg.mxu0
    %6082 = vmatprep.subr.bf16.mxu0 %v5450
    %6083 = vmatpush1.bf16.msra.mxu0 %v5449
    %6084 = vmatprep.subr.bf16.mxu0 %v5446
    %6085 = vmatpush1.bf16.msra.mxu0 %v5445
    %6086 = vmatprep.subr.bf16.mxu0 %v5442
    %6087 = vmatpush1.bf16.msra.mxu0 %v5441
    %6088 = vmatprep.subr.bf16.mxu0 %v5438
    %6089 = vmatpush1.bf16.msra.mxu0 %v5437
    %6090 = vmatprep.subr.bf16.mxu0 %v5434
    %6091 = vmatpush1.bf16.msra.mxu0 %v5433
    %6092 = vmatprep.subr.bf16.mxu0 %v5430
    %6093 = vmatpush1.bf16.msra.mxu0 %v5429
    %6094 = vmatprep.subr.bf16.mxu0 %v5426
    %6095 = vmatpush1.bf16.msra.mxu0 %v5425
    %6096 = vmatprep.subr.bf16.mxu0 %v5422
    %6097 = vmatpush1.bf16.msra.mxu0 %v5421
    %6098 = vmatprep.subr.bf16.mxu0 %v5482
    %6099 = vmatpush2.bf16.msra.mxu0 %v5481
    %6100 = vmatprep.subr.bf16.mxu0 %v5478
    %6101 = vmatpush2.bf16.msra.mxu0 %v5477
    %6102 = vmatprep.subr.bf16.mxu0 %v5474
    %6103 = vmatpush2.bf16.msra.mxu0 %v5473
    %6104 = vmatprep.subr.bf16.mxu0 %v5470
    %6105 = vmatpush2.bf16.msra.mxu0 %v5469
    %6106 = vmatprep.subr.bf16.mxu0 %v5466
    %6107 = vmatpush2.bf16.msra.mxu0 %v5465
    %6108 = vmatprep.subr.bf16.mxu0 %v5462
    %6109 = vmatpush2.bf16.msra.mxu0 %v5461
    %6110 = vmatprep.subr.bf16.mxu0 %v5458
    %6111 = vmatpush2.bf16.msra.mxu0 %v5457
    %6112 = vmatprep.subr.bf16.mxu0 %v5454
    %6113 = vmatpush2.bf16.msra.mxu0 %v5453
    %6114 = vmatprep.mubr.bf16.mxu0 %v4304
    %6115 = vmatmul.mubr.bf16.gmra.mxu0 %v4303
    %v6116 = vpop.f32.mrf.mxu0
    %v6117 = vadd.f32 %v6074, %v6116
    %v6118 = vpop.f32.mrf.mxu0
    %v6119 = vadd.f32 %v6076, %v6118
    %v6120 = vpop.f32.mrf.mxu0
    %v6121 = vadd.f32 %v6078, %v6120
    %v6122 = vpop.f32.mrf.mxu0
    %v6123 = vadd.f32 %v6080, %v6122
    %6124 = vdwg.mxu0
    %6125 = vmatprep.subr.bf16.mxu0 %v5514
    %6126 = vmatpush1.bf16.msra.mxu0 %v5513
    %6127 = vmatprep.subr.bf16.mxu0 %v5510
    %6128 = vmatpush1.bf16.msra.mxu0 %v5509
    %6129 = vmatprep.subr.bf16.mxu0 %v5506
    %6130 = vmatpush1.bf16.msra.mxu0 %v5505
    %6131 = vmatprep.subr.bf16.mxu0 %v5502
    %6132 = vmatpush1.bf16.msra.mxu0 %v5501
    %6133 = vmatprep.subr.bf16.mxu0 %v5498
    %6134 = vmatpush1.bf16.msra.mxu0 %v5497
    %6135 = vmatprep.subr.bf16.mxu0 %v5494
    %6136 = vmatpush1.bf16.msra.mxu0 %v5493
    %6137 = vmatprep.subr.bf16.mxu0 %v5490
    %6138 = vmatpush1.bf16.msra.mxu0 %v5489
    %6139 = vmatprep.subr.bf16.mxu0 %v5486
    %6140 = vmatpush1.bf16.msra.mxu0 %v5485
    %6141 = vmatprep.subr.bf16.mxu0 %v5546
    %6142 = vmatpush2.bf16.msra.mxu0 %v5545
    %6143 = vmatprep.subr.bf16.mxu0 %v5542
    %6144 = vmatpush2.bf16.msra.mxu0 %v5541
    %6145 = vmatprep.subr.bf16.mxu0 %v5538
    %6146 = vmatpush2.bf16.msra.mxu0 %v5537
    %6147 = vmatprep.subr.bf16.mxu0 %v5534
    %6148 = vmatpush2.bf16.msra.mxu0 %v5533
    %6149 = vmatprep.subr.bf16.mxu0 %v5530
    %6150 = vmatpush2.bf16.msra.mxu0 %v5529
    %6151 = vmatprep.subr.bf16.mxu0 %v5526
    %6152 = vmatpush2.bf16.msra.mxu0 %v5525
    %6153 = vmatprep.subr.bf16.mxu0 %v5522
    %6154 = vmatpush2.bf16.msra.mxu0 %v5521
    %6155 = vmatprep.subr.bf16.mxu0 %v5518
    %6156 = vmatpush2.bf16.msra.mxu0 %v5517
    %6157 = vmatprep.mubr.bf16.mxu0 %v4306
    %6158 = vmatmul.mubr.bf16.gmra.mxu0 %v4305
    %v6159 = vpop.f32.mrf.mxu0
    %v6160 = vadd.f32 %v6117, %v6159
    %v6161 = vpop.f32.mrf.mxu0
    %v6162 = vadd.f32 %v6119, %v6161
    %v6163 = vpop.f32.mrf.mxu0
    %v6164 = vadd.f32 %v6121, %v6163
    %v6165 = vpop.f32.mrf.mxu0
    %v6166 = vadd.f32 %v6123, %v6165
    %6167 = vdwg.mxu0
    %6168 = vmatprep.subr.bf16.mxu0 %v5578
    %6169 = vmatpush1.bf16.msra.mxu0 %v5577
    %6170 = vmatprep.subr.bf16.mxu0 %v5574
    %6171 = vmatpush1.bf16.msra.mxu0 %v5573
    %6172 = vmatprep.subr.bf16.mxu0 %v5570
    %6173 = vmatpush1.bf16.msra.mxu0 %v5569
    %6174 = vmatprep.subr.bf16.mxu0 %v5566
    %6175 = vmatpush1.bf16.msra.mxu0 %v5565
    %6176 = vmatprep.subr.bf16.mxu0 %v5562
    %6177 = vmatpush1.bf16.msra.mxu0 %v5561
    %6178 = vmatprep.subr.bf16.mxu0 %v5558
    %6179 = vmatpush1.bf16.msra.mxu0 %v5557
    %6180 = vmatprep.subr.bf16.mxu0 %v5554
    %6181 = vmatpush1.bf16.msra.mxu0 %v5553
    %6182 = vmatprep.subr.bf16.mxu0 %v5550
    %6183 = vmatpush1.bf16.msra.mxu0 %v5549
    %6184 = vmatprep.subr.bf16.mxu0 %v5610
    %6185 = vmatpush2.bf16.msra.mxu0 %v5609
    %6186 = vmatprep.subr.bf16.mxu0 %v5606
    %6187 = vmatpush2.bf16.msra.mxu0 %v5605
    %6188 = vmatprep.subr.bf16.mxu0 %v5602
    %6189 = vmatpush2.bf16.msra.mxu0 %v5601
    %6190 = vmatprep.subr.bf16.mxu0 %v5598
    %6191 = vmatpush2.bf16.msra.mxu0 %v5597
    %6192 = vmatprep.subr.bf16.mxu0 %v5594
    %6193 = vmatpush2.bf16.msra.mxu0 %v5593
    %6194 = vmatprep.subr.bf16.mxu0 %v5590
    %6195 = vmatpush2.bf16.msra.mxu0 %v5589
    %6196 = vmatprep.subr.bf16.mxu0 %v5586
    %6197 = vmatpush2.bf16.msra.mxu0 %v5585
    %6198 = vmatprep.subr.bf16.mxu0 %v5582
    %6199 = vmatpush2.bf16.msra.mxu0 %v5581
    %6200 = vmatprep.mubr.bf16.mxu0 %v4308
    %6201 = vmatmul.mubr.bf16.gmra.mxu0 %v4307
    %v6202 = vpop.f32.mrf.mxu0
    %v6203 = vadd.f32 %v6160, %v6202
    %v6204 = vpop.f32.mrf.mxu0
    %v6205 = vadd.f32 %v6162, %v6204
    %v6206 = vpop.f32.mrf.mxu0
    %v6207 = vadd.f32 %v6164, %v6206
    %v6208 = vpop.f32.mrf.mxu0
    %v6209 = vadd.f32 %v6166, %v6208
    %6210 = vdwg.mxu0
    %v6211 = vmax.f32 %v6031, 0.0
    %v6212 = vmax.f32 %v6033, 0.0
    %v6213 = vmax.f32 %v6203, 0.0
    %v6214 = vmax.f32 %v6205, 0.0
    %v6215 = vmax.f32 %v6035, 0.0
    %v6216 = vmax.f32 %v6037, 0.0
    %v6217 = vmax.f32 %v6207, 0.0
    %v6218 = vmax.f32 %v6209, 0.0
    %v6219 = vpack.c.bf16 %v6215, %v6211
    %v6220 = vpack.c.bf16 %v6216, %v6212
    %v6221 = vpack.c.bf16 %v6217, %v6213
    %v6222 = vpack.c.bf16 %v6218, %v6214
    %v6223 = vld [vmem:[#allocation10] sm:$0xff]
    %v6224 = vld [vmem:[#allocation10 + $0x8] sm:$0xff]
    %v6225 = vld [vmem:[#allocation10 + $0x10] sm:$0xff]
    %v6226 = vld [vmem:[#allocation10 + $0x18] sm:$0xff]
    %v6227 = vld [vmem:[#allocation10 + $0x20] sm:$0xff]
    %v6228 = vld [vmem:[#allocation10 + $0x28] sm:$0xff]
    %v6229 = vld [vmem:[#allocation10 + $0x30] sm:$0xff]
    %v6230 = vld [vmem:[#allocation10 + $0x38] sm:$0xff]
    %v6231 = vld [vmem:[#allocation10 + $0x40] sm:$0xff]
    %v6232 = vld [vmem:[#allocation10 + $0x48] sm:$0xff]
    %v6233 = vld [vmem:[#allocation10 + $0x50] sm:$0xff]
    %v6234 = vld [vmem:[#allocation10 + $0x58] sm:$0xff]
    %v6235 = vld [vmem:[#allocation10 + $0x60] sm:$0xff]
    %v6236 = vld [vmem:[#allocation10 + $0x68] sm:$0xff]
    %v6237 = vld [vmem:[#allocation10 + $0x70] sm:$0xff]
    %v6238 = vld [vmem:[#allocation10 + $0x78] sm:$0xff]
    %v6239 = vld [vmem:[#allocation10 + $0x80] sm:$0xff]
    %v6240 = vld [vmem:[#allocation10 + $0x88] sm:$0xff]
    %v6241 = vld [vmem:[#allocation10 + $0x90] sm:$0xff]
    %v6242 = vld [vmem:[#allocation10 + $0x98] sm:$0xff]
    %v6243 = vld [vmem:[#allocation10 + $0xa0] sm:$0xff]
    %v6244 = vld [vmem:[#allocation10 + $0xa8] sm:$0xff]
    %v6245 = vld [vmem:[#allocation10 + $0xb0] sm:$0xff]
    %v6246 = vld [vmem:[#allocation10 + $0xb8] sm:$0xff]
    %v6247 = vld [vmem:[#allocation10 + $0xc0] sm:$0xff]
    %v6248 = vld [vmem:[#allocation10 + $0xc8] sm:$0xff]
    %v6249 = vld [vmem:[#allocation10 + $0xd0] sm:$0xff]
    %v6250 = vld [vmem:[#allocation10 + $0xd8] sm:$0xff]
    %v6251 = vld [vmem:[#allocation10 + $0xe0] sm:$0xff]
    %v6252 = vld [vmem:[#allocation10 + $0xe8] sm:$0xff]
    %v6253 = vld [vmem:[#allocation10 + $0xf0] sm:$0xff]
    %v6254 = vld [vmem:[#allocation10 + $0xf8] sm:$0xff]
    %v6255 = vld [vmem:[#allocation10 + $0x100] sm:$0xff]
    %v6256 = vld [vmem:[#allocation10 + $0x108] sm:$0xff]
    %v6257 = vld [vmem:[#allocation10 + $0x110] sm:$0xff]
    %v6258 = vld [vmem:[#allocation10 + $0x118] sm:$0xff]
    %v6259 = vld [vmem:[#allocation10 + $0x120] sm:$0xff]
    %v6260 = vld [vmem:[#allocation10 + $0x128] sm:$0xff]
    %v6261 = vld [vmem:[#allocation10 + $0x130] sm:$0xff]
    %v6262 = vld [vmem:[#allocation10 + $0x138] sm:$0xff]
    %v6263 = vld [vmem:[#allocation10 + $0x140] sm:$0xff]
    %v6264 = vld [vmem:[#allocation10 + $0x148] sm:$0xff]
    %v6265 = vld [vmem:[#allocation10 + $0x150] sm:$0xff]
    %v6266 = vld [vmem:[#allocation10 + $0x158] sm:$0xff]
    %v6267 = vld [vmem:[#allocation10 + $0x160] sm:$0xff]
    %v6268 = vld [vmem:[#allocation10 + $0x168] sm:$0xff]
    %v6269 = vld [vmem:[#allocation10 + $0x170] sm:$0xff]
    %v6270 = vld [vmem:[#allocation10 + $0x178] sm:$0xff]
    %v6271 = vld [vmem:[#allocation10 + $0x180] sm:$0xff]
    %v6272 = vld [vmem:[#allocation10 + $0x188] sm:$0xff]
    %v6273 = vld [vmem:[#allocation10 + $0x190] sm:$0xff]
    %v6274 = vld [vmem:[#allocation10 + $0x198] sm:$0xff]
    %v6275 = vld [vmem:[#allocation10 + $0x1a0] sm:$0xff]
    %v6276 = vld [vmem:[#allocation10 + $0x1a8] sm:$0xff]
    %v6277 = vld [vmem:[#allocation10 + $0x1b0] sm:$0xff]
    %v6278 = vld [vmem:[#allocation10 + $0x1b8] sm:$0xff]
    %v6279 = vld [vmem:[#allocation10 + $0x1c0] sm:$0xff]
    %v6280 = vld [vmem:[#allocation10 + $0x1c8] sm:$0xff]
    %v6281 = vld [vmem:[#allocation10 + $0x1d0] sm:$0xff]
    %v6282 = vld [vmem:[#allocation10 + $0x1d8] sm:$0xff]
    %v6283 = vld [vmem:[#allocation10 + $0x1e0] sm:$0xff]
    %v6284 = vld [vmem:[#allocation10 + $0x1e8] sm:$0xff]
    %v6285 = vld [vmem:[#allocation10 + $0x1f0] sm:$0xff]
    %v6286 = vld [vmem:[#allocation10 + $0x1f8] sm:$0xff]
    %v6287 = vld [vmem:[#allocation14 + $0x14] sm:$0x3]
    %v6289 = vlaneseq
    %v6290 = vshrl.u32 %v6289, 7
    %v6291 = vsub.s32 0, %v6290
    %v6292 = vrot.slane %v6287, %v6291
    %v6293 = vlaneseq
    %v6294 = vshrl.u32 %v6293, 7
    %v6295 = vsub.s32 1, %v6294
    %v6296 = vrot.slane %v6287, %v6295
    %v6363 = vunpack.c.l.b16 %v6223
    %v6364 = vunpack.c.h.b16 %v6223
    %v6365 = vunpack.c.l.b16 %v6224
    %v6366 = vunpack.c.h.b16 %v6224
    %v6367 = vunpack.c.l.b16 %v6225
    %v6368 = vunpack.c.h.b16 %v6225
    %v6369 = vunpack.c.l.b16 %v6226
    %v6370 = vunpack.c.h.b16 %v6226
    %v6371 = vunpack.c.l.b16 %v6227
    %v6372 = vunpack.c.h.b16 %v6227
    %v6373 = vunpack.c.l.b16 %v6228
    %v6374 = vunpack.c.h.b16 %v6228
    %v6375 = vunpack.c.l.b16 %v6229
    %v6376 = vunpack.c.h.b16 %v6229
    %v6377 = vunpack.c.l.b16 %v6230
    %v6378 = vunpack.c.h.b16 %v6230
    %v6379 = vunpack.c.l.b16 %v6231
    %v6380 = vunpack.c.h.b16 %v6231
    %v6381 = vunpack.c.l.b16 %v6232
    %v6382 = vunpack.c.h.b16 %v6232
    %v6383 = vunpack.c.l.b16 %v6233
    %v6384 = vunpack.c.h.b16 %v6233
    %v6385 = vunpack.c.l.b16 %v6234
    %v6386 = vunpack.c.h.b16 %v6234
    %v6387 = vunpack.c.l.b16 %v6235
    %v6388 = vunpack.c.h.b16 %v6235
    %v6389 = vunpack.c.l.b16 %v6236
    %v6390 = vunpack.c.h.b16 %v6236
    %v6391 = vunpack.c.l.b16 %v6237
    %v6392 = vunpack.c.h.b16 %v6237
    %v6393 = vunpack.c.l.b16 %v6238
    %v6394 = vunpack.c.h.b16 %v6238
    %v6395 = vunpack.c.l.b16 %v6239
    %v6396 = vunpack.c.h.b16 %v6239
    %v6397 = vunpack.c.l.b16 %v6240
    %v6398 = vunpack.c.h.b16 %v6240
    %v6399 = vunpack.c.l.b16 %v6241
    %v6400 = vunpack.c.h.b16 %v6241
    %v6401 = vunpack.c.l.b16 %v6242
    %v6402 = vunpack.c.h.b16 %v6242
    %v6403 = vunpack.c.l.b16 %v6243
    %v6404 = vunpack.c.h.b16 %v6243
    %v6405 = vunpack.c.l.b16 %v6244
    %v6406 = vunpack.c.h.b16 %v6244
    %v6407 = vunpack.c.l.b16 %v6245
    %v6408 = vunpack.c.h.b16 %v6245
    %v6409 = vunpack.c.l.b16 %v6246
    %v6410 = vunpack.c.h.b16 %v6246
    %v6411 = vunpack.c.l.b16 %v6247
    %v6412 = vunpack.c.h.b16 %v6247
    %v6413 = vunpack.c.l.b16 %v6248
    %v6414 = vunpack.c.h.b16 %v6248
    %v6415 = vunpack.c.l.b16 %v6249
    %v6416 = vunpack.c.h.b16 %v6249
    %v6417 = vunpack.c.l.b16 %v6250
    %v6418 = vunpack.c.h.b16 %v6250
    %v6419 = vunpack.c.l.b16 %v6251
    %v6420 = vunpack.c.h.b16 %v6251
    %v6421 = vunpack.c.l.b16 %v6252
    %v6422 = vunpack.c.h.b16 %v6252
    %v6423 = vunpack.c.l.b16 %v6253
    %v6424 = vunpack.c.h.b16 %v6253
    %v6425 = vunpack.c.l.b16 %v6254
    %v6426 = vunpack.c.h.b16 %v6254
    %v6427 = vunpack.c.l.b16 %v6255
    %v6428 = vunpack.c.h.b16 %v6255
    %v6429 = vunpack.c.l.b16 %v6256
    %v6430 = vunpack.c.h.b16 %v6256
    %v6431 = vunpack.c.l.b16 %v6257
    %v6432 = vunpack.c.h.b16 %v6257
    %v6433 = vunpack.c.l.b16 %v6258
    %v6434 = vunpack.c.h.b16 %v6258
    %v6435 = vunpack.c.l.b16 %v6259
    %v6436 = vunpack.c.h.b16 %v6259
    %v6437 = vunpack.c.l.b16 %v6260
    %v6438 = vunpack.c.h.b16 %v6260
    %v6439 = vunpack.c.l.b16 %v6261
    %v6440 = vunpack.c.h.b16 %v6261
    %v6441 = vunpack.c.l.b16 %v6262
    %v6442 = vunpack.c.h.b16 %v6262
    %v6443 = vunpack.c.l.b16 %v6263
    %v6444 = vunpack.c.h.b16 %v6263
    %v6445 = vunpack.c.l.b16 %v6264
    %v6446 = vunpack.c.h.b16 %v6264
    %v6447 = vunpack.c.l.b16 %v6265
    %v6448 = vunpack.c.h.b16 %v6265
    %v6449 = vunpack.c.l.b16 %v6266
    %v6450 = vunpack.c.h.b16 %v6266
    %v6451 = vunpack.c.l.b16 %v6267
    %v6452 = vunpack.c.h.b16 %v6267
    %v6453 = vunpack.c.l.b16 %v6268
    %v6454 = vunpack.c.h.b16 %v6268
    %v6455 = vunpack.c.l.b16 %v6269
    %v6456 = vunpack.c.h.b16 %v6269
    %v6457 = vunpack.c.l.b16 %v6270
    %v6458 = vunpack.c.h.b16 %v6270
    %v6459 = vunpack.c.l.b16 %v6271
    %v6460 = vunpack.c.h.b16 %v6271
    %v6461 = vunpack.c.l.b16 %v6272
    %v6462 = vunpack.c.h.b16 %v6272
    %v6463 = vunpack.c.l.b16 %v6273
    %v6464 = vunpack.c.h.b16 %v6273
    %v6465 = vunpack.c.l.b16 %v6274
    %v6466 = vunpack.c.h.b16 %v6274
    %v6467 = vunpack.c.l.b16 %v6275
    %v6468 = vunpack.c.h.b16 %v6275
    %v6469 = vunpack.c.l.b16 %v6276
    %v6470 = vunpack.c.h.b16 %v6276
    %v6471 = vunpack.c.l.b16 %v6277
    %v6472 = vunpack.c.h.b16 %v6277
    %v6473 = vunpack.c.l.b16 %v6278
    %v6474 = vunpack.c.h.b16 %v6278
    %v6475 = vunpack.c.l.b16 %v6279
    %v6476 = vunpack.c.h.b16 %v6279
    %v6477 = vunpack.c.l.b16 %v6280
    %v6478 = vunpack.c.h.b16 %v6280
    %v6479 = vunpack.c.l.b16 %v6281
    %v6480 = vunpack.c.h.b16 %v6281
    %v6481 = vunpack.c.l.b16 %v6282
    %v6482 = vunpack.c.h.b16 %v6282
    %v6483 = vunpack.c.l.b16 %v6283
    %v6484 = vunpack.c.h.b16 %v6283
    %v6485 = vunpack.c.l.b16 %v6284
    %v6486 = vunpack.c.h.b16 %v6284
    %v6487 = vunpack.c.l.b16 %v6285
    %v6488 = vunpack.c.h.b16 %v6285
    %v6489 = vunpack.c.l.b16 %v6286
    %v6490 = vunpack.c.h.b16 %v6286
    %v6491 = vpack.c.b16 %v6365, %v6363
    %v6492 = vpack.c.b16 %v6366, %v6364
    %v6493 = vpack.c.b16 %v6369, %v6367
    %v6494 = vpack.c.b16 %v6370, %v6368
    %v6495 = vpack.c.b16 %v6373, %v6371
    %v6496 = vpack.c.b16 %v6374, %v6372
    %v6497 = vpack.c.b16 %v6377, %v6375
    %v6498 = vpack.c.b16 %v6378, %v6376
    %v6499 = vpack.c.b16 %v6381, %v6379
    %v6500 = vpack.c.b16 %v6382, %v6380
    %v6501 = vpack.c.b16 %v6385, %v6383
    %v6502 = vpack.c.b16 %v6386, %v6384
    %v6503 = vpack.c.b16 %v6389, %v6387
    %v6504 = vpack.c.b16 %v6390, %v6388
    %v6505 = vpack.c.b16 %v6393, %v6391
    %v6506 = vpack.c.b16 %v6394, %v6392
    %v6507 = vpack.c.b16 %v6397, %v6395
    %v6508 = vpack.c.b16 %v6398, %v6396
    %v6509 = vpack.c.b16 %v6401, %v6399
    %v6510 = vpack.c.b16 %v6402, %v6400
    %v6511 = vpack.c.b16 %v6405, %v6403
    %v6512 = vpack.c.b16 %v6406, %v6404
    %v6513 = vpack.c.b16 %v6409, %v6407
    %v6514 = vpack.c.b16 %v6410, %v6408
    %v6515 = vpack.c.b16 %v6413, %v6411
    %v6516 = vpack.c.b16 %v6414, %v6412
    %v6517 = vpack.c.b16 %v6417, %v6415
    %v6518 = vpack.c.b16 %v6418, %v6416
    %v6519 = vpack.c.b16 %v6421, %v6419
    %v6520 = vpack.c.b16 %v6422, %v6420
    %v6521 = vpack.c.b16 %v6425, %v6423
    %v6522 = vpack.c.b16 %v6426, %v6424
    %v6523 = vpack.c.b16 %v6429, %v6427
    %v6524 = vpack.c.b16 %v6430, %v6428
    %v6525 = vpack.c.b16 %v6433, %v6431
    %v6526 = vpack.c.b16 %v6434, %v6432
    %v6527 = vpack.c.b16 %v6437, %v6435
    %v6528 = vpack.c.b16 %v6438, %v6436
    %v6529 = vpack.c.b16 %v6441, %v6439
    %v6530 = vpack.c.b16 %v6442, %v6440
    %v6531 = vpack.c.b16 %v6445, %v6443
    %v6532 = vpack.c.b16 %v6446, %v6444
    %v6533 = vpack.c.b16 %v6449, %v6447
    %v6534 = vpack.c.b16 %v6450, %v6448
    %v6535 = vpack.c.b16 %v6453, %v6451
    %v6536 = vpack.c.b16 %v6454, %v6452
    %v6537 = vpack.c.b16 %v6457, %v6455
    %v6538 = vpack.c.b16 %v6458, %v6456
    %v6539 = vpack.c.b16 %v6461, %v6459
    %v6540 = vpack.c.b16 %v6462, %v6460
    %v6541 = vpack.c.b16 %v6465, %v6463
    %v6542 = vpack.c.b16 %v6466, %v6464
    %v6543 = vpack.c.b16 %v6469, %v6467
    %v6544 = vpack.c.b16 %v6470, %v6468
    %v6545 = vpack.c.b16 %v6473, %v6471
    %v6546 = vpack.c.b16 %v6474, %v6472
    %v6547 = vpack.c.b16 %v6477, %v6475
    %v6548 = vpack.c.b16 %v6478, %v6476
    %v6549 = vpack.c.b16 %v6481, %v6479
    %v6550 = vpack.c.b16 %v6482, %v6480
    %v6551 = vpack.c.b16 %v6485, %v6483
    %v6552 = vpack.c.b16 %v6486, %v6484
    %v6553 = vpack.c.b16 %v6489, %v6487
    %v6554 = vpack.c.b16 %v6490, %v6488
    %6619 = vmatprep.subr.bf16.mxu0 %v6506
    %6620 = vmatpush1.bf16.msra.mxu0 %v6505
    %6621 = vmatprep.subr.bf16.mxu0 %v6504
    %6622 = vmatpush1.bf16.msra.mxu0 %v6503
    %6623 = vmatprep.subr.bf16.mxu0 %v6502
    %6624 = vmatpush1.bf16.msra.mxu0 %v6501
    %6625 = vmatprep.subr.bf16.mxu0 %v6500
    %6626 = vmatpush1.bf16.msra.mxu0 %v6499
    %6627 = vmatprep.subr.bf16.mxu0 %v6498
    %6628 = vmatpush1.bf16.msra.mxu0 %v6497
    %6629 = vmatprep.subr.bf16.mxu0 %v6496
    %6630 = vmatpush1.bf16.msra.mxu0 %v6495
    %6631 = vmatprep.subr.bf16.mxu0 %v6494
    %6632 = vmatpush1.bf16.msra.mxu0 %v6493
    %6633 = vmatprep.subr.bf16.mxu0 %v6492
    %6634 = vmatpush1.bf16.msra.mxu0 %v6491
    %6635 = vmatprep.subr.bf16.mxu0 %v6522
    %6636 = vmatpush2.bf16.msra.mxu0 %v6521
    %6637 = vmatprep.subr.bf16.mxu0 %v6520
    %6638 = vmatpush2.bf16.msra.mxu0 %v6519
    %6639 = vmatprep.subr.bf16.mxu0 %v6518
    %6640 = vmatpush2.bf16.msra.mxu0 %v6517
    %6641 = vmatprep.subr.bf16.mxu0 %v6516
    %6642 = vmatpush2.bf16.msra.mxu0 %v6515
    %6643 = vmatprep.subr.bf16.mxu0 %v6514
    %6644 = vmatpush2.bf16.msra.mxu0 %v6513
    %6645 = vmatprep.subr.bf16.mxu0 %v6512
    %6646 = vmatpush2.bf16.msra.mxu0 %v6511
    %6647 = vmatprep.subr.bf16.mxu0 %v6510
    %6648 = vmatpush2.bf16.msra.mxu0 %v6509
    %6649 = vmatprep.subr.bf16.mxu0 %v6508
    %6650 = vmatpush2.bf16.msra.mxu0 %v6507
    %6651 = vmatprep.mubr.bf16.mxu0 %v6220
    %6652 = vmatmul.mubr.bf16.gmra.mxu0 %v6219
    %v6653 = vpop.f32.mrf.mxu0
    %v6654 = vadd.f32 %v6292, %v6653
    %v6655 = vpop.f32.mrf.mxu0
    %v6656 = vadd.f32 %v6296, %v6655
    %v6657 = vpop.f32.mrf.mxu0
    %v6658 = vadd.f32 %v6292, %v6657
    %v6659 = vpop.f32.mrf.mxu0
    %v6660 = vadd.f32 %v6296, %v6659
    %6661 = vdwg.mxu0
    %6662 = vmatprep.subr.bf16.mxu0 %v6538
    %6663 = vmatpush1.bf16.msra.mxu0 %v6537
    %6664 = vmatprep.subr.bf16.mxu0 %v6536
    %6665 = vmatpush1.bf16.msra.mxu0 %v6535
    %6666 = vmatprep.subr.bf16.mxu0 %v6534
    %6667 = vmatpush1.bf16.msra.mxu0 %v6533
    %6668 = vmatprep.subr.bf16.mxu0 %v6532
    %6669 = vmatpush1.bf16.msra.mxu0 %v6531
    %6670 = vmatprep.subr.bf16.mxu0 %v6530
    %6671 = vmatpush1.bf16.msra.mxu0 %v6529
    %6672 = vmatprep.subr.bf16.mxu0 %v6528
    %6673 = vmatpush1.bf16.msra.mxu0 %v6527
    %6674 = vmatprep.subr.bf16.mxu0 %v6526
    %6675 = vmatpush1.bf16.msra.mxu0 %v6525
    %6676 = vmatprep.subr.bf16.mxu0 %v6524
    %6677 = vmatpush1.bf16.msra.mxu0 %v6523
    %6678 = vmatprep.subr.bf16.mxu0 %v6554
    %6679 = vmatpush2.bf16.msra.mxu0 %v6553
    %6680 = vmatprep.subr.bf16.mxu0 %v6552
    %6681 = vmatpush2.bf16.msra.mxu0 %v6551
    %6682 = vmatprep.subr.bf16.mxu0 %v6550
    %6683 = vmatpush2.bf16.msra.mxu0 %v6549
    %6684 = vmatprep.subr.bf16.mxu0 %v6548
    %6685 = vmatpush2.bf16.msra.mxu0 %v6547
    %6686 = vmatprep.subr.bf16.mxu0 %v6546
    %6687 = vmatpush2.bf16.msra.mxu0 %v6545
    %6688 = vmatprep.subr.bf16.mxu0 %v6544
    %6689 = vmatpush2.bf16.msra.mxu0 %v6543
    %6690 = vmatprep.subr.bf16.mxu0 %v6542
    %6691 = vmatpush2.bf16.msra.mxu0 %v6541
    %6692 = vmatprep.subr.bf16.mxu0 %v6540
    %6693 = vmatpush2.bf16.msra.mxu0 %v6539
    %6694 = vmatprep.mubr.bf16.mxu0 %v6222
    %6695 = vmatmul.mubr.bf16.gmra.mxu0 %v6221
    %v6696 = vpop.f32.mrf.mxu0
    %v6697 = vadd.f32 %v6654, %v6696
    %v6698 = vpop.f32.mrf.mxu0
    %v6699 = vadd.f32 %v6656, %v6698
    %v6700 = vpop.f32.mrf.mxu0
    %v6701 = vadd.f32 %v6658, %v6700
    %v6702 = vpop.f32.mrf.mxu0
    %v6703 = vadd.f32 %v6660, %v6702
    %6704 = vdwg.mxu0
    %v6705 = vmax.f32 %v6697, 0.0
    %v6706 = vmax.f32 %v6699, 0.0
    %v6707 = vmax.f32 %v6701, 0.0
    %v6708 = vmax.f32 %v6703, 0.0
    %v6709 = vpack.c.bf16 %v6707, %v6705
    %v6710 = vpack.c.bf16 %v6708, %v6706
    %v6711 = vld [vmem:[#allocation11] sm:$0xf]
    %v6712 = vld [vmem:[#allocation11 + $0x4] sm:$0xf]
    %v6713 = vld [vmem:[#allocation11 + $0x8] sm:$0xf]
    %v6714 = vld [vmem:[#allocation11 + $0xc] sm:$0xf]
    %v6715 = vld [vmem:[#allocation11 + $0x10] sm:$0xf]
    %v6716 = vld [vmem:[#allocation11 + $0x14] sm:$0xf]
    %v6717 = vld [vmem:[#allocation11 + $0x18] sm:$0xf]
    %v6718 = vld [vmem:[#allocation11 + $0x1c] sm:$0xf]
    %v6719 = vld [vmem:[#allocation11 + $0x20] sm:$0xf]
    %v6720 = vld [vmem:[#allocation11 + $0x24] sm:$0xf]
    %v6721 = vld [vmem:[#allocation11 + $0x28] sm:$0xf]
    %v6722 = vld [vmem:[#allocation11 + $0x2c] sm:$0xf]
    %v6723 = vld [vmem:[#allocation11 + $0x30] sm:$0xf]
    %v6724 = vld [vmem:[#allocation11 + $0x34] sm:$0xf]
    %v6725 = vld [vmem:[#allocation11 + $0x38] sm:$0xf]
    %v6726 = vld [vmem:[#allocation11 + $0x3c] sm:$0xf]
    %v6727 = vld [vmem:[#allocation11 + $0x40] sm:$0xf]
    %v6728 = vld [vmem:[#allocation11 + $0x44] sm:$0xf]
    %v6729 = vld [vmem:[#allocation11 + $0x48] sm:$0xf]
    %v6730 = vld [vmem:[#allocation11 + $0x4c] sm:$0xf]
    %v6731 = vld [vmem:[#allocation11 + $0x50] sm:$0xf]
    %v6732 = vld [vmem:[#allocation11 + $0x54] sm:$0xf]
    %v6733 = vld [vmem:[#allocation11 + $0x58] sm:$0xf]
    %v6734 = vld [vmem:[#allocation11 + $0x5c] sm:$0xf]
    %v6735 = vld [vmem:[#allocation11 + $0x60] sm:$0xf]
    %v6736 = vld [vmem:[#allocation11 + $0x64] sm:$0xf]
    %v6737 = vld [vmem:[#allocation11 + $0x68] sm:$0xf]
    %v6738 = vld [vmem:[#allocation11 + $0x6c] sm:$0xf]
    %v6739 = vld [vmem:[#allocation11 + $0x70] sm:$0xf]
    %v6740 = vld [vmem:[#allocation11 + $0x74] sm:$0xf]
    %v6741 = vld [vmem:[#allocation11 + $0x78] sm:$0xf]
    %v6742 = vld [vmem:[#allocation11 + $0x7c] sm:$0xf]
    %v6743 = vld [vmem:[#allocation14 + $0x16] sm:$0x1]
    %v6745 = vlaneseq
    %v6746 = vshrl.u32 %v6745, 7
    %v6747 = vsub.s32 0, %v6746
    %v6748 = vrot.slane %v6743, %v6747
    %v6782 = vunpack.c.l.b16 %v6711
    %v6783 = vunpack.c.l.b16 %v6712
    %v6784 = vunpack.c.l.b16 %v6713
    %v6785 = vunpack.c.l.b16 %v6714
    %v6786 = vunpack.c.l.b16 %v6715
    %v6787 = vunpack.c.l.b16 %v6716
    %v6788 = vunpack.c.l.b16 %v6717
    %v6789 = vunpack.c.l.b16 %v6718
    %v6790 = vunpack.c.l.b16 %v6719
    %v6791 = vunpack.c.l.b16 %v6720
    %v6792 = vunpack.c.l.b16 %v6721
    %v6793 = vunpack.c.l.b16 %v6722
    %v6794 = vunpack.c.l.b16 %v6723
    %v6795 = vunpack.c.l.b16 %v6724
    %v6796 = vunpack.c.l.b16 %v6725
    %v6797 = vunpack.c.l.b16 %v6726
    %v6798 = vunpack.c.l.b16 %v6727
    %v6799 = vunpack.c.l.b16 %v6728
    %v6800 = vunpack.c.l.b16 %v6729
    %v6801 = vunpack.c.l.b16 %v6730
    %v6802 = vunpack.c.l.b16 %v6731
    %v6803 = vunpack.c.l.b16 %v6732
    %v6804 = vunpack.c.l.b16 %v6733
    %v6805 = vunpack.c.l.b16 %v6734
    %v6806 = vunpack.c.l.b16 %v6735
    %v6807 = vunpack.c.l.b16 %v6736
    %v6808 = vunpack.c.l.b16 %v6737
    %v6809 = vunpack.c.l.b16 %v6738
    %v6810 = vunpack.c.l.b16 %v6739
    %v6811 = vunpack.c.l.b16 %v6740
    %v6812 = vunpack.c.l.b16 %v6741
    %v6813 = vunpack.c.l.b16 %v6742
    %v6814 = vpack.c.b16 %v6783, %v6782
    %v6815 = vpack.c.b16 %v6785, %v6784
    %v6816 = vpack.c.b16 %v6787, %v6786
    %v6817 = vpack.c.b16 %v6789, %v6788
    %v6818 = vpack.c.b16 %v6791, %v6790
    %v6819 = vpack.c.b16 %v6793, %v6792
    %v6820 = vpack.c.b16 %v6795, %v6794
    %v6821 = vpack.c.b16 %v6797, %v6796
    %v6822 = vpack.c.b16 %v6799, %v6798
    %v6823 = vpack.c.b16 %v6801, %v6800
    %v6824 = vpack.c.b16 %v6803, %v6802
    %v6825 = vpack.c.b16 %v6805, %v6804
    %v6826 = vpack.c.b16 %v6807, %v6806
    %v6827 = vpack.c.b16 %v6809, %v6808
    %v6828 = vpack.c.b16 %v6811, %v6810
    %v6829 = vpack.c.b16 %v6813, %v6812
    %6846 = vmatprep.subr.bf16.mxu0 0
    %6847 = vmatpush1.bf16.msra.mxu0 %v6821
    %6848 = vmatprep.subr.bf16.mxu0 0
    %6849 = vmatpush1.bf16.msra.mxu0 %v6820
    %6850 = vmatprep.subr.bf16.mxu0 0
    %6851 = vmatpush1.bf16.msra.mxu0 %v6819
    %6852 = vmatprep.subr.bf16.mxu0 0
    %6853 = vmatpush1.bf16.msra.mxu0 %v6818
    %6854 = vmatprep.subr.bf16.mxu0 0
    %6855 = vmatpush1.bf16.msra.mxu0 %v6817
    %6856 = vmatprep.subr.bf16.mxu0 0
    %6857 = vmatpush1.bf16.msra.mxu0 %v6816
    %6858 = vmatprep.subr.bf16.mxu0 0
    %6859 = vmatpush1.bf16.msra.mxu0 %v6815
    %6860 = vmatprep.subr.bf16.mxu0 0
    %6861 = vmatpush1.bf16.msra.mxu0 %v6814
    %6862 = vmatprep.subr.bf16.mxu0 0
    %6863 = vmatpush2.bf16.msra.mxu0 %v6829
    %6864 = vmatprep.subr.bf16.mxu0 0
    %6865 = vmatpush2.bf16.msra.mxu0 %v6828
    %6866 = vmatprep.subr.bf16.mxu0 0
    %6867 = vmatpush2.bf16.msra.mxu0 %v6827
    %6868 = vmatprep.subr.bf16.mxu0 0
    %6869 = vmatpush2.bf16.msra.mxu0 %v6826
    %6870 = vmatprep.subr.bf16.mxu0 0
    %6871 = vmatpush2.bf16.msra.mxu0 %v6825
    %6872 = vmatprep.subr.bf16.mxu0 0
    %6873 = vmatpush2.bf16.msra.mxu0 %v6824
    %6874 = vmatprep.subr.bf16.mxu0 0
    %6875 = vmatpush2.bf16.msra.mxu0 %v6823
    %6876 = vmatprep.subr.bf16.mxu0 0
    %6877 = vmatpush2.bf16.msra.mxu0 %v6822
    %6878 = vmatprep.mubr.bf16.mxu0 %v6710
    %6879 = vmatmul.mubr.bf16.gmra.mxu0 %v6709
    %v6880 = vpop.f32.mrf.mxu0
    %v6881 = vadd.f32 %v6748, %v6880
    %v6882 = vpop.f32.mrf.mxu0
    %v6883 = vpop.f32.mrf.mxu0
    %v6884 = vadd.f32 %v6748, %v6883
    %v6885 = vpop.f32.mrf.mxu0
    %6886 = vdwg.mxu0
    %v6887 = vmax.f32 %v6881, 0.0
    %v6888 = vmax.f32 %v6884, 0.0
    %v6889 = vpack.c.bf16 %v6888, %v6887
    %v6890 = vld [vmem:[#allocation13] sm:$0xf]
    %v6891 = vld [vmem:[#allocation13 + $0x4] sm:$0xf]
    %v6892 = vld [vmem:[#allocation13 + $0x8] sm:$0xf]
    %v6893 = vld [vmem:[#allocation13 + $0xc] sm:$0xf]
    %v6894 = vld [vmem:[#allocation13 + $0x10] sm:$0xf]
    %v6895 = vld [vmem:[#allocation13 + $0x14] sm:$0xf]
    %v6896 = vld [vmem:[#allocation13 + $0x18] sm:$0xf]
    %v6897 = vld [vmem:[#allocation13 + $0x1c] sm:$0xf]
    %v6898 = vld [vmem:[#allocation13 + $0x20] sm:$0xf]
    %v6899 = vld [vmem:[#allocation13 + $0x24] sm:$0xf]
    %v6900 = vld [vmem:[#allocation13 + $0x28] sm:$0xf]
    %v6901 = vld [vmem:[#allocation13 + $0x2c] sm:$0xf]
    %v6902 = vld [vmem:[#allocation13 + $0x30] sm:$0xf]
    %v6903 = vld [vmem:[#allocation13 + $0x34] sm:$0xf]
    %v6904 = vld [vmem:[#allocation13 + $0x38] sm:$0xf]
    %v6905 = vld [vmem:[#allocation13 + $0x3c] sm:$0xf]
    %v6906 = vld [vmem:[#allocation14 + $0x17] sm:$0x1]
    %v6908 = vlaneseq
    %v6909 = vshrl.u32 %v6908, 7
    %v6910 = vsub.s32 0, %v6909
    %v6911 = vrot.slane %v6906, %v6910
    %v6929 = vunpack.c.l.b16 %v6890
    %v6930 = vunpack.c.l.b16 %v6891
    %v6931 = vunpack.c.l.b16 %v6892
    %v6932 = vunpack.c.l.b16 %v6893
    %v6933 = vunpack.c.l.b16 %v6894
    %v6934 = vunpack.c.l.b16 %v6895
    %v6935 = vunpack.c.l.b16 %v6896
    %v6936 = vunpack.c.l.b16 %v6897
    %v6937 = vunpack.c.l.b16 %v6898
    %v6938 = vunpack.c.l.b16 %v6899
    %v6939 = vunpack.c.l.b16 %v6900
    %v6940 = vunpack.c.l.b16 %v6901
    %v6941 = vunpack.c.l.b16 %v6902
    %v6942 = vunpack.c.l.b16 %v6903
    %v6943 = vunpack.c.l.b16 %v6904
    %v6944 = vunpack.c.l.b16 %v6905
    %v6945 = vpack.c.b16 %v6930, %v6929
    %v6946 = vpack.c.b16 %v6932, %v6931
    %v6947 = vpack.c.b16 %v6934, %v6933
    %v6948 = vpack.c.b16 %v6936, %v6935
    %v6949 = vpack.c.b16 %v6938, %v6937
    %v6950 = vpack.c.b16 %v6940, %v6939
    %v6951 = vpack.c.b16 %v6942, %v6941
    %v6952 = vpack.c.b16 %v6944, %v6943
    %6961 = vmatprep.subr.bf16.mxu0 0
    %6962 = vmatpush1.bf16.msra.mxu0 %v6952
    %6963 = vmatprep.subr.bf16.mxu0 0
    %6964 = vmatpush1.bf16.msra.mxu0 %v6951
    %6965 = vmatprep.subr.bf16.mxu0 0
    %6966 = vmatpush1.bf16.msra.mxu0 %v6950
    %6967 = vmatprep.subr.bf16.mxu0 0
    %6968 = vmatpush1.bf16.msra.mxu0 %v6949
    %6969 = vmatprep.subr.bf16.mxu0 0
    %6970 = vmatpush1.bf16.msra.mxu0 %v6948
    %6971 = vmatprep.subr.bf16.mxu0 0
    %6972 = vmatpush1.bf16.msra.mxu0 %v6947
    %6973 = vmatprep.subr.bf16.mxu0 0
    %6974 = vmatpush1.bf16.msra.mxu0 %v6946
    %6975 = vmatprep.subr.bf16.mxu0 0
    %6976 = vmatpush1.bf16.msra.mxu0 %v6945
    %6977 = vmatprep.subr.bf16.mxu0 0
    %6978 = vmatpush2.bf16.msra.mxu0 0
    %6979 = vmatprep.subr.bf16.mxu0 0
    %6980 = vmatpush2.bf16.msra.mxu0 0
    %6981 = vmatprep.subr.bf16.mxu0 0
    %6982 = vmatpush2.bf16.msra.mxu0 0
    %6983 = vmatprep.subr.bf16.mxu0 0
    %6984 = vmatpush2.bf16.msra.mxu0 0
    %6985 = vmatprep.subr.bf16.mxu0 0
    %6986 = vmatpush2.bf16.msra.mxu0 0
    %6987 = vmatprep.subr.bf16.mxu0 0
    %6988 = vmatpush2.bf16.msra.mxu0 0
    %6989 = vmatprep.subr.bf16.mxu0 0
    %6990 = vmatpush2.bf16.msra.mxu0 0
    %6991 = vmatprep.subr.bf16.mxu0 0
    %6992 = vmatpush2.bf16.msra.mxu0 0
    %6993 = vmatprep.mubr.bf16.mxu0 0
    %6994 = vmatmul.mubr.bf16.gmra.mxu0 %v6889
    %v6995 = vpop.f32.mrf.mxu0
    %v6996 = vadd.f32 %v6911, %v6995
    %v6997 = vpop.f32.mrf.mxu0
    %v6998 = vpop.f32.mrf.mxu0
    %v6999 = vadd.f32 %v6911, %v6998
    %v7000 = vpop.f32.mrf.mxu0
    %7001 = vdwg.mxu0
    %v7002 = vmax.f32 %v6996, 0.0
    %v7003 = vmax.f32 %v6999, 0.0
    %v7004 = vpack.c.bf16 %v7003, %v7002
    %v7006 = vunpack.c.l.b16 %v7004
    %v7007 = vunpack.c.h.b16 %v7004
    %v7008 = vpack.c.b16 %v7006, %v7006
    %v7009 = vpack.c.b16 %v7007, %v7007
    %7012 = vst [vmem:[#allocation16] sm:$0xf] %v7008
    %7013 = vst [vmem:[#allocation16 + $0x4] sm:$0xf] %v7009
    // Predicated region
    $region66: #{_mlps_impl.1} parent=1 // pred_check
      _
    $region67: #{_mlps_impl.1} parent=1 // pred_check_branch
      %7015 = sbr.rel (0) target = $region69
    $region68: #{_mlps_impl.1} parent=1 // pred_region
      %s7017 = ssub.s32 128, 128
      %7018 = vsyncadd [#allocation4], %s7017
      %s7019 = sshll.u32 [#allocation16], 4
      %s7020 = int_to_ptr.vmem [resolvable:$true] %s7019
      %7025 = dma.vmem_to_hbm [thread:$0]  %s7020, 128, %s8, [#allocation4], 64, 64, 4
    $region69: #{_mlps_impl.1} parent=1 // pred_fallthru
      _
    // Predicated region
    $region70: #{_mlps_impl.1} parent=1 // pred_check
      _
    $region71: #{_mlps_impl.1} parent=1 // pred_check_branch
      %7027 = sbr.rel (0) target = $region73
    $region72: #{_mlps_impl.1} parent=1 // pred_region
      %7028 = dma.done [#allocation4], 128
    $region73: #{_mlps_impl.1} parent=1 // pred_fallthru
      _
    %7029 = vsyncpa [#allocation3], 1
    %7030 = vsyncpa [#allocation6], 1
    %7031 = vsyncpa [#allocation9], 1
    %7032 = vsyncpa [#allocation12], 1
    %7033 = vsyncpa [#allocation15], 1
    %7034 = vsyncpa [#allocation4], 1

</llo_original>
